<compile_context>
chip_gen: v5e
topology: v5e:2x2
jax: 0.10.0
libtpu: 0.0.40
codegen_flags: <defaults>
</compile_context>

<pallas_src>
import jax
import jax.numpy as jnp
from jax.experimental import pallas as pl
from jax.experimental.pallas import tpu as pltpu

# ----------------------------- config ---------------------------------------
# Scaled-down DistilBERT (real: D=768, H=12, layers=6, ffn=3072, proj=256)
B, S        = 4, 8          # batch, sequence length
B_BLOCK     = 2             # batch rows per grid block ("parallel" axis)
VOCAB       = 64
D           = 128           # hidden size
H           = 4             # attention heads
HD          = D // H        # per-head dim
FFN         = 4 * D
N_LAYERS    = 2
PROJ        = 128           # projection_size
LN_EPS_BERT = 1e-12         # DistilBERT LayerNorm eps
LN_EPS_PROJ = 1e-5          # nn.LayerNorm default eps (ProjectionBlock)
NEG_INF     = -1e30


# --------------------------- in-kernel helpers -------------------------------
def _ln(x, g, b, eps):
    # centered two-pass layernorm (numerically safe vs E[x^2]-E[x]^2)
    m = jnp.mean(x, axis=-1, keepdims=True)
    xc = x - m
    v = jnp.mean(xc * xc, axis=-1, keepdims=True)
    return xc * jax.lax.rsqrt(v + eps) * g + b


def _gelu(x):
    # TODO(synk): nn.GELU default is exact erf-GELU; tanh approximation used here.
    c = 0.7978845608028654  # sqrt(2/pi)
    return 0.5 * x * (1.0 + jnp.tanh(c * (x + 0.044715 * x * x * x)))


# ------------------------------- fused kernel --------------------------------
def encoder_kernel(tok_ref, pos_ref, embp_ref, maskb_ref,
                   qkvw_ref, qkvb_ref, wo_ref, vecd_ref,
                   w1_ref, c1_ref, w2_ref,
                   wp_ref, wf_ref, headp_ref,
                   out_ref, x_sc):
    layer = pl.program_id(1)                         # inner, "arbitrary" axis

    # ---- first layer step of this batch block: embeddings + LN --------------
    @pl.when(layer == 0)
    def _():
        x0 = tok_ref[...] + pos_ref[...][None, :, :]
        x_sc[...] = _ln(x0, embp_ref[0, :], embp_ref[1, :], LN_EPS_BERT)

    # ---- transformer block `layer` (x resident in VMEM scratch) -------------
    x = x_sc[...]                                    # (Bblk, S, D) f32
    bsz, seq, d = x.shape
    xf = x.reshape(bsz * seq, d)

    # fused QKV projection: one K=D matmul -> (Bblk*S, 3D).
    # 1/sqrt(HD) scale is pre-folded into the Q third of qkv_w / qkv_b.
    qkv = jnp.dot(xf.astype(jnp.bfloat16), qkvw_ref[...],
                  preferred_element_type=jnp.float32) + qkvb_ref[...]
    # cast ONCE as whole tensors; per-head slices below are bf16 slices
    q = qkv[:, 0 * d:1 * d].reshape(bsz, seq, d).astype(jnp.bfloat16)
    k = qkv[:, 1 * d:2 * d].reshape(bsz, seq, d).astype(jnp.bfloat16)
    v = qkv[:, 2 * d:3 * d].reshape(bsz, seq, d).astype(jnp.bfloat16)

    # additive mask bias (Bblk, 1, S): broadcasts over query rows inside the
    # score add -- no (B,S,S) materialization.
    mb = maskb_ref[...]

    vd = vecd_ref[...]                               # (6, D): bo,g1,be1,c2,g2,be2

    # per-head attention; each head's context is accumulated directly into the
    # output projection via a static sublane slice of wo (no lane concat).
    attn = jnp.zeros((bsz * seq, d), jnp.float32)
    for h in range(H):                               # unrolled, H small
        sl = slice(h * HD, (h + 1) * HD)
        s = jnp.einsum('bqd,bkd->bqk', q[:, :, sl], k[:, :, sl],
                       preferred_element_type=jnp.float32) + mb
        s = s - jnp.max(s, axis=-1, keepdims=True)
        e = jnp.exp(s)
        p = e * pl.reciprocal(jnp.sum(e, axis=-1, keepdims=True), approx=True)
        ctx = jnp.einsum('bqk,bkd->bqd', p.astype(jnp.bfloat16), v[:, :, sl],
                         preferred_element_type=jnp.float32)
        attn = attn + jnp.dot(ctx.reshape(bsz * seq, HD).astype(jnp.bfloat16),
                              wo_ref[sl, :], preferred_element_type=jnp.float32)
    attn = attn + vd[0, :]
    h1 = _ln(x + attn.reshape(bsz, seq, d), vd[1, :], vd[2, :], LN_EPS_BERT)

    # FFN
    f = _gelu(jnp.dot(h1.reshape(bsz * seq, d).astype(jnp.bfloat16), w1_ref[...],
                      preferred_element_type=jnp.float32) + c1_ref[...])
    f = jnp.dot(f.astype(jnp.bfloat16), w2_ref[...],
                preferred_element_type=jnp.float32) + vd[3, :]
    x_new = _ln(h1 + f.reshape(bsz, seq, d), vd[4, :], vd[5, :], LN_EPS_BERT)
    x_sc[...] = x_new

    # ---- last layer step: CLS select + ProjectionBlock + L2 normalize -------
    @pl.when(layer == N_LAYERS - 1)
    def _():
        cls = x_new[:, 0, :]                         # target_token_idx = 0
        hp = headp_ref[...]                          # (4, PROJ): bp, bf, g, b
        proj = jnp.dot(cls.astype(jnp.bfloat16), wp_ref[...],
                       preferred_element_type=jnp.float32) + hp[0, :]
        y = _gelu(proj)
        y = jnp.dot(y.astype(jnp.bfloat16), wf_ref[...],
                    preferred_element_type=jnp.float32) + hp[1, :]
        y = y + proj                                 # residual (dropout = id)
        y = _ln(y, hp[2, :], hp[3, :], LN_EPS_PROJ)
        # F.normalize(p=2, dim=1): x / max(||x||_2, eps)
        nrm = jnp.sqrt(jnp.sum(y * y, axis=-1, keepdims=True))
        out_ref[:, 0, :] = y / jnp.maximum(nrm, 1e-12)


# ------------------------------ wrappers -------------------------------------
def _encode(params, tok, maskb):
    nb = B // B_BLOCK
    grid_spec = pltpu.PrefetchScalarGridSpec(
        num_scalar_prefetch=0,
        grid=(nb, N_LAYERS),                                       # (parallel, arbitrary)
        in_specs=[
            pl.BlockSpec((B_BLOCK, S, D), lambda b, l: (b, 0, 0)),  # tok emb
            pl.BlockSpec((S, D),          lambda b, l: (0, 0)),     # pos emb
            pl.BlockSpec((2, D),          lambda b, l: (0, 0)),     # emb LN g|b
            pl.BlockSpec((B_BLOCK, 1, S), lambda b, l: (b, 0, 0)),  # mask bias
            pl.BlockSpec((None, D, 3 * D), lambda b, l: (l, 0, 0)), # qkv_w
            pl.BlockSpec((None, 1, 3 * D), lambda b, l: (l, 0, 0)), # qkv_b
            pl.BlockSpec((None, D, D),     lambda b, l: (l, 0, 0)), # wo
            pl.BlockSpec((None, 6, D),     lambda b, l: (l, 0, 0)), # packed vecs
            pl.BlockSpec((None, D, FFN),   lambda b, l: (l, 0, 0)), # w1
            pl.BlockSpec((None, 1, FFN),   lambda b, l: (l, 0, 0)), # c1
            pl.BlockSpec((None, FFN, D),   lambda b, l: (l, 0, 0)), # w2
            pl.BlockSpec((D, PROJ),    lambda b, l: (0, 0)),        # head wp
            pl.BlockSpec((PROJ, PROJ), lambda b, l: (0, 0)),        # head wf
            pl.BlockSpec((4, PROJ),    lambda b, l: (0, 0)),        # head vecs
        ],
        out_specs=pl.BlockSpec((B_BLOCK, 1, PROJ), lambda b, l: (b, 0, 0)),
        scratch_shapes=[pltpu.VMEM((B_BLOCK, S, D), jnp.float32)],  # resident x
    )
    out = pl.pallas_call(
        encoder_kernel,
        out_shape=jax.ShapeDtypeStruct((B, 1, PROJ), jnp.float32),
        grid_spec=grid_spec,
        compiler_params=pltpu.CompilerParams(
            # batch blocks shard across TCs (v7x); layers are sequential
            dimension_semantics=("parallel", "arbitrary"),
            # TODO(synk): at real sizes raise toward ~100 MiB on v5e/v6e and
            # instead tile FFN/attention on v7x (64 MiB physical VMEM).
            vmem_limit_bytes=64 * 1024 * 1024,
        ),
    )(tok, params['pos_emb'], params['emb_ln'], maskb,
      params['qkv_w'], params['qkv_b'], params['wo'], params['vec_d'],
      params['w1'], params['c1'], params['w2'],
      params['wp'], params['wf'], params['head_p'])
    return out[:, 0, :]


def init_params(key):
    ks = jax.random.split(key, 8)

    def nrm(k, shape, scale=0.02):
        return scale * jax.random.normal(k, shape, jnp.float32)

    # fold the 1/sqrt(HD) attention scale into the Q third of the fused QKV
    # projection (one-time param transform -> no in-kernel multiply).
    att_scale = 1.0 / (HD ** 0.5)
    qkv_w = nrm(ks[2], (N_LAYERS, D, 3 * D))
    qkv_w = qkv_w.at[:, :, :D].multiply(att_scale)
    qkv_b = jnp.zeros((N_LAYERS, 1, 3 * D), jnp.float32)
    qkv_b = qkv_b.at[:, :, :D].multiply(att_scale)   # zeros here; kept for generality

    vec_d = jnp.zeros((N_LAYERS, 6, D), jnp.float32)     # bo,g1,be1,c2,g2,be2
    vec_d = vec_d.at[:, 1, :].set(1.0).at[:, 4, :].set(1.0)
    head_p = jnp.zeros((4, PROJ), jnp.float32).at[2, :].set(1.0)  # bp,bf,g,b
    emb_ln = jnp.concatenate([jnp.ones((1, D), jnp.float32),
                              jnp.zeros((1, D), jnp.float32)], axis=0)

    return {
        'word_emb': nrm(ks[0], (VOCAB, D)),
        'pos_emb':  nrm(ks[1], (S, D)),
        'emb_ln':   emb_ln,
        # per-layer stacked weights (bf16 for the MXU), packed bias/LN vectors
        'qkv_w': qkv_w.astype(jnp.bfloat16),
        'qkv_b': qkv_b,
        'wo':    nrm(ks[3], (N_LAYERS, D, D)).astype(jnp.bfloat16),
        'vec_d': vec_d,
        'w1':    nrm(ks[4], (N_LAYERS, D, FFN)).astype(jnp.bfloat16),
        'c1':    jnp.zeros((N_LAYERS, 1, FFN), jnp.float32),
        'w2':    nrm(ks[5], (N_LAYERS, FFN, D)).astype(jnp.bfloat16),
        # ProjectionBlock head
        'wp':     nrm(ks[6], (D, PROJ)).astype(jnp.bfloat16),
        'wf':     nrm(ks[7], (PROJ, PROJ)).astype(jnp.bfloat16),
        'head_p': head_p,
    }


def text_encoder_forward(params, input_ids, attention_mask):
    # Token-embedding gather is data-dependent glue; kept in XLA at toy VOCAB.
    # TODO(synk): at real VOCAB move it in-kernel via scalar-prefetch row gather.
    tok = jnp.take(params['word_emb'], input_ids, axis=0)          # (B, S, D)
    # additive attention bias (B, 1, S): 0 = keep, -1e30 = masked
    maskb = jnp.where(attention_mask > 0, 0.0, NEG_INF).astype(jnp.float32)[:, None, :]
    return _encode(params, tok, maskb)


if __name__ == "__main__":
    key = jax.random.PRNGKey(0)
    pkey, ikey = jax.random.split(key)
    params = init_params(pkey)

    input_ids = jax.random.randint(ikey, (B, S), 0, VOCAB, dtype=jnp.int32)
    attention_mask = (jnp.ones((B, S), jnp.int32)
                      .at[1, 6:].set(0)            # pad row 1 tail
                      .at[3, 5:].set(0))           # pad row 3 tail

    out = text_encoder_forward(params, input_ids, attention_mask)
    out = jax.block_until_ready(out)

    assert out.shape == (B, PROJ) and out.dtype == jnp.float32
    norms = jnp.linalg.norm(out, axis=1)
    assert bool(jnp.all(jnp.abs(norms - 1.0) < 1e-3)), norms       # l2_norm=True
    print("KERNEL_OK")
</pallas_src>

<mosaic_0001>
module attributes {stable_mosaic.version = 11 : i64} {
  func.func @encoder_kernel(%arg0: i32, %arg1: i32, %arg2: memref<2x8x128xf32, #tpu.memory_space<vmem>>, %arg3: memref<8x128xf32, #tpu.memory_space<vmem>>, %arg4: memref<2x128xf32, #tpu.memory_space<vmem>>, %arg5: memref<2x1x8xf32, #tpu.memory_space<vmem>>, %arg6: memref<1x128x384xbf16, #tpu.memory_space<vmem>>, %arg7: memref<1x1x384xf32, #tpu.memory_space<vmem>>, %arg8: memref<1x128x128xbf16, #tpu.memory_space<vmem>>, %arg9: memref<1x6x128xf32, #tpu.memory_space<vmem>>, %arg10: memref<1x128x512xbf16, #tpu.memory_space<vmem>>, %arg11: memref<1x1x512xf32, #tpu.memory_space<vmem>>, %arg12: memref<1x512x128xbf16, #tpu.memory_space<vmem>>, %arg13: memref<128x128xbf16, #tpu.memory_space<vmem>>, %arg14: memref<128x128xbf16, #tpu.memory_space<vmem>>, %arg15: memref<4x128xf32, #tpu.memory_space<vmem>>, %arg16: memref<2x1x128xf32, #tpu.memory_space<vmem>>, %arg17: memref<2x8x128xf32, #tpu.memory_space<vmem>>) attributes {dimension_semantics = [#tpu.dimension_semantics<parallel>, #tpu.dimension_semantics<arbitrary>], iteration_bounds = array<i64: 2, 2>, scalar_prefetch = 0 : i64, scratch_operands = 1 : i64, tpu.core_type = #tpu.core_type<tc>, window_params = [{transform_indices = @transform_0, window_bounds = array<i64: 2, 8, 128>}, {pipeline_mode = #tpu.pipeline_mode<synchronous>, transform_indices = @transform_1, window_bounds = array<i64: 8, 128>}, {pipeline_mode = #tpu.pipeline_mode<synchronous>, transform_indices = @transform_2, window_bounds = array<i64: 2, 128>}, {transform_indices = @transform_3, window_bounds = array<i64: 2, 1, 8>}, {transform_indices = @transform_4, window_bounds = array<i64: 1, 128, 384>}, {transform_indices = @transform_5, window_bounds = array<i64: 1, 1, 384>}, {transform_indices = @transform_6, window_bounds = array<i64: 1, 128, 128>}, {transform_indices = @transform_7, window_bounds = array<i64: 1, 6, 128>}, {transform_indices = @transform_8, window_bounds = array<i64: 1, 128, 512>}, {transform_indices = @transform_9, window_bounds = array<i64: 1, 1, 512>}, {transform_indices = @transform_10, window_bounds = array<i64: 1, 512, 128>}, {pipeline_mode = #tpu.pipeline_mode<synchronous>, transform_indices = @transform_11, window_bounds = array<i64: 128, 128>}, {pipeline_mode = #tpu.pipeline_mode<synchronous>, transform_indices = @transform_12, window_bounds = array<i64: 128, 128>}, {pipeline_mode = #tpu.pipeline_mode<synchronous>, transform_indices = @transform_13, window_bounds = array<i64: 4, 128>}, {transform_indices = @transform_14, window_bounds = array<i64: 2, 1, 128>}]} {
    %c0_i32 = arith.constant 0 : i32
    %0 = arith.cmpi eq, %arg1, %c0_i32 : i32
    %1 = arith.extui %0 : i1 to i32
    %c0_i32_0 = arith.constant 0 : i32
    %2 = arith.cmpi ne, %1, %c0_i32_0 : i32
    scf.if %2 {
      %c0_74 = arith.constant 0 : index
      %c0_75 = arith.constant 0 : index
      %c0_76 = arith.constant 0 : index
      %218 = vector.load %arg2[%c0_74, %c0_75, %c0_76] : memref<2x8x128xf32, #tpu.memory_space<vmem>>, vector<2x8x128xf32>
      %c0_77 = arith.constant 0 : index
      %c0_78 = arith.constant 0 : index
      %219 = vector.load %arg3[%c0_77, %c0_78] : memref<8x128xf32, #tpu.memory_space<vmem>>, vector<8x128xf32>
      %220 = vector.shape_cast %219 : vector<8x128xf32> to vector<1x8x128xf32>
      %221 = vector.broadcast %220 : vector<1x8x128xf32> to vector<2x8x128xf32>
      %222 = arith.addf %218, %221 : vector<2x8x128xf32>
      %c0_79 = arith.constant 0 : index
      %c0_80 = arith.constant 0 : index
      %223 = vector.load %arg4[%c0_79, %c0_80] : memref<2x128xf32, #tpu.memory_space<vmem>>, vector<1x128xf32>
      %224 = vector.shape_cast %223 : vector<1x128xf32> to vector<128xf32>
      %c1 = arith.constant 1 : index
      %c0_81 = arith.constant 0 : index
      %225 = vector.load %arg4[%c1, %c0_81] : memref<2x128xf32, #tpu.memory_space<vmem>>, vector<1x128xf32>
      %226 = vector.shape_cast %225 : vector<1x128xf32> to vector<128xf32>
      %cst_82 = arith.constant dense<0.000000e+00> : vector<2x8xf32>
      %227 = vector.multi_reduction <add>, %222, %cst_82 [2] : vector<2x8x128xf32> to vector<2x8xf32>
      %228 = vector.shape_cast %227 : vector<2x8xf32> to vector<2x8x1xf32>
      %cst_83 = arith.constant 1.280000e+02 : f32
      %229 = vector.broadcast %cst_83 : f32 to vector<2x8x1xf32>
      %230 = arith.divf %228, %229 : vector<2x8x1xf32>
      %231 = vector.broadcast %230 : vector<2x8x1xf32> to vector<2x8x128xf32>
      %232 = arith.subf %222, %231 : vector<2x8x128xf32>
      %233 = arith.mulf %232, %232 : vector<2x8x128xf32>
      %cst_84 = arith.constant dense<0.000000e+00> : vector<2x8xf32>
      %234 = vector.multi_reduction <add>, %233, %cst_84 [2] : vector<2x8x128xf32> to vector<2x8xf32>
      %235 = vector.shape_cast %234 : vector<2x8xf32> to vector<2x8x1xf32>
      %cst_85 = arith.constant 1.280000e+02 : f32
      %236 = vector.broadcast %cst_85 : f32 to vector<2x8x1xf32>
      %237 = arith.divf %235, %236 : vector<2x8x1xf32>
      %cst_86 = arith.constant 9.99999996E-13 : f32
      %238 = vector.broadcast %cst_86 : f32 to vector<2x8x1xf32>
      %239 = arith.addf %237, %238 : vector<2x8x1xf32>
      %240 = math.rsqrt %239 : vector<2x8x1xf32>
      %241 = vector.broadcast %240 : vector<2x8x1xf32> to vector<2x8x128xf32>
      %242 = arith.mulf %232, %241 : vector<2x8x128xf32>
      %243 = vector.shape_cast %224 : vector<128xf32> to vector<1x1x128xf32>
      %244 = vector.broadcast %243 : vector<1x1x128xf32> to vector<2x8x128xf32>
      %245 = arith.mulf %242, %244 : vector<2x8x128xf32>
      %246 = vector.shape_cast %226 : vector<128xf32> to vector<1x1x128xf32>
      %247 = vector.broadcast %246 : vector<1x1x128xf32> to vector<2x8x128xf32>
      %248 = arith.addf %245, %247 : vector<2x8x128xf32>
      %c0_87 = arith.constant 0 : index
      %c0_88 = arith.constant 0 : index
      %c0_89 = arith.constant 0 : index
      %249 = vector.load %arg17[%c0_87, %c0_88, %c0_89] : memref<2x8x128xf32, #tpu.memory_space<vmem>>, vector<2x8x128xf32>
      tpu.vector_store %arg17[%c0_87, %c0_88, %c0_89], %248 {strides = array<i32>} : memref<2x8x128xf32, #tpu.memory_space<vmem>>, vector<2x8x128xf32>,
    } else {
    }
    %c0 = arith.constant 0 : index
    %c0_1 = arith.constant 0 : index
    %c0_2 = arith.constant 0 : index
    %3 = vector.load %arg17[%c0, %c0_1, %c0_2] : memref<2x8x128xf32, #tpu.memory_space<vmem>>, vector<2x8x128xf32>
    %4 = vector.shape_cast %3 : vector<2x8x128xf32> to vector<16x128xf32>
    %5 = arith.truncf %4 : vector<16x128xf32> to vector<16x128xbf16>
    %c0_3 = arith.constant 0 : index
    %c0_4 = arith.constant 0 : index
    %c0_5 = arith.constant 0 : index
    %6 = vector.load %arg6[%c0_3, %c0_4, %c0_5] : memref<1x128x384xbf16, #tpu.memory_space<vmem>>, vector<1x128x384xbf16>
    %7 = vector.shape_cast %6 : vector<1x128x384xbf16> to vector<128x384xbf16>
    %cst = arith.constant dense<0.000000e+00> : vector<16x384xf32>
    %8 = tpu.matmul %5, %7, %cst {dimension_numbers = #tpu.dot_dimension_numbers<[1], [0], [0], [1], [0, 0, 1, 1], [], []>} : vector<16x128xbf16>, vector<128x384xbf16>, vector<16x384xf32> -> vector<16x384xf32>
    %c0_6 = arith.constant 0 : index
    %c0_7 = arith.constant 0 : index
    %c0_8 = arith.constant 0 : index
    %9 = vector.load %arg7[%c0_6, %c0_7, %c0_8] : memref<1x1x384xf32, #tpu.memory_space<vmem>>, vector<1x1x384xf32>
    %10 = vector.shape_cast %9 : vector<1x1x384xf32> to vector<1x384xf32>
    %11 = vector.broadcast %10 : vector<1x384xf32> to vector<16x384xf32>
    %12 = arith.addf %8, %11 : vector<16x384xf32>
    %13 = vector.extract_strided_slice %12 {offsets = [0, 0], sizes = [16, 128], strides = [1, 1]} : vector<16x384xf32> to vector<16x128xf32>
    %14 = vector.shape_cast %13 : vector<16x128xf32> to vector<2x8x128xf32>
    %15 = arith.truncf %14 : vector<2x8x128xf32> to vector<2x8x128xbf16>
    %16 = vector.extract_strided_slice %12 {offsets = [0, 128], sizes = [16, 128], strides = [1, 1]} : vector<16x384xf32> to vector<16x128xf32>
    %17 = vector.shape_cast %16 : vector<16x128xf32> to vector<2x8x128xf32>
    %18 = arith.truncf %17 : vector<2x8x128xf32> to vector<2x8x128xbf16>
    %19 = vector.extract_strided_slice %12 {offsets = [0, 256], sizes = [16, 128], strides = [1, 1]} : vector<16x384xf32> to vector<16x128xf32>
    %20 = vector.shape_cast %19 : vector<16x128xf32> to vector<2x8x128xf32>
    %21 = arith.truncf %20 : vector<2x8x128xf32> to vector<2x8x128xbf16>
    %c0_9 = arith.constant 0 : index
    %c0_10 = arith.constant 0 : index
    %c0_11 = arith.constant 0 : index
    %22 = vector.load %arg5[%c0_9, %c0_10, %c0_11] : memref<2x1x8xf32, #tpu.memory_space<vmem>>, vector<2x1x8xf32>
    %c0_12 = arith.constant 0 : index
    %c0_13 = arith.constant 0 : index
    %c0_14 = arith.constant 0 : index
    %23 = vector.load %arg9[%c0_12, %c0_13, %c0_14] : memref<1x6x128xf32, #tpu.memory_space<vmem>>, vector<1x6x128xf32>
    %24 = vector.shape_cast %23 : vector<1x6x128xf32> to vector<6x128xf32>
    %cst_15 = arith.constant 0.000000e+00 : f32
    %25 = vector.broadcast %cst_15 : f32 to vector<16x128xf32>
    %26 = vector.extract_strided_slice %15 {offsets = [0, 0, 0], sizes = [2, 8, 32], strides = [1, 1, 1]} : vector<2x8x128xbf16> to vector<2x8x32xbf16>
    %27 = vector.extract_strided_slice %18 {offsets = [0, 0, 0], sizes = [2, 8, 32], strides = [1, 1, 1]} : vector<2x8x128xbf16> to vector<2x8x32xbf16>
    "tpu.trace_start"() <{level = 10 : i32, message = "bqd,bkd->bqk"}> : () -> ()
    %cst_16 = arith.constant dense<0.000000e+00> : vector<2x8x8xf32>
    %28 = tpu.matmul %26, %27, %cst_16 {dimension_numbers = #tpu.dot_dimension_numbers<[2], [2], [1], [1], [0, 0, 0, 1, 1, 1], [0], [0]>} : vector<2x8x32xbf16>, vector<2x8x32xbf16>, vector<2x8x8xf32> -> vector<2x8x8xf32>
    "tpu.trace_stop"() : () -> ()
    %29 = vector.broadcast %22 : vector<2x1x8xf32> to vector<2x8x8xf32>
    %30 = arith.addf %28, %29 : vector<2x8x8xf32>
    %cst_17 = arith.constant dense<0xFF800000> : vector<2x8xf32>
    %31 = vector.multi_reduction <maximumf>, %30, %cst_17 [2] : vector<2x8x8xf32> to vector<2x8xf32>
    %32 = vector.shape_cast %31 : vector<2x8xf32> to vector<2x8x1xf32>
    %33 = vector.broadcast %32 : vector<2x8x1xf32> to vector<2x8x8xf32>
    %34 = arith.subf %30, %33 : vector<2x8x8xf32>
    %35 = math.exp %34 : vector<2x8x8xf32>
    %cst_18 = arith.constant dense<0.000000e+00> : vector<2x8xf32>
    %36 = vector.multi_reduction <add>, %35, %cst_18 [2] : vector<2x8x8xf32> to vector<2x8xf32>
    %37 = vector.shape_cast %36 : vector<2x8xf32> to vector<2x8x1xf32>
    %38 = tpu.reciprocal %37 {approx = true} : vector<2x8x1xf32> -> vector<2x8x1xf32>
    %39 = vector.broadcast %38 : vector<2x8x1xf32> to vector<2x8x8xf32>
    %40 = arith.mulf %35, %39 : vector<2x8x8xf32>
    %41 = arith.truncf %40 : vector<2x8x8xf32> to vector<2x8x8xbf16>
    %42 = vector.extract_strided_slice %21 {offsets = [0, 0, 0], sizes = [2, 8, 32], strides = [1, 1, 1]} : vector<2x8x128xbf16> to vector<2x8x32xbf16>
    "tpu.trace_start"() <{level = 10 : i32, message = "bqk,bkd->bqd"}> : () -> ()
    %cst_19 = arith.constant dense<0.000000e+00> : vector<2x8x32xf32>
    %43 = tpu.matmul %41, %42, %cst_19 {dimension_numbers = #tpu.dot_dimension_numbers<[2], [1], [1], [2], [0, 0, 0, 1, 1, 2], [0], [0]>} : vector<2x8x8xbf16>, vector<2x8x32xbf16>, vector<2x8x32xf32> -> vector<2x8x32xf32>
    "tpu.trace_stop"() : () -> ()
    %44 = vector.shape_cast %43 : vector<2x8x32xf32> to vector<16x32xf32>
    %45 = arith.truncf %44 : vector<16x32xf32> to vector<16x32xbf16>
    %c0_20 = arith.constant 0 : index
    %c0_21 = arith.constant 0 : index
    %c0_22 = arith.constant 0 : index
    %46 = vector.load %arg8[%c0_20, %c0_21, %c0_22] : memref<1x128x128xbf16, #tpu.memory_space<vmem>>, vector<1x32x128xbf16>
    %47 = vector.shape_cast %46 : vector<1x32x128xbf16> to vector<32x128xbf16>
    %cst_23 = arith.constant dense<0.000000e+00> : vector<16x128xf32>
    %48 = tpu.matmul %45, %47, %cst_23 {dimension_numbers = #tpu.dot_dimension_numbers<[1], [0], [0], [1], [0, 0, 1, 1], [], []>} : vector<16x32xbf16>, vector<32x128xbf16>, vector<16x128xf32> -> vector<16x128xf32>
    %49 = arith.addf %25, %48 : vector<16x128xf32>
    %50 = vector.extract_strided_slice %15 {offsets = [0, 0, 32], sizes = [2, 8, 32], strides = [1, 1, 1]} : vector<2x8x128xbf16> to vector<2x8x32xbf16>
    %51 = vector.extract_strided_slice %18 {offsets = [0, 0, 32], sizes = [2, 8, 32], strides = [1, 1, 1]} : vector<2x8x128xbf16> to vector<2x8x32xbf16>
    "tpu.trace_start"() <{level = 10 : i32, message = "bqd,bkd->bqk"}> : () -> ()
    %cst_24 = arith.constant dense<0.000000e+00> : vector<2x8x8xf32>
    %52 = tpu.matmul %50, %51, %cst_24 {dimension_numbers = #tpu.dot_dimension_numbers<[2], [2], [1], [1], [0, 0, 0, 1, 1, 1], [0], [0]>} : vector<2x8x32xbf16>, vector<2x8x32xbf16>, vector<2x8x8xf32> -> vector<2x8x8xf32>
    "tpu.trace_stop"() : () -> ()
    %53 = vector.broadcast %22 : vector<2x1x8xf32> to vector<2x8x8xf32>
    %54 = arith.addf %52, %53 : vector<2x8x8xf32>
    %cst_25 = arith.constant dense<0xFF800000> : vector<2x8xf32>
    %55 = vector.multi_reduction <maximumf>, %54, %cst_25 [2] : vector<2x8x8xf32> to vector<2x8xf32>
    %56 = vector.shape_cast %55 : vector<2x8xf32> to vector<2x8x1xf32>
    %57 = vector.broadcast %56 : vector<2x8x1xf32> to vector<2x8x8xf32>
    %58 = arith.subf %54, %57 : vector<2x8x8xf32>
    %59 = math.exp %58 : vector<2x8x8xf32>
    %cst_26 = arith.constant dense<0.000000e+00> : vector<2x8xf32>
    %60 = vector.multi_reduction <add>, %59, %cst_26 [2] : vector<2x8x8xf32> to vector<2x8xf32>
    %61 = vector.shape_cast %60 : vector<2x8xf32> to vector<2x8x1xf32>
    %62 = tpu.reciprocal %61 {approx = true} : vector<2x8x1xf32> -> vector<2x8x1xf32>
    %63 = vector.broadcast %62 : vector<2x8x1xf32> to vector<2x8x8xf32>
    %64 = arith.mulf %59, %63 : vector<2x8x8xf32>
    %65 = arith.truncf %64 : vector<2x8x8xf32> to vector<2x8x8xbf16>
    %66 = vector.extract_strided_slice %21 {offsets = [0, 0, 32], sizes = [2, 8, 32], strides = [1, 1, 1]} : vector<2x8x128xbf16> to vector<2x8x32xbf16>
    "tpu.trace_start"() <{level = 10 : i32, message = "bqk,bkd->bqd"}> : () -> ()
    %cst_27 = arith.constant dense<0.000000e+00> : vector<2x8x32xf32>
    %67 = tpu.matmul %65, %66, %cst_27 {dimension_numbers = #tpu.dot_dimension_numbers<[2], [1], [1], [2], [0, 0, 0, 1, 1, 2], [0], [0]>} : vector<2x8x8xbf16>, vector<2x8x32xbf16>, vector<2x8x32xf32> -> vector<2x8x32xf32>
    "tpu.trace_stop"() : () -> ()
    %68 = vector.shape_cast %67 : vector<2x8x32xf32> to vector<16x32xf32>
    %69 = arith.truncf %68 : vector<16x32xf32> to vector<16x32xbf16>
    %c0_28 = arith.constant 0 : index
    %c32 = arith.constant 32 : index
    %c0_29 = arith.constant 0 : index
    %70 = vector.load %arg8[%c0_28, %c32, %c0_29] : memref<1x128x128xbf16, #tpu.memory_space<vmem>>, vector<1x32x128xbf16>
    %71 = vector.shape_cast %70 : vector<1x32x128xbf16> to vector<32x128xbf16>
    %cst_30 = arith.constant dense<0.000000e+00> : vector<16x128xf32>
    %72 = tpu.matmul %69, %71, %cst_30 {dimension_numbers = #tpu.dot_dimension_numbers<[1], [0], [0], [1], [0, 0, 1, 1], [], []>} : vector<16x32xbf16>, vector<32x128xbf16>, vector<16x128xf32> -> vector<16x128xf32>
    %73 = arith.addf %49, %72 : vector<16x128xf32>
    %74 = vector.extract_strided_slice %15 {offsets = [0, 0, 64], sizes = [2, 8, 32], strides = [1, 1, 1]} : vector<2x8x128xbf16> to vector<2x8x32xbf16>
    %75 = vector.extract_strided_slice %18 {offsets = [0, 0, 64], sizes = [2, 8, 32], strides = [1, 1, 1]} : vector<2x8x128xbf16> to vector<2x8x32xbf16>
    "tpu.trace_start"() <{level = 10 : i32, message = "bqd,bkd->bqk"}> : () -> ()
    %cst_31 = arith.constant dense<0.000000e+00> : vector<2x8x8xf32>
    %76 = tpu.matmul %74, %75, %cst_31 {dimension_numbers = #tpu.dot_dimension_numbers<[2], [2], [1], [1], [0, 0, 0, 1, 1, 1], [0], [0]>} : vector<2x8x32xbf16>, vector<2x8x32xbf16>, vector<2x8x8xf32> -> vector<2x8x8xf32>
    "tpu.trace_stop"() : () -> ()
    %77 = vector.broadcast %22 : vector<2x1x8xf32> to vector<2x8x8xf32>
    %78 = arith.addf %76, %77 : vector<2x8x8xf32>
    %cst_32 = arith.constant dense<0xFF800000> : vector<2x8xf32>
    %79 = vector.multi_reduction <maximumf>, %78, %cst_32 [2] : vector<2x8x8xf32> to vector<2x8xf32>
    %80 = vector.shape_cast %79 : vector<2x8xf32> to vector<2x8x1xf32>
    %81 = vector.broadcast %80 : vector<2x8x1xf32> to vector<2x8x8xf32>
    %82 = arith.subf %78, %81 : vector<2x8x8xf32>
    %83 = math.exp %82 : vector<2x8x8xf32>
    %cst_33 = arith.constant dense<0.000000e+00> : vector<2x8xf32>
    %84 = vector.multi_reduction <add>, %83, %cst_33 [2] : vector<2x8x8xf32> to vector<2x8xf32>
    %85 = vector.shape_cast %84 : vector<2x8xf32> to vector<2x8x1xf32>
    %86 = tpu.reciprocal %85 {approx = true} : vector<2x8x1xf32> -> vector<2x8x1xf32>
    %87 = vector.broadcast %86 : vector<2x8x1xf32> to vector<2x8x8xf32>
    %88 = arith.mulf %83, %87 : vector<2x8x8xf32>
    %89 = arith.truncf %88 : vector<2x8x8xf32> to vector<2x8x8xbf16>
    %90 = vector.extract_strided_slice %21 {offsets = [0, 0, 64], sizes = [2, 8, 32], strides = [1, 1, 1]} : vector<2x8x128xbf16> to vector<2x8x32xbf16>
    "tpu.trace_start"() <{level = 10 : i32, message = "bqk,bkd->bqd"}> : () -> ()
    %cst_34 = arith.constant dense<0.000000e+00> : vector<2x8x32xf32>
    %91 = tpu.matmul %89, %90, %cst_34 {dimension_numbers = #tpu.dot_dimension_numbers<[2], [1], [1], [2], [0, 0, 0, 1, 1, 2], [0], [0]>} : vector<2x8x8xbf16>, vector<2x8x32xbf16>, vector<2x8x32xf32> -> vector<2x8x32xf32>
    "tpu.trace_stop"() : () -> ()
    %92 = vector.shape_cast %91 : vector<2x8x32xf32> to vector<16x32xf32>
    %93 = arith.truncf %92 : vector<16x32xf32> to vector<16x32xbf16>
    %c0_35 = arith.constant 0 : index
    %c64 = arith.constant 64 : index
    %c0_36 = arith.constant 0 : index
    %94 = vector.load %arg8[%c0_35, %c64, %c0_36] : memref<1x128x128xbf16, #tpu.memory_space<vmem>>, vector<1x32x128xbf16>
    %95 = vector.shape_cast %94 : vector<1x32x128xbf16> to vector<32x128xbf16>
    %cst_37 = arith.constant dense<0.000000e+00> : vector<16x128xf32>
    %96 = tpu.matmul %93, %95, %cst_37 {dimension_numbers = #tpu.dot_dimension_numbers<[1], [0], [0], [1], [0, 0, 1, 1], [], []>} : vector<16x32xbf16>, vector<32x128xbf16>, vector<16x128xf32> -> vector<16x128xf32>
    %97 = arith.addf %73, %96 : vector<16x128xf32>
    %98 = vector.extract_strided_slice %15 {offsets = [0, 0, 96], sizes = [2, 8, 32], strides = [1, 1, 1]} : vector<2x8x128xbf16> to vector<2x8x32xbf16>
    %99 = vector.extract_strided_slice %18 {offsets = [0, 0, 96], sizes = [2, 8, 32], strides = [1, 1, 1]} : vector<2x8x128xbf16> to vector<2x8x32xbf16>
    "tpu.trace_start"() <{level = 10 : i32, message = "bqd,bkd->bqk"}> : () -> ()
    %cst_38 = arith.constant dense<0.000000e+00> : vector<2x8x8xf32>
    %100 = tpu.matmul %98, %99, %cst_38 {dimension_numbers = #tpu.dot_dimension_numbers<[2], [2], [1], [1], [0, 0, 0, 1, 1, 1], [0], [0]>} : vector<2x8x32xbf16>, vector<2x8x32xbf16>, vector<2x8x8xf32> -> vector<2x8x8xf32>
    "tpu.trace_stop"() : () -> ()
    %101 = vector.broadcast %22 : vector<2x1x8xf32> to vector<2x8x8xf32>
    %102 = arith.addf %100, %101 : vector<2x8x8xf32>
    %cst_39 = arith.constant dense<0xFF800000> : vector<2x8xf32>
    %103 = vector.multi_reduction <maximumf>, %102, %cst_39 [2] : vector<2x8x8xf32> to vector<2x8xf32>
    %104 = vector.shape_cast %103 : vector<2x8xf32> to vector<2x8x1xf32>
    %105 = vector.broadcast %104 : vector<2x8x1xf32> to vector<2x8x8xf32>
    %106 = arith.subf %102, %105 : vector<2x8x8xf32>
    %107 = math.exp %106 : vector<2x8x8xf32>
    %cst_40 = arith.constant dense<0.000000e+00> : vector<2x8xf32>
    %108 = vector.multi_reduction <add>, %107, %cst_40 [2] : vector<2x8x8xf32> to vector<2x8xf32>
    %109 = vector.shape_cast %108 : vector<2x8xf32> to vector<2x8x1xf32>
    %110 = tpu.reciprocal %109 {approx = true} : vector<2x8x1xf32> -> vector<2x8x1xf32>
    %111 = vector.broadcast %110 : vector<2x8x1xf32> to vector<2x8x8xf32>
    %112 = arith.mulf %107, %111 : vector<2x8x8xf32>
    %113 = arith.truncf %112 : vector<2x8x8xf32> to vector<2x8x8xbf16>
    %114 = vector.extract_strided_slice %21 {offsets = [0, 0, 96], sizes = [2, 8, 32], strides = [1, 1, 1]} : vector<2x8x128xbf16> to vector<2x8x32xbf16>
    "tpu.trace_start"() <{level = 10 : i32, message = "bqk,bkd->bqd"}> : () -> ()
    %cst_41 = arith.constant dense<0.000000e+00> : vector<2x8x32xf32>
    %115 = tpu.matmul %113, %114, %cst_41 {dimension_numbers = #tpu.dot_dimension_numbers<[2], [1], [1], [2], [0, 0, 0, 1, 1, 2], [0], [0]>} : vector<2x8x8xbf16>, vector<2x8x32xbf16>, vector<2x8x32xf32> -> vector<2x8x32xf32>
    "tpu.trace_stop"() : () -> ()
    %116 = vector.shape_cast %115 : vector<2x8x32xf32> to vector<16x32xf32>
    %117 = arith.truncf %116 : vector<16x32xf32> to vector<16x32xbf16>
    %c0_42 = arith.constant 0 : index
    %c96 = arith.constant 96 : index
    %c0_43 = arith.constant 0 : index
    %118 = vector.load %arg8[%c0_42, %c96, %c0_43] : memref<1x128x128xbf16, #tpu.memory_space<vmem>>, vector<1x32x128xbf16>
    %119 = vector.shape_cast %118 : vector<1x32x128xbf16> to vector<32x128xbf16>
    %cst_44 = arith.constant dense<0.000000e+00> : vector<16x128xf32>
    %120 = tpu.matmul %117, %119, %cst_44 {dimension_numbers = #tpu.dot_dimension_numbers<[1], [0], [0], [1], [0, 0, 1, 1], [], []>} : vector<16x32xbf16>, vector<32x128xbf16>, vector<16x128xf32> -> vector<16x128xf32>
    %121 = arith.addf %97, %120 : vector<16x128xf32>
    %122 = vector.extract_strided_slice %24 {offsets = [0, 0], sizes = [1, 128], strides = [1, 1]} : vector<6x128xf32> to vector<1x128xf32>
    %123 = vector.shape_cast %122 : vector<1x128xf32> to vector<128xf32>
    %124 = vector.shape_cast %123 : vector<128xf32> to vector<1x128xf32>
    %125 = vector.broadcast %124 : vector<1x128xf32> to vector<16x128xf32>
    %126 = arith.addf %121, %125 : vector<16x128xf32>
    %127 = vector.shape_cast %126 : vector<16x128xf32> to vector<2x8x128xf32>
    %128 = arith.addf %3, %127 : vector<2x8x128xf32>
    %129 = vector.extract_strided_slice %24 {offsets = [1, 0], sizes = [1, 128], strides = [1, 1]} : vector<6x128xf32> to vector<1x128xf32>
    %130 = vector.shape_cast %129 : vector<1x128xf32> to vector<128xf32>
    %131 = vector.extract_strided_slice %24 {offsets = [2, 0], sizes = [1, 128], strides = [1, 1]} : vector<6x128xf32> to vector<1x128xf32>
    %132 = vector.shape_cast %131 : vector<1x128xf32> to vector<128xf32>
    %cst_45 = arith.constant dense<0.000000e+00> : vector<2x8xf32>
    %133 = vector.multi_reduction <add>, %128, %cst_45 [2] : vector<2x8x128xf32> to vector<2x8xf32>
    %134 = vector.shape_cast %133 : vector<2x8xf32> to vector<2x8x1xf32>
    %cst_46 = arith.constant 1.280000e+02 : f32
    %135 = vector.broadcast %cst_46 : f32 to vector<2x8x1xf32>
    %136 = arith.divf %134, %135 : vector<2x8x1xf32>
    %137 = vector.broadcast %136 : vector<2x8x1xf32> to vector<2x8x128xf32>
    %138 = arith.subf %128, %137 : vector<2x8x128xf32>
    %139 = arith.mulf %138, %138 : vector<2x8x128xf32>
    %cst_47 = arith.constant dense<0.000000e+00> : vector<2x8xf32>
    %140 = vector.multi_reduction <add>, %139, %cst_47 [2] : vector<2x8x128xf32> to vector<2x8xf32>
    %141 = vector.shape_cast %140 : vector<2x8xf32> to vector<2x8x1xf32>
    %cst_48 = arith.constant 1.280000e+02 : f32
    %142 = vector.broadcast %cst_48 : f32 to vector<2x8x1xf32>
    %143 = arith.divf %141, %142 : vector<2x8x1xf32>
    %cst_49 = arith.constant 9.99999996E-13 : f32
    %144 = vector.broadcast %cst_49 : f32 to vector<2x8x1xf32>
    %145 = arith.addf %143, %144 : vector<2x8x1xf32>
    %146 = math.rsqrt %145 : vector<2x8x1xf32>
    %147 = vector.broadcast %146 : vector<2x8x1xf32> to vector<2x8x128xf32>
    %148 = arith.mulf %138, %147 : vector<2x8x128xf32>
    %149 = vector.shape_cast %130 : vector<128xf32> to vector<1x1x128xf32>
    %150 = vector.broadcast %149 : vector<1x1x128xf32> to vector<2x8x128xf32>
    %151 = arith.mulf %148, %150 : vector<2x8x128xf32>
    %152 = vector.shape_cast %132 : vector<128xf32> to vector<1x1x128xf32>
    %153 = vector.broadcast %152 : vector<1x1x128xf32> to vector<2x8x128xf32>
    %154 = arith.addf %151, %153 : vector<2x8x128xf32>
    %155 = vector.shape_cast %154 : vector<2x8x128xf32> to vector<16x128xf32>
    %156 = arith.truncf %155 : vector<16x128xf32> to vector<16x128xbf16>
    %c0_50 = arith.constant 0 : index
    %c0_51 = arith.constant 0 : index
    %c0_52 = arith.constant 0 : index
    %157 = vector.load %arg10[%c0_50, %c0_51, %c0_52] : memref<1x128x512xbf16, #tpu.memory_space<vmem>>, vector<1x128x512xbf16>
    %158 = vector.shape_cast %157 : vector<1x128x512xbf16> to vector<128x512xbf16>
    %cst_53 = arith.constant dense<0.000000e+00> : vector<16x512xf32>
    %159 = tpu.matmul %156, %158, %cst_53 {dimension_numbers = #tpu.dot_dimension_numbers<[1], [0], [0], [1], [0, 0, 1, 1], [], []>} : vector<16x128xbf16>, vector<128x512xbf16>, vector<16x512xf32> -> vector<16x512xf32>
    %c0_54 = arith.constant 0 : index
    %c0_55 = arith.constant 0 : index
    %c0_56 = arith.constant 0 : index
    %160 = vector.load %arg11[%c0_54, %c0_55, %c0_56] : memref<1x1x512xf32, #tpu.memory_space<vmem>>, vector<1x1x512xf32>
    %161 = vector.shape_cast %160 : vector<1x1x512xf32> to vector<1x512xf32>
    %162 = vector.broadcast %161 : vector<1x512xf32> to vector<16x512xf32>
    %163 = arith.addf %159, %162 : vector<16x512xf32>
    %cst_57 = arith.constant 5.000000e-01 : f32
    %164 = vector.broadcast %cst_57 : f32 to vector<16x512xf32>
    %165 = arith.mulf %164, %163 : vector<16x512xf32>
    %cst_58 = arith.constant 4.471500e-02 : f32
    %166 = vector.broadcast %cst_58 : f32 to vector<16x512xf32>
    %167 = arith.mulf %166, %163 : vector<16x512xf32>
    %168 = arith.mulf %167, %163 : vector<16x512xf32>
    %169 = arith.mulf %168, %163 : vector<16x512xf32>
    %170 = arith.addf %163, %169 : vector<16x512xf32>
    %cst_59 = arith.constant 0.797884583 : f32
    %171 = vector.broadcast %cst_59 : f32 to vector<16x512xf32>
    %172 = arith.mulf %171, %170 : vector<16x512xf32>
    %173 = math.tanh %172 : vector<16x512xf32>
    %cst_60 = arith.constant 1.000000e+00 : f32
    %174 = vector.broadcast %cst_60 : f32 to vector<16x512xf32>
    %175 = arith.addf %174, %173 : vector<16x512xf32>
    %176 = arith.mulf %165, %175 : vector<16x512xf32>
    %177 = arith.truncf %176 : vector<16x512xf32> to vector<16x512xbf16>
    %c0_61 = arith.constant 0 : index
    %c0_62 = arith.constant 0 : index
    %c0_63 = arith.constant 0 : index
    %178 = vector.load %arg12[%c0_61, %c0_62, %c0_63] : memref<1x512x128xbf16, #tpu.memory_space<vmem>>, vector<1x512x128xbf16>
    %179 = vector.shape_cast %178 : vector<1x512x128xbf16> to vector<512x128xbf16>
    %cst_64 = arith.constant dense<0.000000e+00> : vector<16x128xf32>
    %180 = tpu.matmul %177, %179, %cst_64 {dimension_numbers = #tpu.dot_dimension_numbers<[1], [0], [0], [1], [0, 0, 1, 1], [], []>} : vector<16x512xbf16>, vector<512x128xbf16>, vector<16x128xf32> -> vector<16x128xf32>
    %181 = vector.extract_strided_slice %24 {offsets = [3, 0], sizes = [1, 128], strides = [1, 1]} : vector<6x128xf32> to vector<1x128xf32>
    %182 = vector.shape_cast %181 : vector<1x128xf32> to vector<128xf32>
    %183 = vector.shape_cast %182 : vector<128xf32> to vector<1x128xf32>
    %184 = vector.broadcast %183 : vector<1x128xf32> to vector<16x128xf32>
    %185 = arith.addf %180, %184 : vector<16x128xf32>
    %186 = vector.shape_cast %185 : vector<16x128xf32> to vector<2x8x128xf32>
    %187 = arith.addf %154, %186 : vector<2x8x128xf32>
    %188 = vector.extract_strided_slice %24 {offsets = [4, 0], sizes = [1, 128], strides = [1, 1]} : vector<6x128xf32> to vector<1x128xf32>
    %189 = vector.shape_cast %188 : vector<1x128xf32> to vector<128xf32>
    %190 = vector.extract_strided_slice %24 {offsets = [5, 0], sizes = [1, 128], strides = [1, 1]} : vector<6x128xf32> to vector<1x128xf32>
    %191 = vector.shape_cast %190 : vector<1x128xf32> to vector<128xf32>
    %cst_65 = arith.constant dense<0.000000e+00> : vector<2x8xf32>
    %192 = vector.multi_reduction <add>, %187, %cst_65 [2] : vector<2x8x128xf32> to vector<2x8xf32>
    %193 = vector.shape_cast %192 : vector<2x8xf32> to vector<2x8x1xf32>
    %cst_66 = arith.constant 1.280000e+02 : f32
    %194 = vector.broadcast %cst_66 : f32 to vector<2x8x1xf32>
    %195 = arith.divf %193, %194 : vector<2x8x1xf32>
    %196 = vector.broadcast %195 : vector<2x8x1xf32> to vector<2x8x128xf32>
    %197 = arith.subf %187, %196 : vector<2x8x128xf32>
    %198 = arith.mulf %197, %197 : vector<2x8x128xf32>
    %cst_67 = arith.constant dense<0.000000e+00> : vector<2x8xf32>
    %199 = vector.multi_reduction <add>, %198, %cst_67 [2] : vector<2x8x128xf32> to vector<2x8xf32>
    %200 = vector.shape_cast %199 : vector<2x8xf32> to vector<2x8x1xf32>
    %cst_68 = arith.constant 1.280000e+02 : f32
    %201 = vector.broadcast %cst_68 : f32 to vector<2x8x1xf32>
    %202 = arith.divf %200, %201 : vector<2x8x1xf32>
    %cst_69 = arith.constant 9.99999996E-13 : f32
    %203 = vector.broadcast %cst_69 : f32 to vector<2x8x1xf32>
    %204 = arith.addf %202, %203 : vector<2x8x1xf32>
    %205 = math.rsqrt %204 : vector<2x8x1xf32>
    %206 = vector.broadcast %205 : vector<2x8x1xf32> to vector<2x8x128xf32>
    %207 = arith.mulf %197, %206 : vector<2x8x128xf32>
    %208 = vector.shape_cast %189 : vector<128xf32> to vector<1x1x128xf32>
    %209 = vector.broadcast %208 : vector<1x1x128xf32> to vector<2x8x128xf32>
    %210 = arith.mulf %207, %209 : vector<2x8x128xf32>
    %211 = vector.shape_cast %191 : vector<128xf32> to vector<1x1x128xf32>
    %212 = vector.broadcast %211 : vector<1x1x128xf32> to vector<2x8x128xf32>
    %213 = arith.addf %210, %212 : vector<2x8x128xf32>
    %c0_70 = arith.constant 0 : index
    %c0_71 = arith.constant 0 : index
    %c0_72 = arith.constant 0 : index
    %214 = vector.load %arg17[%c0_70, %c0_71, %c0_72] : memref<2x8x128xf32, #tpu.memory_space<vmem>>, vector<2x8x128xf32>
    tpu.vector_store %arg17[%c0_70, %c0_71, %c0_72], %213 {strides = array<i32>} : memref<2x8x128xf32, #tpu.memory_space<vmem>>, vector<2x8x128xf32>,
    %c1_i32 = arith.constant 1 : i32
    %215 = arith.cmpi eq, %arg1, %c1_i32 : i32
    %216 = arith.extui %215 : i1 to i32
    %c0_i32_73 = arith.constant 0 : i32
    %217 = arith.cmpi ne, %216, %c0_i32_73 : i32
    scf.if %217 {
      %218 = vector.extract_strided_slice %213 {offsets = [0, 0, 0], sizes = [2, 1, 128], strides = [1, 1, 1]} : vector<2x8x128xf32> to vector<2x1x128xf32>
      %219 = vector.shape_cast %218 : vector<2x1x128xf32> to vector<2x128xf32>
      %c0_74 = arith.constant 0 : index
      %c0_75 = arith.constant 0 : index
      %220 = vector.load %arg15[%c0_74, %c0_75] : memref<4x128xf32, #tpu.memory_space<vmem>>, vector<4x128xf32>
      %221 = arith.truncf %219 : vector<2x128xf32> to vector<2x128xbf16>
      %c0_76 = arith.constant 0 : index
      %c0_77 = arith.constant 0 : index
      %222 = vector.load %arg13[%c0_76, %c0_77] : memref<128x128xbf16, #tpu.memory_space<vmem>>, vector<128x128xbf16>
      %cst_78 = arith.constant dense<0.000000e+00> : vector<2x128xf32>
      %223 = tpu.matmul %221, %222, %cst_78 {dimension_numbers = #tpu.dot_dimension_numbers<[1], [0], [0], [1], [0, 0, 1, 1], [], []>} : vector<2x128xbf16>, vector<128x128xbf16>, vector<2x128xf32> -> vector<2x128xf32>
      %224 = vector.extract_strided_slice %220 {offsets = [0, 0], sizes = [1, 128], strides = [1, 1]} : vector<4x128xf32> to vector<1x128xf32>
      %225 = vector.shape_cast %224 : vector<1x128xf32> to vector<128xf32>
      %226 = vector.shape_cast %225 : vector<128xf32> to vector<1x128xf32>
      %227 = vector.broadcast %226 : vector<1x128xf32> to vector<2x128xf32>
      %228 = arith.addf %223, %227 : vector<2x128xf32>
      %cst_79 = arith.constant 5.000000e-01 : f32
      %229 = vector.broadcast %cst_79 : f32 to vector<2x128xf32>
      %230 = arith.mulf %229, %228 : vector<2x128xf32>
      %cst_80 = arith.constant 4.471500e-02 : f32
      %231 = vector.broadcast %cst_80 : f32 to vector<2x128xf32>
      %232 = arith.mulf %231, %228 : vector<2x128xf32>
      %233 = arith.mulf %232, %228 : vector<2x128xf32>
      %234 = arith.mulf %233, %228 : vector<2x128xf32>
      %235 = arith.addf %228, %234 : vector<2x128xf32>
      %cst_81 = arith.constant 0.797884583 : f32
      %236 = vector.broadcast %cst_81 : f32 to vector<2x128xf32>
      %237 = arith.mulf %236, %235 : vector<2x128xf32>
      %238 = math.tanh %237 : vector<2x128xf32>
      %cst_82 = arith.constant 1.000000e+00 : f32
      %239 = vector.broadcast %cst_82 : f32 to vector<2x128xf32>
      %240 = arith.addf %239, %238 : vector<2x128xf32>
      %241 = arith.mulf %230, %240 : vector<2x128xf32>
      %242 = arith.truncf %241 : vector<2x128xf32> to vector<2x128xbf16>
      %c0_83 = arith.constant 0 : index
      %c0_84 = arith.constant 0 : index
      %243 = vector.load %arg14[%c0_83, %c0_84] : memref<128x128xbf16, #tpu.memory_space<vmem>>, vector<128x128xbf16>
      %cst_85 = arith.constant dense<0.000000e+00> : vector<2x128xf32>
      %244 = tpu.matmul %242, %243, %cst_85 {dimension_numbers = #tpu.dot_dimension_numbers<[1], [0], [0], [1], [0, 0, 1, 1], [], []>} : vector<2x128xbf16>, vector<128x128xbf16>, vector<2x128xf32> -> vector<2x128xf32>
      %245 = vector.extract_strided_slice %220 {offsets = [1, 0], sizes = [1, 128], strides = [1, 1]} : vector<4x128xf32> to vector<1x128xf32>
      %246 = vector.shape_cast %245 : vector<1x128xf32> to vector<128xf32>
      %247 = vector.shape_cast %246 : vector<128xf32> to vector<1x128xf32>
      %248 = vector.broadcast %247 : vector<1x128xf32> to vector<2x128xf32>
      %249 = arith.addf %244, %248 : vector<2x128xf32>
      %250 = arith.addf %249, %228 : vector<2x128xf32>
      %251 = vector.extract_strided_slice %220 {offsets = [2, 0], sizes = [1, 128], strides = [1, 1]} : vector<4x128xf32> to vector<1x128xf32>
      %252 = vector.shape_cast %251 : vector<1x128xf32> to vector<128xf32>
      %253 = vector.extract_strided_slice %220 {offsets = [3, 0], sizes = [1, 128], strides = [1, 1]} : vector<4x128xf32> to vector<1x128xf32>
      %254 = vector.shape_cast %253 : vector<1x128xf32> to vector<128xf32>
      %cst_86 = arith.constant dense<0.000000e+00> : vector<2xf32>
      %255 = vector.multi_reduction <add>, %250, %cst_86 [1] : vector<2x128xf32> to vector<2xf32>
      %256 = vector.shape_cast %255 : vector<2xf32> to vector<2x1xf32>
      %cst_87 = arith.constant 1.280000e+02 : f32
      %257 = vector.broadcast %cst_87 : f32 to vector<2x1xf32>
      %258 = arith.divf %256, %257 : vector<2x1xf32>
      %259 = vector.broadcast %258 : vector<2x1xf32> to vector<2x128xf32>
      %260 = arith.subf %250, %259 : vector<2x128xf32>
      %261 = arith.mulf %260, %260 : vector<2x128xf32>
      %cst_88 = arith.constant dense<0.000000e+00> : vector<2xf32>
      %262 = vector.multi_reduction <add>, %261, %cst_88 [1] : vector<2x128xf32> to vector<2xf32>
      %263 = vector.shape_cast %262 : vector<2xf32> to vector<2x1xf32>
      %cst_89 = arith.constant 1.280000e+02 : f32
      %264 = vector.broadcast %cst_89 : f32 to vector<2x1xf32>
      %265 = arith.divf %263, %264 : vector<2x1xf32>
      %cst_90 = arith.constant 9.99999974E-6 : f32
      %266 = vector.broadcast %cst_90 : f32 to vector<2x1xf32>
      %267 = arith.addf %265, %266 : vector<2x1xf32>
      %268 = math.rsqrt %267 : vector<2x1xf32>
      %269 = vector.broadcast %268 : vector<2x1xf32> to vector<2x128xf32>
      %270 = arith.mulf %260, %269 : vector<2x128xf32>
      %271 = vector.shape_cast %252 : vector<128xf32> to vector<1x128xf32>
      %272 = vector.broadcast %271 : vector<1x128xf32> to vector<2x128xf32>
      %273 = arith.mulf %270, %272 : vector<2x128xf32>
      %274 = vector.shape_cast %254 : vector<128xf32> to vector<1x128xf32>
      %275 = vector.broadcast %274 : vector<1x128xf32> to vector<2x128xf32>
      %276 = arith.addf %273, %275 : vector<2x128xf32>
      %277 = arith.mulf %276, %276 : vector<2x128xf32>
      %cst_91 = arith.constant dense<0.000000e+00> : vector<2xf32>
      %278 = vector.multi_reduction <add>, %277, %cst_91 [1] : vector<2x128xf32> to vector<2xf32>
      %279 = vector.shape_cast %278 : vector<2xf32> to vector<2x1xf32>
      %280 = math.sqrt %279 : vector<2x1xf32>
      %cst_92 = arith.constant 9.99999996E-13 : f32
      %281 = vector.broadcast %cst_92 : f32 to vector<2x1xf32>
      %282 = arith.maximumf %280, %281 : vector<2x1xf32>
      %283 = vector.broadcast %282 : vector<2x1xf32> to vector<2x128xf32>
      %284 = arith.divf %276, %283 : vector<2x128xf32>
      %c0_93 = arith.constant 0 : index
      %c0_94 = arith.constant 0 : index
      %c0_95 = arith.constant 0 : index
      %285 = vector.load %arg16[%c0_93, %c0_94, %c0_95] : memref<2x1x128xf32, #tpu.memory_space<vmem>>, vector<2x1x128xf32>
      %286 = vector.shape_cast %285 : vector<2x1x128xf32> to vector<2x128xf32>
      %287 = vector.shape_cast %284 : vector<2x128xf32> to vector<2x1x128xf32>
      tpu.vector_store %arg16[%c0_93, %c0_94, %c0_95], %287 {strides = array<i32>} : memref<2x1x128xf32, #tpu.memory_space<vmem>>, vector<2x1x128xf32>,
    } else {
    }
    return
  }
  func.func @transform_0(%arg0: i32, %arg1: i32) -> (i32, i32, i32) {
    %c0_i32 = arith.constant 0 : i32
    %c0_i32_0 = arith.constant 0 : i32
    %c0_i32_1 = arith.constant 0 : i32
    return %arg0, %c0_i32, %c0_i32_0 : i32, i32, i32
  }
  func.func @transform_1(%arg0: i32, %arg1: i32) -> (i32, i32) {
    %c0_i32 = arith.constant 0 : i32
    %c0_i32_0 = arith.constant 0 : i32
    %c0_i32_1 = arith.constant 0 : i32
    return %c0_i32, %c0_i32_0 : i32, i32
  }
  func.func @transform_2(%arg0: i32, %arg1: i32) -> (i32, i32) {
    %c0_i32 = arith.constant 0 : i32
    %c0_i32_0 = arith.constant 0 : i32
    %c0_i32_1 = arith.constant 0 : i32
    return %c0_i32, %c0_i32_0 : i32, i32
  }
  func.func @transform_3(%arg0: i32, %arg1: i32) -> (i32, i32, i32) {
    %c0_i32 = arith.constant 0 : i32
    %c0_i32_0 = arith.constant 0 : i32
    %c0_i32_1 = arith.constant 0 : i32
    return %arg0, %c0_i32, %c0_i32_0 : i32, i32, i32
  }
  func.func @transform_4(%arg0: i32, %arg1: i32) -> (i32, i32, i32) {
    %c0_i32 = arith.constant 0 : i32
    %c0_i32_0 = arith.constant 0 : i32
    %c0_i32_1 = arith.constant 0 : i32
    return %arg1, %c0_i32, %c0_i32_0 : i32, i32, i32
  }
  func.func @transform_5(%arg0: i32, %arg1: i32) -> (i32, i32, i32) {
    %c0_i32 = arith.constant 0 : i32
    %c0_i32_0 = arith.constant 0 : i32
    %c0_i32_1 = arith.constant 0 : i32
    return %arg1, %c0_i32, %c0_i32_0 : i32, i32, i32
  }
  func.func @transform_6(%arg0: i32, %arg1: i32) -> (i32, i32, i32) {
    %c0_i32 = arith.constant 0 : i32
    %c0_i32_0 = arith.constant 0 : i32
    %c0_i32_1 = arith.constant 0 : i32
    return %arg1, %c0_i32, %c0_i32_0 : i32, i32, i32
  }
  func.func @transform_7(%arg0: i32, %arg1: i32) -> (i32, i32, i32) {
    %c0_i32 = arith.constant 0 : i32
    %c0_i32_0 = arith.constant 0 : i32
    %c0_i32_1 = arith.constant 0 : i32
    return %arg1, %c0_i32, %c0_i32_0 : i32, i32, i32
  }
  func.func @transform_8(%arg0: i32, %arg1: i32) -> (i32, i32, i32) {
    %c0_i32 = arith.constant 0 : i32
    %c0_i32_0 = arith.constant 0 : i32
    %c0_i32_1 = arith.constant 0 : i32
    return %arg1, %c0_i32, %c0_i32_0 : i32, i32, i32
  }
  func.func @transform_9(%arg0: i32, %arg1: i32) -> (i32, i32, i32) {
    %c0_i32 = arith.constant 0 : i32
    %c0_i32_0 = arith.constant 0 : i32
    %c0_i32_1 = arith.constant 0 : i32
    return %arg1, %c0_i32, %c0_i32_0 : i32, i32, i32
  }
  func.func @transform_10(%arg0: i32, %arg1: i32) -> (i32, i32, i32) {
    %c0_i32 = arith.constant 0 : i32
    %c0_i32_0 = arith.constant 0 : i32
    %c0_i32_1 = arith.constant 0 : i32
    return %arg1, %c0_i32, %c0_i32_0 : i32, i32, i32
  }
  func.func @transform_11(%arg0: i32, %arg1: i32) -> (i32, i32) {
    %c0_i32 = arith.constant 0 : i32
    %c0_i32_0 = arith.constant 0 : i32
    %c0_i32_1 = arith.constant 0 : i32
    return %c0_i32, %c0_i32_0 : i32, i32
  }
  func.func @transform_12(%arg0: i32, %arg1: i32) -> (i32, i32) {
    %c0_i32 = arith.constant 0 : i32
    %c0_i32_0 = arith.constant 0 : i32
    %c0_i32_1 = arith.constant 0 : i32
    return %c0_i32, %c0_i32_0 : i32, i32
  }
  func.func @transform_13(%arg0: i32, %arg1: i32) -> (i32, i32) {
    %c0_i32 = arith.constant 0 : i32
    %c0_i32_0 = arith.constant 0 : i32
    %c0_i32_1 = arith.constant 0 : i32
    return %c0_i32, %c0_i32_0 : i32, i32
  }
  func.func @transform_14(%arg0: i32, %arg1: i32) -> (i32, i32, i32) {
    %c0_i32 = arith.constant 0 : i32
    %c0_i32_0 = arith.constant 0 : i32
    %c0_i32_1 = arith.constant 0 : i32
    return %arg0, %c0_i32, %c0_i32_0 : i32, i32, i32
  }
}

</mosaic_0001>

<llo_original>
// kernel: tpu_custom_call.1
$region0: #{tpu_custom_call.1}
  #allocation0 [shape = 'u32[]', space=smem, size = 0x4, offset = 0x4, fixed_abs, tag = 'smem constant byte address 0x4 - core index']
  #allocation1 [shape = 'u32[72,128]{1,0:T(1,128)}', space=vmem, size = 0x9000, scoped, tag = 'internal scratch']
  #allocation2 [shape = 'f32[2,8,128]{2,1,0:T(8,128)}', space=vmem, size = 0x2000, scoped, tag = 'scratch operand']
  %s0 = inlined_call_operand.hbm [shape: f32[4,8,128], index: 0, kind: input, shape index: {}]
  %s1 = inlined_call_operand.vmem [shape: f32[8,128], index: 1, kind: input, shape index: {}]
  %s2 = inlined_call_operand.hbm [shape: f32[2,128], index: 2, kind: input, shape index: {}]
  %s3 = inlined_call_operand.vmem [shape: f32[4,1,8], index: 3, kind: input, shape index: {}]
  %s4 = inlined_call_operand.hbm [shape: bf16[2,128,384], index: 4, kind: input, shape index: {}]
  %s5 = inlined_call_operand.vmem [shape: f32[2,1,384], index: 5, kind: input, shape index: {}]
  %s6 = inlined_call_operand.hbm [shape: bf16[2,128,128], index: 6, kind: input, shape index: {}]
  %s7 = inlined_call_operand.vmem [shape: f32[2,6,128], index: 7, kind: input, shape index: {}]
  %s8 = inlined_call_operand.hbm [shape: bf16[2,128,512], index: 8, kind: input, shape index: {}]
  %s9 = inlined_call_operand.vmem [shape: f32[2,1,512], index: 9, kind: input, shape index: {}]
  %s10 = inlined_call_operand.hbm [shape: bf16[2,512,128], index: 10, kind: input, shape index: {}]
  %s11 = inlined_call_operand.hbm [shape: bf16[128,128], index: 11, kind: input, shape index: {}]
  %s12 = inlined_call_operand.hbm [shape: bf16[128,128], index: 12, kind: input, shape index: {}]
  %s13 = inlined_call_operand.vmem [shape: f32[4,128], index: 13, kind: input, shape index: {}]
  %s14 = inlined_call_operand.hbm [shape: f32[4,1,128], index: 14, kind: output, shape index: {}]
  %s15 = sld [smem:[#allocation0]]
  $region129: #{tpu_custom_call.1} parent=0
    _
  %s17 = ssub.s32 1, %s15
  %s18 = scalar_select 0, %s17, %s15
  $region1: #{tpu_custom_call.1} parent=0
    #allocation3 [shape = 'u8[16384]{0}', space=vmem, size = 0x4000, scoped, tag = 'input window, operand 0']
    #allocation4 [shape = 's32[2]{0}', space=sflag, size = 0x8, scoped, tag = 'scoped memory for tpu_custom_call.1']
    #allocation5 [shape = 's32[2]{0}', space=sflag, size = 0x8, scoped, tag = 'scoped memory for tpu_custom_call.1']
    #allocation6 [shape = 'u8[1024]{0}', space=vmem, size = 0x400, scoped, tag = 'input window, operand 2, single buffered']
    #allocation7 [shape = 's32[1]{0}', space=sflag, size = 0x4, scoped, tag = 'scoped memory for tpu_custom_call.1']
    #allocation8 [shape = 'u8[196608]{0}', space=vmem, size = 0x30000, scoped, tag = 'input window, operand 4']
    #allocation9 [shape = 'u8[65536]{0}', space=vmem, size = 0x10000, scoped, tag = 'input window, operand 6']
    #allocation10 [shape = 'u8[262144]{0}', space=vmem, size = 0x40000, scoped, tag = 'input window, operand 8']
    #allocation11 [shape = 'u8[262144]{0}', space=vmem, size = 0x40000, scoped, tag = 'input window, operand 10']
    #allocation12 [shape = 'u8[32768]{0}', space=vmem, size = 0x8000, scoped, tag = 'input window, operand 11, single buffered']
    #allocation13 [shape = 'u8[32768]{0}', space=vmem, size = 0x8000, scoped, tag = 'input window, operand 12, single buffered']
    #allocation14 [shape = 's32[1]{0}', space=sflag, size = 0x4, scoped, tag = 'scoped memory for tpu_custom_call.1']
    #allocation15 [shape = 'u8[2048]{0}', space=vmem, size = 0x800, scoped, tag = 'output window, operand 0']
    %19 = vsyncpa [#allocation4], 0
    %s20 = scalar_lea.sflag [#allocation4], 1
    %21 = vsyncpa %s20, 0
    %22 = vsyncpa [#allocation7], 0
    %23 = vsyncpa [#allocation14], 0
    %24 = vsyncpa [#allocation5], 0
    %s25 = scalar_lea.sflag [#allocation5], 1
    %26 = vsyncpa %s25, 0
    loop: start=0, step=1, limit=6
    $region2: #{tpu_custom_call.1} parent=1 // loop_pre_header
      _
    $region3: #{tpu_custom_call.1} parent=1 // loop_header
      %s28 = sphi 0, %s32
      %p29 = scmp.ge.s32.totalorder %s28, 6
      %s35 = sphi 0, %s47
      %s36 = sphi 0, %s43
      %s37 = sphi 0, %s35
      %s38 = sphi 0, %s36
      %s39 = sphi 0, %s37
      %s40 = sphi 0, %s38
      %s50 = sphi 0, %s52
      %s53 = sphi 0, %s50
      %s54 = sphi 0, %s53
      %s70 = sphi 0, %s54
      %s74 = sphi 0, %s74
      %s76 = sphi 0, %s74
      %s77 = sphi 0, %s76
      %s91 = sphi 0, %s77
      %s95 = sphi 0, %s95
      %s97 = sphi 0, %s95
      %s98 = sphi 0, %s97
      %s112 = sphi 0, %s98
      %s118 = sphi 0, %s120
      %s121 = sphi 0, %s118
      %s122 = sphi 0, %s121
      %s138 = sphi 0, %s122
      %s144 = sphi 0, %s146
      %s147 = sphi 0, %s144
      %s148 = sphi 0, %s147
      %s164 = sphi 0, %s148
      %s170 = sphi 0, %s172
      %s173 = sphi 0, %s170
      %s174 = sphi 0, %s173
      %s190 = sphi 0, %s174
      %s196 = sphi 0, %s198
      %s199 = sphi 0, %s196
      %s200 = sphi 0, %s199
      %s216 = sphi 0, %s200
      %s222 = sphi 0, %s224
      %s225 = sphi 0, %s222
      %s226 = sphi 0, %s225
      %s242 = sphi 0, %s226
      %s248 = sphi 0, %s250
      %s251 = sphi 0, %s248
      %s252 = sphi 0, %s251
      %s268 = sphi 0, %s252
      %s274 = sphi 0, %s276
      %s277 = sphi 0, %s274
      %s278 = sphi 0, %s277
      %s294 = sphi 0, %s278
      %s300 = sphi 0, %s302
      %s303 = sphi 0, %s300
      %s304 = sphi 0, %s303
      %s320 = sphi 0, %s304
      %s324 = sphi 0, %s324
      %s326 = sphi 0, %s324
      %s327 = sphi 0, %s326
      %s341 = sphi 0, %s327
      %s345 = sphi 0, %s345
      %s347 = sphi 0, %s345
      %s348 = sphi 0, %s347
      %s362 = sphi 0, %s348
      %s366 = sphi 0, %s366
      %s368 = sphi 0, %s366
      %s369 = sphi 0, %s368
      %s383 = sphi 0, %s369
      %s389 = sphi 0, %s391
      %s392 = sphi 0, %s389
      %s393 = sphi 0, %s392
      %s409 = sphi 0, %s393
    $region4: #{tpu_custom_call.1} parent=1 // loop_header_branch
      %31 = sbr.rel (%p29) target = $region8
    $region5: #{tpu_custom_call.1} parent=1 // loop_body
      %s33 = ssub.s32 %s28, 1
      %s34 = ssub.s32 %s28, 2
      %s41 = sadd.s32 1, %s36
      %p42 = scmp.ge.s32.totalorder %s41, 2
      %s43 = scalar_select %p42, 0, %s41
      %s44 = sadd.s32 1, %s35
      %s45 = scalar_select %p42, %s44, %s35
      %p46 = scmp.ge.s32.totalorder %s45, 2
      %s47 = scalar_select %p46, 0, %s45
      %s48 = ssub.s32 %s35, %s47
      %p49 = scmp.eq.s32.totalorder %s48, 0
      %s51 = sadd.s32 %s50, 1
      %s52 = scalar_select %p49, %s50, %s51
      %p55 = pneg %p49
      %p56 = scmp.eq.s32.totalorder %s28, 3
      %p57 = por %p55, %p56
      %p58 = scmp.ne.s32.totalorder %s50, %s53
      %p59 = scmp.eq.s32.totalorder %s28, 0
      %p60 = por %p58, %p59
      %p61 = scmp.ne.s32.totalorder %s50, %s53
      %p62 = scmp.eq.s32.totalorder %s33, 3
      %p63 = por %p61, %p62
      %p64 = scmp.ne.s32.totalorder %s53, %s54
      %p65 = scmp.eq.s32.totalorder %s33, 0
      %p66 = por %p64, %p65
      %p67 = scmp.ne.s32.totalorder %s53, %s54
      %p68 = scmp.eq.s32.totalorder %s34, 3
      %p69 = por %p67, %p68
      %p71 = scmp.ne.s32.totalorder %s54, %s70
      %p72 = scmp.eq.s32.totalorder %s34, 0
      %p73 = por %p71, %p72
      %s75 = sadd.s32 %s74, 1
      %p78 = scmp.eq.s32.totalorder %s28, 3
      %p79 = scmp.ne.s32.totalorder %s74, %s76
      %p80 = scmp.eq.s32.totalorder %s28, 0
      %p81 = por %p79, %p80
      %p82 = scmp.ne.s32.totalorder %s74, %s76
      %p83 = scmp.eq.s32.totalorder %s33, 3
      %p84 = por %p82, %p83
      %p85 = scmp.ne.s32.totalorder %s76, %s77
      %p86 = scmp.eq.s32.totalorder %s33, 0
      %p87 = por %p85, %p86
      %p88 = scmp.ne.s32.totalorder %s76, %s77
      %p89 = scmp.eq.s32.totalorder %s34, 3
      %p90 = por %p88, %p89
      %p92 = scmp.ne.s32.totalorder %s77, %s91
      %p93 = scmp.eq.s32.totalorder %s34, 0
      %p94 = por %p92, %p93
      %s96 = sadd.s32 %s95, 1
      %p99 = scmp.eq.s32.totalorder %s28, 3
      %p100 = scmp.ne.s32.totalorder %s95, %s97
      %p101 = scmp.eq.s32.totalorder %s28, 0
      %p102 = por %p100, %p101
      %p103 = scmp.ne.s32.totalorder %s95, %s97
      %p104 = scmp.eq.s32.totalorder %s33, 3
      %p105 = por %p103, %p104
      %p106 = scmp.ne.s32.totalorder %s97, %s98
      %p107 = scmp.eq.s32.totalorder %s33, 0
      %p108 = por %p106, %p107
      %p109 = scmp.ne.s32.totalorder %s97, %s98
      %p110 = scmp.eq.s32.totalorder %s34, 3
      %p111 = por %p109, %p110
      %p113 = scmp.ne.s32.totalorder %s98, %s112
      %p114 = scmp.eq.s32.totalorder %s34, 0
      %p115 = por %p113, %p114
      %s116 = ssub.s32 %s35, %s47
      %p117 = scmp.eq.s32.totalorder %s116, 0
      %s119 = sadd.s32 %s118, 1
      %s120 = scalar_select %p117, %s118, %s119
      %p123 = pneg %p117
      %p124 = scmp.eq.s32.totalorder %s28, 3
      %p125 = por %p123, %p124
      %p126 = scmp.ne.s32.totalorder %s118, %s121
      %p127 = scmp.eq.s32.totalorder %s28, 0
      %p128 = por %p126, %p127
      %p129 = scmp.ne.s32.totalorder %s118, %s121
      %p130 = scmp.eq.s32.totalorder %s33, 3
      %p131 = por %p129, %p130
      %p132 = scmp.ne.s32.totalorder %s121, %s122
      %p133 = scmp.eq.s32.totalorder %s33, 0
      %p134 = por %p132, %p133
      %p135 = scmp.ne.s32.totalorder %s121, %s122
      %p136 = scmp.eq.s32.totalorder %s34, 3
      %p137 = por %p135, %p136
      %p139 = scmp.ne.s32.totalorder %s122, %s138
      %p140 = scmp.eq.s32.totalorder %s34, 0
      %p141 = por %p139, %p140
      %s142 = ssub.s32 %s36, %s43
      %p143 = scmp.eq.s32.totalorder %s142, 0
      %s145 = sadd.s32 %s144, 1
      %s146 = scalar_select %p143, %s144, %s145
      %p149 = pneg %p143
      %p150 = scmp.eq.s32.totalorder %s28, 3
      %p151 = por %p149, %p150
      %p152 = scmp.ne.s32.totalorder %s144, %s147
      %p153 = scmp.eq.s32.totalorder %s28, 0
      %p154 = por %p152, %p153
      %p155 = scmp.ne.s32.totalorder %s144, %s147
      %p156 = scmp.eq.s32.totalorder %s33, 3
      %p157 = por %p155, %p156
      %p158 = scmp.ne.s32.totalorder %s147, %s148
      %p159 = scmp.eq.s32.totalorder %s33, 0
      %p160 = por %p158, %p159
      %p161 = scmp.ne.s32.totalorder %s147, %s148
      %p162 = scmp.eq.s32.totalorder %s34, 3
      %p163 = por %p161, %p162
      %p165 = scmp.ne.s32.totalorder %s148, %s164
      %p166 = scmp.eq.s32.totalorder %s34, 0
      %p167 = por %p165, %p166
      %s168 = ssub.s32 %s36, %s43
      %p169 = scmp.eq.s32.totalorder %s168, 0
      %s171 = sadd.s32 %s170, 1
      %s172 = scalar_select %p169, %s170, %s171
      %p175 = pneg %p169
      %p176 = scmp.eq.s32.totalorder %s28, 3
      %p177 = por %p175, %p176
      %p178 = scmp.ne.s32.totalorder %s170, %s173
      %p179 = scmp.eq.s32.totalorder %s28, 0
      %p180 = por %p178, %p179
      %p181 = scmp.ne.s32.totalorder %s170, %s173
      %p182 = scmp.eq.s32.totalorder %s33, 3
      %p183 = por %p181, %p182
      %p184 = scmp.ne.s32.totalorder %s173, %s174
      %p185 = scmp.eq.s32.totalorder %s33, 0
      %p186 = por %p184, %p185
      %p187 = scmp.ne.s32.totalorder %s173, %s174
      %p188 = scmp.eq.s32.totalorder %s34, 3
      %p189 = por %p187, %p188
      %p191 = scmp.ne.s32.totalorder %s174, %s190
      %p192 = scmp.eq.s32.totalorder %s34, 0
      %p193 = por %p191, %p192
      %s194 = ssub.s32 %s36, %s43
      %p195 = scmp.eq.s32.totalorder %s194, 0
      %s197 = sadd.s32 %s196, 1
      %s198 = scalar_select %p195, %s196, %s197
      %p201 = pneg %p195
      %p202 = scmp.eq.s32.totalorder %s28, 3
      %p203 = por %p201, %p202
      %p204 = scmp.ne.s32.totalorder %s196, %s199
      %p205 = scmp.eq.s32.totalorder %s28, 0
      %p206 = por %p204, %p205
      %p207 = scmp.ne.s32.totalorder %s196, %s199
      %p208 = scmp.eq.s32.totalorder %s33, 3
      %p209 = por %p207, %p208
      %p210 = scmp.ne.s32.totalorder %s199, %s200
      %p211 = scmp.eq.s32.totalorder %s33, 0
      %p212 = por %p210, %p211
      %p213 = scmp.ne.s32.totalorder %s199, %s200
      %p214 = scmp.eq.s32.totalorder %s34, 3
      %p215 = por %p213, %p214
      %p217 = scmp.ne.s32.totalorder %s200, %s216
      %p218 = scmp.eq.s32.totalorder %s34, 0
      %p219 = por %p217, %p218
      %s220 = ssub.s32 %s36, %s43
      %p221 = scmp.eq.s32.totalorder %s220, 0
      %s223 = sadd.s32 %s222, 1
      %s224 = scalar_select %p221, %s222, %s223
      %p227 = pneg %p221
      %p228 = scmp.eq.s32.totalorder %s28, 3
      %p229 = por %p227, %p228
      %p230 = scmp.ne.s32.totalorder %s222, %s225
      %p231 = scmp.eq.s32.totalorder %s28, 0
      %p232 = por %p230, %p231
      %p233 = scmp.ne.s32.totalorder %s222, %s225
      %p234 = scmp.eq.s32.totalorder %s33, 3
      %p235 = por %p233, %p234
      %p236 = scmp.ne.s32.totalorder %s225, %s226
      %p237 = scmp.eq.s32.totalorder %s33, 0
      %p238 = por %p236, %p237
      %p239 = scmp.ne.s32.totalorder %s225, %s226
      %p240 = scmp.eq.s32.totalorder %s34, 3
      %p241 = por %p239, %p240
      %p243 = scmp.ne.s32.totalorder %s226, %s242
      %p244 = scmp.eq.s32.totalorder %s34, 0
      %p245 = por %p243, %p244
      %s246 = ssub.s32 %s36, %s43
      %p247 = scmp.eq.s32.totalorder %s246, 0
      %s249 = sadd.s32 %s248, 1
      %s250 = scalar_select %p247, %s248, %s249
      %p253 = pneg %p247
      %p254 = scmp.eq.s32.totalorder %s28, 3
      %p255 = por %p253, %p254
      %p256 = scmp.ne.s32.totalorder %s248, %s251
      %p257 = scmp.eq.s32.totalorder %s28, 0
      %p258 = por %p256, %p257
      %p259 = scmp.ne.s32.totalorder %s248, %s251
      %p260 = scmp.eq.s32.totalorder %s33, 3
      %p261 = por %p259, %p260
      %p262 = scmp.ne.s32.totalorder %s251, %s252
      %p263 = scmp.eq.s32.totalorder %s33, 0
      %p264 = por %p262, %p263
      %p265 = scmp.ne.s32.totalorder %s251, %s252
      %p266 = scmp.eq.s32.totalorder %s34, 3
      %p267 = por %p265, %p266
      %p269 = scmp.ne.s32.totalorder %s252, %s268
      %p270 = scmp.eq.s32.totalorder %s34, 0
      %p271 = por %p269, %p270
      %s272 = ssub.s32 %s36, %s43
      %p273 = scmp.eq.s32.totalorder %s272, 0
      %s275 = sadd.s32 %s274, 1
      %s276 = scalar_select %p273, %s274, %s275
      %p279 = pneg %p273
      %p280 = scmp.eq.s32.totalorder %s28, 3
      %p281 = por %p279, %p280
      %p282 = scmp.ne.s32.totalorder %s274, %s277
      %p283 = scmp.eq.s32.totalorder %s28, 0
      %p284 = por %p282, %p283
      %p285 = scmp.ne.s32.totalorder %s274, %s277
      %p286 = scmp.eq.s32.totalorder %s33, 3
      %p287 = por %p285, %p286
      %p288 = scmp.ne.s32.totalorder %s277, %s278
      %p289 = scmp.eq.s32.totalorder %s33, 0
      %p290 = por %p288, %p289
      %p291 = scmp.ne.s32.totalorder %s277, %s278
      %p292 = scmp.eq.s32.totalorder %s34, 3
      %p293 = por %p291, %p292
      %p295 = scmp.ne.s32.totalorder %s278, %s294
      %p296 = scmp.eq.s32.totalorder %s34, 0
      %p297 = por %p295, %p296
      %s298 = ssub.s32 %s36, %s43
      %p299 = scmp.eq.s32.totalorder %s298, 0
      %s301 = sadd.s32 %s300, 1
      %s302 = scalar_select %p299, %s300, %s301
      %p305 = pneg %p299
      %p306 = scmp.eq.s32.totalorder %s28, 3
      %p307 = por %p305, %p306
      %p308 = scmp.ne.s32.totalorder %s300, %s303
      %p309 = scmp.eq.s32.totalorder %s28, 0
      %p310 = por %p308, %p309
      %p311 = scmp.ne.s32.totalorder %s300, %s303
      %p312 = scmp.eq.s32.totalorder %s33, 3
      %p313 = por %p311, %p312
      %p314 = scmp.ne.s32.totalorder %s303, %s304
      %p315 = scmp.eq.s32.totalorder %s33, 0
      %p316 = por %p314, %p315
      %p317 = scmp.ne.s32.totalorder %s303, %s304
      %p318 = scmp.eq.s32.totalorder %s34, 3
      %p319 = por %p317, %p318
      %p321 = scmp.ne.s32.totalorder %s304, %s320
      %p322 = scmp.eq.s32.totalorder %s34, 0
      %p323 = por %p321, %p322
      %s325 = sadd.s32 %s324, 1
      %p328 = scmp.eq.s32.totalorder %s28, 3
      %p329 = scmp.ne.s32.totalorder %s324, %s326
      %p330 = scmp.eq.s32.totalorder %s28, 0
      %p331 = por %p329, %p330
      %p332 = scmp.ne.s32.totalorder %s324, %s326
      %p333 = scmp.eq.s32.totalorder %s33, 3
      %p334 = por %p332, %p333
      %p335 = scmp.ne.s32.totalorder %s326, %s327
      %p336 = scmp.eq.s32.totalorder %s33, 0
      %p337 = por %p335, %p336
      %p338 = scmp.ne.s32.totalorder %s326, %s327
      %p339 = scmp.eq.s32.totalorder %s34, 3
      %p340 = por %p338, %p339
      %p342 = scmp.ne.s32.totalorder %s327, %s341
      %p343 = scmp.eq.s32.totalorder %s34, 0
      %p344 = por %p342, %p343
      %s346 = sadd.s32 %s345, 1
      %p349 = scmp.eq.s32.totalorder %s28, 3
      %p350 = scmp.ne.s32.totalorder %s345, %s347
      %p351 = scmp.eq.s32.totalorder %s28, 0
      %p352 = por %p350, %p351
      %p353 = scmp.ne.s32.totalorder %s345, %s347
      %p354 = scmp.eq.s32.totalorder %s33, 3
      %p355 = por %p353, %p354
      %p356 = scmp.ne.s32.totalorder %s347, %s348
      %p357 = scmp.eq.s32.totalorder %s33, 0
      %p358 = por %p356, %p357
      %p359 = scmp.ne.s32.totalorder %s347, %s348
      %p360 = scmp.eq.s32.totalorder %s34, 3
      %p361 = por %p359, %p360
      %p363 = scmp.ne.s32.totalorder %s348, %s362
      %p364 = scmp.eq.s32.totalorder %s34, 0
      %p365 = por %p363, %p364
      %s367 = sadd.s32 %s366, 1
      %p370 = scmp.eq.s32.totalorder %s28, 3
      %p371 = scmp.ne.s32.totalorder %s366, %s368
      %p372 = scmp.eq.s32.totalorder %s28, 0
      %p373 = por %p371, %p372
      %p374 = scmp.ne.s32.totalorder %s366, %s368
      %p375 = scmp.eq.s32.totalorder %s33, 3
      %p376 = por %p374, %p375
      %p377 = scmp.ne.s32.totalorder %s368, %s369
      %p378 = scmp.eq.s32.totalorder %s33, 0
      %p379 = por %p377, %p378
      %p380 = scmp.ne.s32.totalorder %s368, %s369
      %p381 = scmp.eq.s32.totalorder %s34, 3
      %p382 = por %p380, %p381
      %p384 = scmp.ne.s32.totalorder %s369, %s383
      %p385 = scmp.eq.s32.totalorder %s34, 0
      %p386 = por %p384, %p385
      %s387 = ssub.s32 %s35, %s47
      %p388 = scmp.eq.s32.totalorder %s387, 0
      %s390 = sadd.s32 %s389, 1
      %s391 = scalar_select %p388, %s389, %s390
      %p394 = pneg %p388
      %p395 = scmp.eq.s32.totalorder %s28, 3
      %p396 = por %p394, %p395
      %p397 = scmp.ne.s32.totalorder %s389, %s392
      %p398 = scmp.eq.s32.totalorder %s28, 0
      %p399 = por %p397, %p398
      %p400 = scmp.ne.s32.totalorder %s389, %s392
      %p401 = scmp.eq.s32.totalorder %s33, 3
      %p402 = por %p400, %p401
      %p403 = scmp.ne.s32.totalorder %s392, %s393
      %p404 = scmp.eq.s32.totalorder %s33, 0
      %p405 = por %p403, %p404
      %p406 = scmp.ne.s32.totalorder %s392, %s393
      %p407 = scmp.eq.s32.totalorder %s34, 3
      %p408 = por %p406, %p407
      %p410 = scmp.ne.s32.totalorder %s393, %s409
      %p411 = scmp.eq.s32.totalorder %s34, 0
      %p412 = por %p410, %p411
      %p413 = scmp.le.s32.totalorder 1, %s28
      %p414 = scmp.lt.s32.totalorder %s28, 5
      %p415 = pnand %p413, %p414
      %p416 = pneg %p415
      // Predicated region
      $region9: #{tpu_custom_call.1} parent=5 // pred_check
        _
      $region10: #{tpu_custom_call.1} parent=5 // pred_check_branch
        %418 = sbr.rel (%p415) target = $region12
      $region11: #{tpu_custom_call.1} parent=5 // pred_region
        %s419 = ssub.s32 %s28, 1
        // Predicated region
        $region13: #{tpu_custom_call.1} parent=11 // pred_check
          %p420 = pneg %p87
        $region14: #{tpu_custom_call.1} parent=11 // pred_check_branch
          %422 = sbr.rel (%p420) target = $region16
        $region15: #{tpu_custom_call.1} parent=11 // pred_region
          _
        $region16: #{tpu_custom_call.1} parent=11 // pred_fallthru
          _
        // Predicated region
        $region17: #{tpu_custom_call.1} parent=11 // pred_check
          %p423 = pneg %p108
        $region18: #{tpu_custom_call.1} parent=11 // pred_check_branch
          %425 = sbr.rel (%p423) target = $region20
        $region19: #{tpu_custom_call.1} parent=11 // pred_region
          %427 = vsyncadd [#allocation7], 0
          %s429 = sshll.u32 %s2, 4
          %s430 = int_to_ptr.hbm [resolvable:$true] %s429
          %s431 = sshll.u32 [#allocation6], 4
          %s432 = int_to_ptr.vmem [resolvable:$true] %s431
          %434 = dma.hbm_to_vmem [thread:$0]  %s430, 32, %s432, [#allocation7]
        $region20: #{tpu_custom_call.1} parent=11 // pred_fallthru
          _
        // Predicated region
        $region21: #{tpu_custom_call.1} parent=11 // pred_check
          %p435 = pneg %p337
        $region22: #{tpu_custom_call.1} parent=11 // pred_check_branch
          %437 = sbr.rel (%p435) target = $region24
        $region23: #{tpu_custom_call.1} parent=11 // pred_region
          %439 = vsyncadd [#allocation7], 0
          %s440 = sshll.u32 %s11, 4
          %s441 = int_to_ptr.hbm [resolvable:$true] %s440
          %s442 = sshll.u32 [#allocation12], 4
          %s443 = int_to_ptr.vmem [resolvable:$true] %s442
          %448 = dma.hbm_to_vmem [thread:$0]  %s441, 1024, %s443, [#allocation7], 64, 64, 4
        $region24: #{tpu_custom_call.1} parent=11 // pred_fallthru
          _
        // Predicated region
        $region25: #{tpu_custom_call.1} parent=11 // pred_check
          %p449 = pneg %p358
        $region26: #{tpu_custom_call.1} parent=11 // pred_check_branch
          %451 = sbr.rel (%p449) target = $region28
        $region27: #{tpu_custom_call.1} parent=11 // pred_region
          %453 = vsyncadd [#allocation14], 0
          %s454 = sshll.u32 %s12, 4
          %s455 = int_to_ptr.hbm [resolvable:$true] %s454
          %s456 = sshll.u32 [#allocation13], 4
          %s457 = int_to_ptr.vmem [resolvable:$true] %s456
          %462 = dma.hbm_to_vmem [thread:$0]  %s455, 1024, %s457, [#allocation14], 64, 64, 4
        $region28: #{tpu_custom_call.1} parent=11 // pred_fallthru
          _
        // Predicated region
        $region29: #{tpu_custom_call.1} parent=11 // pred_check
          %p463 = pneg %p379
        $region30: #{tpu_custom_call.1} parent=11 // pred_check_branch
          %465 = sbr.rel (%p463) target = $region32
        $region31: #{tpu_custom_call.1} parent=11 // pred_region
          _
        $region32: #{tpu_custom_call.1} parent=11 // pred_fallthru
          _
      $region12: #{tpu_custom_call.1} parent=5 // pred_fallthru
        _
      %p466 = scmp.lt.s32.totalorder %s28, 4
      // Predicated region
      $region33: #{tpu_custom_call.1} parent=5 // pred_check
        %p467 = pneg %p466
      $region34: #{tpu_custom_call.1} parent=5 // pred_check_branch
        %469 = sbr.rel (%p467) target = $region36
      $region35: #{tpu_custom_call.1} parent=5 // pred_region
        // Predicated region
        $region37: #{tpu_custom_call.1} parent=35 // pred_check
          %p470 = pneg %p60
        $region38: #{tpu_custom_call.1} parent=35 // pred_check_branch
          %472 = sbr.rel (%p470) target = $region40
        $region39: #{tpu_custom_call.1} parent=35 // pred_region
          %s473 = sand.u32 %s28, 1
          %s474 = scalar_lea.sflag [#allocation4], %s473
          %s475 = sand.u32 %s50, 1
          %s476 = smul.addr %s475, 16
          %s477 = scalar_lea.vmem [#allocation3], %s476
          %s478 = smul.u32 2, %s35
          %480 = vsyncadd %s474, 0
          %s481 = smul.addr %s478, 8
          %s482 = scalar_lea.hbm %s0, %s481
          %s483 = sshll.u32 %s482, 4
          %s484 = int_to_ptr.hbm [resolvable:$true] %s483
          %s485 = sshll.u32 %s477, 4
          %s486 = int_to_ptr.vmem [resolvable:$true] %s485
          %491 = dma.hbm_to_vmem [thread:$0]  %s484, 256, %s486, %s474, 128, 128, 8
        $region40: #{tpu_custom_call.1} parent=35 // pred_fallthru
          _
        // Predicated region
        $region41: #{tpu_custom_call.1} parent=35 // pred_check
          %p492 = pneg %p128
        $region42: #{tpu_custom_call.1} parent=35 // pred_check_branch
          %494 = sbr.rel (%p492) target = $region44
        $region43: #{tpu_custom_call.1} parent=35 // pred_region
          %s495 = smul.u32 2, %s35
          %p496 = scmp.lt.s32.totalorder %s495, 3
          %s497 = scalar_select %p496, %s495, 3
          %s498 = scalar_lea.vmem %s3, %s497
          %s499 = smul.u32 2, %s35
        $region44: #{tpu_custom_call.1} parent=35 // pred_fallthru
          _
        // Predicated region
        $region45: #{tpu_custom_call.1} parent=35 // pred_check
          %p500 = pneg %p154
        $region46: #{tpu_custom_call.1} parent=35 // pred_check_branch
          %502 = sbr.rel (%p500) target = $region48
        $region47: #{tpu_custom_call.1} parent=35 // pred_region
          %s503 = sand.u32 %s28, 1
          %s504 = scalar_lea.sflag [#allocation4], %s503
          %s505 = sand.u32 %s144, 1
          %s506 = smul.addr %s505, 192
          %s507 = scalar_lea.vmem [#allocation8], %s506
          %509 = vsyncadd %s504, 0
          %s510 = smul.addr %s36, 48
          %s511 = smul.addr %s510, 4
          %s512 = scalar_lea.hbm %s4, %s511
          %s513 = sshll.u32 %s512, 4
          %s514 = int_to_ptr.hbm [resolvable:$true] %s513
          %s515 = sshll.u32 %s507, 4
          %s516 = int_to_ptr.vmem [resolvable:$true] %s515
          %521 = dma.hbm_to_vmem [thread:$0]  %s514, 3072, %s516, %s504, 192, 192, 12
        $region48: #{tpu_custom_call.1} parent=35 // pred_fallthru
          _
        // Predicated region
        $region49: #{tpu_custom_call.1} parent=35 // pred_check
          %p522 = pneg %p180
        $region50: #{tpu_custom_call.1} parent=35 // pred_check_branch
          %524 = sbr.rel (%p522) target = $region52
        $region51: #{tpu_custom_call.1} parent=35 // pred_region
          %p525 = scmp.lt.s32.totalorder %s36, 1
          %s526 = scalar_select %p525, %s36, 1
          %s527 = smul.addr %s526, 3
          %s528 = scalar_lea.vmem %s5, %s527
        $region52: #{tpu_custom_call.1} parent=35 // pred_fallthru
          _
        // Predicated region
        $region53: #{tpu_custom_call.1} parent=35 // pred_check
          %p529 = pneg %p206
        $region54: #{tpu_custom_call.1} parent=35 // pred_check_branch
          %531 = sbr.rel (%p529) target = $region56
        $region55: #{tpu_custom_call.1} parent=35 // pred_region
          %s532 = sand.u32 %s28, 1
          %s533 = scalar_lea.sflag [#allocation4], %s532
          %s534 = sand.u32 %s196, 1
          %s535 = smul.addr %s534, 64
          %s536 = scalar_lea.vmem [#allocation9], %s535
          %538 = vsyncadd %s533, 0
          %s539 = smul.addr %s36, 16
          %s540 = smul.addr %s539, 4
          %s541 = scalar_lea.hbm %s6, %s540
          %s542 = sshll.u32 %s541, 4
          %s543 = int_to_ptr.hbm [resolvable:$true] %s542
          %s544 = sshll.u32 %s536, 4
          %s545 = int_to_ptr.vmem [resolvable:$true] %s544
          %550 = dma.hbm_to_vmem [thread:$0]  %s543, 1024, %s545, %s533, 64, 64, 4
        $region56: #{tpu_custom_call.1} parent=35 // pred_fallthru
          _
        // Predicated region
        $region57: #{tpu_custom_call.1} parent=35 // pred_check
          %p551 = pneg %p232
        $region58: #{tpu_custom_call.1} parent=35 // pred_check_branch
          %553 = sbr.rel (%p551) target = $region60
        $region59: #{tpu_custom_call.1} parent=35 // pred_region
          %p554 = scmp.lt.s32.totalorder %s36, 1
          %s555 = scalar_select %p554, %s36, 1
          %s556 = smul.addr %s555, 8
          %s557 = scalar_lea.vmem %s7, %s556
        $region60: #{tpu_custom_call.1} parent=35 // pred_fallthru
          _
        // Predicated region
        $region61: #{tpu_custom_call.1} parent=35 // pred_check
          %p558 = pneg %p258
        $region62: #{tpu_custom_call.1} parent=35 // pred_check_branch
          %560 = sbr.rel (%p558) target = $region64
        $region63: #{tpu_custom_call.1} parent=35 // pred_region
          %s561 = sand.u32 %s28, 1
          %s562 = scalar_lea.sflag [#allocation4], %s561
          %s563 = sand.u32 %s248, 1
          %s564 = smul.addr %s563, 256
          %s565 = scalar_lea.vmem [#allocation10], %s564
          %567 = vsyncadd %s562, 0
          %s568 = smul.addr %s36, 64
          %s569 = smul.addr %s568, 4
          %s570 = scalar_lea.hbm %s8, %s569
          %s571 = sshll.u32 %s570, 4
          %s572 = int_to_ptr.hbm [resolvable:$true] %s571
          %s573 = sshll.u32 %s565, 4
          %s574 = int_to_ptr.vmem [resolvable:$true] %s573
          %579 = dma.hbm_to_vmem [thread:$0]  %s572, 4096, %s574, %s562, 256, 256, 16
        $region64: #{tpu_custom_call.1} parent=35 // pred_fallthru
          _
        // Predicated region
        $region65: #{tpu_custom_call.1} parent=35 // pred_check
          %p580 = pneg %p284
        $region66: #{tpu_custom_call.1} parent=35 // pred_check_branch
          %582 = sbr.rel (%p580) target = $region68
        $region67: #{tpu_custom_call.1} parent=35 // pred_region
          %p583 = scmp.lt.s32.totalorder %s36, 1
          %s584 = scalar_select %p583, %s36, 1
          %s585 = smul.addr %s584, 4
          %s586 = scalar_lea.vmem %s9, %s585
        $region68: #{tpu_custom_call.1} parent=35 // pred_fallthru
          _
        // Predicated region
        $region69: #{tpu_custom_call.1} parent=35 // pred_check
          %p587 = pneg %p310
        $region70: #{tpu_custom_call.1} parent=35 // pred_check_branch
          %589 = sbr.rel (%p587) target = $region72
        $region71: #{tpu_custom_call.1} parent=35 // pred_region
          %s590 = sand.u32 %s28, 1
          %s591 = scalar_lea.sflag [#allocation4], %s590
          %s592 = sand.u32 %s300, 1
          %s593 = smul.addr %s592, 256
          %s594 = scalar_lea.vmem [#allocation11], %s593
          %596 = vsyncadd %s591, 0
          %s597 = smul.addr %s36, 64
          %s598 = smul.addr %s597, 4
          %s599 = scalar_lea.hbm %s10, %s598
          %s600 = sshll.u32 %s599, 4
          %s601 = int_to_ptr.hbm [resolvable:$true] %s600
          %s602 = sshll.u32 %s594, 4
          %s603 = int_to_ptr.vmem [resolvable:$true] %s602
          %608 = dma.hbm_to_vmem [thread:$0]  %s601, 4096, %s603, %s591, 64, 64, 4
        $region72: #{tpu_custom_call.1} parent=35 // pred_fallthru
          _
      $region36: #{tpu_custom_call.1} parent=5 // pred_fallthru
        _
      %p609 = scmp.le.s32.totalorder 1, %s28
      %p610 = scmp.lt.s32.totalorder %s28, 5
      %p611 = pnand %p609, %p610
      %p612 = pneg %p611
      // Predicated region
      $region73: #{tpu_custom_call.1} parent=5 // pred_check
        _
      $region74: #{tpu_custom_call.1} parent=5 // pred_check_branch
        %614 = sbr.rel (%p611) target = $region76
      $region75: #{tpu_custom_call.1} parent=5 // pred_region
        %s615 = ssub.s32 %s28, 1
        %s616 = sand.u32 %s33, 1
        %s617 = scalar_lea.sflag [#allocation4], %s616
        %s618 = sand.u32 %s53, 1
        %s619 = smul.addr %s618, 16
        %s620 = scalar_lea.vmem [#allocation3], %s619
        // Predicated region
        $region77: #{tpu_custom_call.1} parent=75 // pred_check
          %p621 = pneg %p66
        $region78: #{tpu_custom_call.1} parent=75 // pred_check_branch
          %623 = sbr.rel (%p621) target = $region80
        $region79: #{tpu_custom_call.1} parent=75 // pred_region
          %625 = dma.done %s617, 256
        $region80: #{tpu_custom_call.1} parent=75 // pred_fallthru
          _
        // Predicated region
        $region81: #{tpu_custom_call.1} parent=75 // pred_check
          %p626 = pneg %p108
        $region82: #{tpu_custom_call.1} parent=75 // pred_check_branch
          %628 = sbr.rel (%p626) target = $region84
        $region83: #{tpu_custom_call.1} parent=75 // pred_region
          %630 = dma.done [#allocation7], 32
        $region84: #{tpu_custom_call.1} parent=75 // pred_fallthru
          _
        %s631 = sand.u32 %s33, 1
        %s632 = scalar_lea.sflag [#allocation4], %s631
        %s633 = sand.u32 %s147, 1
        %s634 = smul.addr %s633, 192
        %s635 = scalar_lea.vmem [#allocation8], %s634
        // Predicated region
        $region85: #{tpu_custom_call.1} parent=75 // pred_check
          %p636 = pneg %p160
        $region86: #{tpu_custom_call.1} parent=75 // pred_check_branch
          %638 = sbr.rel (%p636) target = $region88
        $region87: #{tpu_custom_call.1} parent=75 // pred_region
          %640 = dma.done %s632, 3072
        $region88: #{tpu_custom_call.1} parent=75 // pred_fallthru
          _
        %s641 = sand.u32 %s33, 1
        %s642 = scalar_lea.sflag [#allocation4], %s641
        %s643 = sand.u32 %s199, 1
        %s644 = smul.addr %s643, 64
        %s645 = scalar_lea.vmem [#allocation9], %s644
        // Predicated region
        $region89: #{tpu_custom_call.1} parent=75 // pred_check
          %p646 = pneg %p212
        $region90: #{tpu_custom_call.1} parent=75 // pred_check_branch
          %648 = sbr.rel (%p646) target = $region92
        $region91: #{tpu_custom_call.1} parent=75 // pred_region
          %650 = dma.done %s642, 1024
        $region92: #{tpu_custom_call.1} parent=75 // pred_fallthru
          _
        %s651 = sand.u32 %s33, 1
        %s652 = scalar_lea.sflag [#allocation4], %s651
        %s653 = sand.u32 %s251, 1
        %s654 = smul.addr %s653, 256
        %s655 = scalar_lea.vmem [#allocation10], %s654
        // Predicated region
        $region93: #{tpu_custom_call.1} parent=75 // pred_check
          %p656 = pneg %p264
        $region94: #{tpu_custom_call.1} parent=75 // pred_check_branch
          %658 = sbr.rel (%p656) target = $region96
        $region95: #{tpu_custom_call.1} parent=75 // pred_region
          %660 = dma.done %s652, 4096
        $region96: #{tpu_custom_call.1} parent=75 // pred_fallthru
          _
        %s661 = sand.u32 %s33, 1
        %s662 = scalar_lea.sflag [#allocation4], %s661
        %s663 = sand.u32 %s303, 1
        %s664 = smul.addr %s663, 256
        %s665 = scalar_lea.vmem [#allocation11], %s664
        // Predicated region
        $region97: #{tpu_custom_call.1} parent=75 // pred_check
          %p666 = pneg %p316
        $region98: #{tpu_custom_call.1} parent=75 // pred_check_branch
          %668 = sbr.rel (%p666) target = $region100
        $region99: #{tpu_custom_call.1} parent=75 // pred_region
          %670 = dma.done %s662, 4096
        $region100: #{tpu_custom_call.1} parent=75 // pred_fallthru
          _
        // Predicated region
        $region101: #{tpu_custom_call.1} parent=75 // pred_check
          %p671 = pneg %p337
        $region102: #{tpu_custom_call.1} parent=75 // pred_check_branch
          %673 = sbr.rel (%p671) target = $region104
        $region103: #{tpu_custom_call.1} parent=75 // pred_region
          %675 = dma.done [#allocation7], 1024
        $region104: #{tpu_custom_call.1} parent=75 // pred_fallthru
          _
        // Predicated region
        $region105: #{tpu_custom_call.1} parent=75 // pred_check
          %p676 = pneg %p358
        $region106: #{tpu_custom_call.1} parent=75 // pred_check_branch
          %678 = sbr.rel (%p676) target = $region108
        $region107: #{tpu_custom_call.1} parent=75 // pred_region
          %680 = dma.done [#allocation14], 1024
        $region108: #{tpu_custom_call.1} parent=75 // pred_fallthru
          _
        %s681 = sand.u32 %s33, 1
        %s682 = scalar_lea.sflag [#allocation4], %s681
        %s683 = sand.u32 %s53, 1
        %s684 = smul.addr %s683, 16
        %s685 = scalar_lea.vmem [#allocation3], %s684
        %p686 = pneg %p66
        %p687 = pneg %p63
        %p688 = pneg %p87
        %p689 = pneg %p84
        %p690 = pneg %p108
        %p691 = pneg %p105
        %s692 = smul.u32 2, %s37
        %p693 = scmp.lt.s32.totalorder %s692, 3
        %s694 = scalar_select %p693, %s692, 3
        %s695 = scalar_lea.vmem %s3, %s694
        %p696 = pneg %p134
        %p697 = pneg %p131
        %s698 = sand.u32 %s33, 1
        %s699 = scalar_lea.sflag [#allocation4], %s698
        %s700 = sand.u32 %s147, 1
        %s701 = smul.addr %s700, 192
        %s702 = scalar_lea.vmem [#allocation8], %s701
        %p703 = pneg %p160
        %p704 = pneg %p157
        %p705 = scmp.lt.s32.totalorder %s38, 1
        %s706 = scalar_select %p705, %s38, 1
        %s707 = smul.addr %s706, 3
        %s708 = scalar_lea.vmem %s5, %s707
        %p709 = pneg %p186
        %p710 = pneg %p183
        %s711 = sand.u32 %s33, 1
        %s712 = scalar_lea.sflag [#allocation4], %s711
        %s713 = sand.u32 %s199, 1
        %s714 = smul.addr %s713, 64
        %s715 = scalar_lea.vmem [#allocation9], %s714
        %p716 = pneg %p212
        %p717 = pneg %p209
        %p718 = scmp.lt.s32.totalorder %s38, 1
        %s719 = scalar_select %p718, %s38, 1
        %s720 = smul.addr %s719, 8
        %s721 = scalar_lea.vmem %s7, %s720
        %p722 = pneg %p238
        %p723 = pneg %p235
        %s724 = sand.u32 %s33, 1
        %s725 = scalar_lea.sflag [#allocation4], %s724
        %s726 = sand.u32 %s251, 1
        %s727 = smul.addr %s726, 256
        %s728 = scalar_lea.vmem [#allocation10], %s727
        %p729 = pneg %p264
        %p730 = pneg %p261
        %p731 = scmp.lt.s32.totalorder %s38, 1
        %s732 = scalar_select %p731, %s38, 1
        %s733 = smul.addr %s732, 4
        %s734 = scalar_lea.vmem %s9, %s733
        %p735 = pneg %p290
        %p736 = pneg %p287
        %s737 = sand.u32 %s33, 1
        %s738 = scalar_lea.sflag [#allocation4], %s737
        %s739 = sand.u32 %s303, 1
        %s740 = smul.addr %s739, 256
        %s741 = scalar_lea.vmem [#allocation11], %s740
        %p742 = pneg %p316
        %p743 = pneg %p313
        %p744 = pneg %p337
        %p745 = pneg %p334
        %p746 = pneg %p358
        %p747 = pneg %p355
        %p748 = pneg %p379
        %p749 = pneg %p376
        %p750 = pneg %p405
        %p751 = pneg %p402
        %s752 = sand.u32 %s392, 1
        %s753 = scalar_lea.sflag [#allocation5], %s752
        %s754 = sand.u32 %s392, 1
        %s755 = smul.addr %s754, 2
        %s756 = scalar_lea.vmem [#allocation15], %s755
        %s757 = smul.u32 2, %s37
        %s758 = smul.u32 2, %s37
        %p759 = scmp.lt.s32.totalorder %s758, 3
        %s760 = scalar_select %p759, %s758, 3
        %s761 = scalar_lea.vmem %s3, %s760
        %s762 = smul.u32 2, %s37
        %p763 = scmp.lt.s32.totalorder %s38, 1
        %s764 = scalar_select %p763, %s38, 1
        %s765 = smul.addr %s764, 3
        %s766 = scalar_lea.vmem %s5, %s765
        %p767 = scmp.lt.s32.totalorder %s38, 1
        %s768 = scalar_select %p767, %s38, 1
        %s769 = smul.addr %s768, 8
        %s770 = scalar_lea.vmem %s7, %s769
        %p771 = scmp.lt.s32.totalorder %s38, 1
        %s772 = scalar_select %p771, %s38, 1
        %s773 = smul.addr %s772, 4
        %s774 = scalar_lea.vmem %s9, %s773
        %s775 = smul.u32 2, %s37
        %p777 = scmp.eq.s32.totalorder %s38, 0
        // Predicated region
        $region109: #{tpu_custom_call.1} parent=75 // pred_check
          %p778 = pneg %p777
        $region110: #{tpu_custom_call.1} parent=75 // pred_check_branch
          %780 = sbr.rel (%p778) target = $region112
        $region111: #{tpu_custom_call.1} parent=75 // pred_region
          %v781 = vld [vmem:[%s620] sm:$0xff]
          %v782 = vld [vmem:[%s620 + $0x8] sm:$0xff]
          %v783 = vld [vmem:[%s1] sm:$0xff]
          %v784 = vadd.f32 %v781, %v783
          %v785 = vadd.f32 %v782, %v783
          %v786 = vld [vmem:[#allocation6] sm:$0x1]
          %v787 = vld [vmem:[#allocation6 + $0x1] sm:$0x1]
          %788 = vadd.xlane.f32.xlu0 %v784
          %v789 = vpop.xlane.xlu0 %788
          %790 = vadd.xlane.f32.xlu0 %v785
          %v791 = vpop.xlane.xlu0 %790
          %v792 = vrcp.pop 128.0
          %v793 = vmul.f32 128.0, %v792
          %v794 = vsub.f32 1.0, %v793
          %v795 = vmul.f32 %v792, %v794
          %v796 = vadd.f32 %v792, %v795
          %vm797 = vweird.f32 %v792
          %v798 = vsel %vm797, %v792, %v796
          %v799 = vmul.f32 %v789, %v798
          %v800 = vmul.f32 %v791, %v798
          %v801 = vsub.f32 %v784, %v799
          %v802 = vsub.f32 %v785, %v800
          %v803 = vmul.f32 %v801, %v801
          %v804 = vmul.f32 %v802, %v802
          %805 = vadd.xlane.f32.xlu0 %v803
          %v806 = vpop.xlane.xlu0 %805
          %807 = vadd.xlane.f32.xlu0 %v804
          %v808 = vpop.xlane.xlu0 %807
          %v809 = vmul.f32 %v806, %v798
          %v810 = vmul.f32 %v808, %v798
          %v811 = vadd.f32 %v809, 1e-12
          %v812 = vadd.f32 %v810, 1e-12
          %v813 = vrsqrt.pop %v811
          %v814 = vmul.f32 %v813, %v811
          %v815 = vmul.f32 %v814, %v813
          %v816 = vmul.f32 0.5, %v815
          %v817 = vsub.f32 1.5, %v816
          %v818 = vmul.f32 %v813, %v817
          %vm819 = vweird.f32 %v811
          %vm820 = vweird.f32 %v813
          %vm821 = vmor %vm819, %vm820
          %v822 = vsel %vm821, %v813, %v818
          %v823 = vrsqrt.pop %v812
          %v824 = vmul.f32 %v823, %v812
          %v825 = vmul.f32 %v824, %v823
          %v826 = vmul.f32 0.5, %v825
          %v827 = vsub.f32 1.5, %v826
          %v828 = vmul.f32 %v823, %v827
          %vm829 = vweird.f32 %v812
          %vm830 = vweird.f32 %v823
          %vm831 = vmor %vm829, %vm830
          %v832 = vsel %vm831, %v823, %v828
          %v833 = vmul.f32 %v801, %v822
          %v834 = vmul.f32 %v802, %v832
          %v835 = vperm.slane %v786, 0
          %v836 = vmul.f32 %v833, %v835
          %v837 = vmul.f32 %v834, %v835
          %v838 = vperm.slane %v787, 0
          %v839 = vadd.f32 %v836, %v838
          %v840 = vadd.f32 %v837, %v838
          %841 = vst [vmem:[#allocation2] sm:$0xff] %v839
          %842 = vst [vmem:[#allocation2 + $0x8] sm:$0xff] %v840
        $region112: #{tpu_custom_call.1} parent=75 // pred_fallthru
          _
        %v843 = vld [vmem:[#allocation2] sm:$0xff]
        %v844 = vld [vmem:[#allocation2 + $0x8] sm:$0xff]
        %v845 = vpack.c.bf16 %v844, %v843
        %v846 = vld [vmem:[%s635] sm:$0xff]
        %v847 = vld [vmem:[%s635 + $0x8] sm:$0xf]
        %v848 = vld [vmem:[%s635 + $0xc] sm:$0xff]
        %v849 = vld [vmem:[%s635 + $0x14] sm:$0xf]
        %v850 = vld [vmem:[%s635 + $0x18] sm:$0xff]
        %v851 = vld [vmem:[%s635 + $0x20] sm:$0xf]
        %v852 = vld [vmem:[%s635 + $0x24] sm:$0xff]
        %v853 = vld [vmem:[%s635 + $0x2c] sm:$0xf]
        %v854 = vld [vmem:[%s635 + $0x30] sm:$0xff]
        %v855 = vld [vmem:[%s635 + $0x38] sm:$0xf]
        %v856 = vld [vmem:[%s635 + $0x3c] sm:$0xff]
        %v857 = vld [vmem:[%s635 + $0x44] sm:$0xf]
        %v858 = vld [vmem:[%s635 + $0x48] sm:$0xff]
        %v859 = vld [vmem:[%s635 + $0x50] sm:$0xf]
        %v860 = vld [vmem:[%s635 + $0x54] sm:$0xff]
        %v861 = vld [vmem:[%s635 + $0x5c] sm:$0xf]
        %v862 = vld [vmem:[%s635 + $0x60] sm:$0xff]
        %v863 = vld [vmem:[%s635 + $0x68] sm:$0xf]
        %v864 = vld [vmem:[%s635 + $0x6c] sm:$0xff]
        %v865 = vld [vmem:[%s635 + $0x74] sm:$0xf]
        %v866 = vld [vmem:[%s635 + $0x78] sm:$0xff]
        %v867 = vld [vmem:[%s635 + $0x80] sm:$0xf]
        %v868 = vld [vmem:[%s635 + $0x84] sm:$0xff]
        %v869 = vld [vmem:[%s635 + $0x8c] sm:$0xf]
        %v870 = vld [vmem:[%s635 + $0x90] sm:$0xff]
        %v871 = vld [vmem:[%s635 + $0x98] sm:$0xf]
        %v872 = vld [vmem:[%s635 + $0x9c] sm:$0xff]
        %v873 = vld [vmem:[%s635 + $0xa4] sm:$0xf]
        %v874 = vld [vmem:[%s635 + $0xa8] sm:$0xff]
        %v875 = vld [vmem:[%s635 + $0xb0] sm:$0xf]
        %v876 = vld [vmem:[%s635 + $0xb4] sm:$0xff]
        %v877 = vld [vmem:[%s635 + $0xbc] sm:$0xf]
        %v878 = vld [vmem:[%s766] sm:$0x7]
        %v880 = vperm.slane %v878, 0
        %v881 = vperm.slane %v878, 1
        %v882 = vperm.slane %v878, 2
        %v918 = vunpack.c.l.b16 %v846
        %v919 = vunpack.c.h.b16 %v846
        %v920 = vunpack.c.l.b16 %v847
        %v921 = vunpack.c.l.b16 %v848
        %v922 = vunpack.c.h.b16 %v848
        %v923 = vunpack.c.l.b16 %v849
        %v924 = vunpack.c.l.b16 %v850
        %v925 = vunpack.c.h.b16 %v850
        %v926 = vunpack.c.l.b16 %v851
        %v927 = vunpack.c.l.b16 %v852
        %v928 = vunpack.c.h.b16 %v852
        %v929 = vunpack.c.l.b16 %v853
        %v930 = vunpack.c.l.b16 %v854
        %v931 = vunpack.c.h.b16 %v854
        %v932 = vunpack.c.l.b16 %v855
        %v933 = vunpack.c.l.b16 %v856
        %v934 = vunpack.c.h.b16 %v856
        %v935 = vunpack.c.l.b16 %v857
        %v936 = vunpack.c.l.b16 %v858
        %v937 = vunpack.c.h.b16 %v858
        %v938 = vunpack.c.l.b16 %v859
        %v939 = vunpack.c.l.b16 %v860
        %v940 = vunpack.c.h.b16 %v860
        %v941 = vunpack.c.l.b16 %v861
        %v942 = vunpack.c.l.b16 %v862
        %v943 = vunpack.c.h.b16 %v862
        %v944 = vunpack.c.l.b16 %v863
        %v945 = vunpack.c.l.b16 %v864
        %v946 = vunpack.c.h.b16 %v864
        %v947 = vunpack.c.l.b16 %v865
        %v948 = vunpack.c.l.b16 %v866
        %v949 = vunpack.c.h.b16 %v866
        %v950 = vunpack.c.l.b16 %v867
        %v951 = vunpack.c.l.b16 %v868
        %v952 = vunpack.c.h.b16 %v868
        %v953 = vunpack.c.l.b16 %v869
        %v954 = vunpack.c.l.b16 %v870
        %v955 = vunpack.c.h.b16 %v870
        %v956 = vunpack.c.l.b16 %v871
        %v957 = vunpack.c.l.b16 %v872
        %v958 = vunpack.c.h.b16 %v872
        %v959 = vunpack.c.l.b16 %v873
        %v960 = vunpack.c.l.b16 %v874
        %v961 = vunpack.c.h.b16 %v874
        %v962 = vunpack.c.l.b16 %v875
        %v963 = vunpack.c.l.b16 %v876
        %v964 = vunpack.c.h.b16 %v876
        %v965 = vunpack.c.l.b16 %v877
        %v966 = vpack.c.b16 %v921, %v918
        %v967 = vpack.c.b16 %v922, %v919
        %v968 = vpack.c.b16 %v923, %v920
        %v969 = vpack.c.b16 %v927, %v924
        %v970 = vpack.c.b16 %v928, %v925
        %v971 = vpack.c.b16 %v929, %v926
        %v972 = vpack.c.b16 %v933, %v930
        %v973 = vpack.c.b16 %v934, %v931
        %v974 = vpack.c.b16 %v935, %v932
        %v975 = vpack.c.b16 %v939, %v936
        %v976 = vpack.c.b16 %v940, %v937
        %v977 = vpack.c.b16 %v941, %v938
        %v978 = vpack.c.b16 %v945, %v942
        %v979 = vpack.c.b16 %v946, %v943
        %v980 = vpack.c.b16 %v947, %v944
        %v981 = vpack.c.b16 %v951, %v948
        %v982 = vpack.c.b16 %v952, %v949
        %v983 = vpack.c.b16 %v953, %v950
        %v984 = vpack.c.b16 %v957, %v954
        %v985 = vpack.c.b16 %v958, %v955
        %v986 = vpack.c.b16 %v959, %v956
        %v987 = vpack.c.b16 %v963, %v960
        %v988 = vpack.c.b16 %v964, %v961
        %v989 = vpack.c.b16 %v965, %v962
        %1014 = vmatpush.bf16.msra.mxu0 %v987
        %1015 = vmatpush.bf16.msra.mxu0 %v984
        %1016 = vmatpush.bf16.msra.mxu0 %v981
        %1017 = vmatpush.bf16.msra.mxu0 %v978
        %1018 = vmatpush.bf16.msra.mxu0 %v975
        %1019 = vmatpush.bf16.msra.mxu0 %v972
        %1020 = vmatpush.bf16.msra.mxu0 %v969
        %1021 = vmatpush.bf16.msra.mxu0 %v966
        %1022 = vmatmul.bf16.gmra.mxu0 %v845
        %v1023 = vpop.f32.mrf.mxu0
        %v1024 = vadd.f32 %v880, %v1023
        %v1025 = vpop.f32.mrf.mxu0
        %v1026 = vadd.f32 %v880, %v1025
        %1027 = vdwg.mxu0
        %1028 = vmatpush.bf16.msra.mxu0 %v988
        %1029 = vmatpush.bf16.msra.mxu0 %v985
        %1030 = vmatpush.bf16.msra.mxu0 %v982
        %1031 = vmatpush.bf16.msra.mxu0 %v979
        %1032 = vmatpush.bf16.msra.mxu0 %v976
        %1033 = vmatpush.bf16.msra.mxu0 %v973
        %1034 = vmatpush.bf16.msra.mxu0 %v970
        %1035 = vmatpush.bf16.msra.mxu0 %v967
        %1036 = vmatmul.bf16.gmra.mxu0 %v845
        %v1037 = vpop.f32.mrf.mxu0
        %v1038 = vadd.f32 %v881, %v1037
        %v1039 = vpop.f32.mrf.mxu0
        %v1040 = vadd.f32 %v881, %v1039
        %1041 = vdwg.mxu0
        %1042 = vmatpush.bf16.msra.mxu0 %v989
        %1043 = vmatpush.bf16.msra.mxu0 %v986
        %1044 = vmatpush.bf16.msra.mxu0 %v983
        %1045 = vmatpush.bf16.msra.mxu0 %v980
        %1046 = vmatpush.bf16.msra.mxu0 %v977
        %1047 = vmatpush.bf16.msra.mxu0 %v974
        %1048 = vmatpush.bf16.msra.mxu0 %v971
        %1049 = vmatpush.bf16.msra.mxu0 %v968
        %1050 = vmatmul.bf16.gmra.mxu0 %v845
        %v1051 = vpop.f32.mrf.mxu0
        %v1052 = vadd.f32 %v882, %v1051
        %v1053 = vpop.f32.mrf.mxu0
        %v1054 = vadd.f32 %v882, %v1053
        %1055 = vdwg.mxu0
        %v1056 = vpack.c.bf16 %v1024, %v1024
        %v1057 = vpack.c.bf16 %v1026, %v1026
        %v1058 = vpack.c.bf16 %v1038, %v1038
        %v1059 = vpack.c.bf16 %v1040, %v1040
        %v1060 = vpack.c.bf16 %v1052, %v1052
        %v1061 = vpack.c.bf16 %v1054, %v1054
        %v1062 = vld [vmem:[%s761] sm:$0x1]
        %v1063 = vld [vmem:[%s761 + $0x1] sm:$0x1]
        %v1064 = vld [vmem:[%s770] sm:$0x3f]
        %v1067 = vperm.slane %v1062, 0
        %v1068 = vperm.slane %v1063, 0
        %vm1071 = vcmask 261120
        %v1073 = vsel %vm1071, %v1056, 0
        %v1076 = vsel %vm1071, %v1058, 0
        %1078 = vmatpush.bf16.xpose.msra.mxu0 0
        %1079 = vmatpush.bf16.xpose.msra.mxu0 0
        %1080 = vmatpush.bf16.xpose.msra.mxu0 0
        %1081 = vmatpush.bf16.xpose.msra.mxu0 0
        %1082 = vmatpush.bf16.xpose.msra.mxu0 0
        %1083 = vmatpush.bf16.xpose.msra.mxu0 0
        %1084 = vmatpush.bf16.xpose.msra.mxu0 0
        %1085 = vmatpush.bf16.xpose.msra.mxu0 %v1076
        %1086 = vmatmul.bf16.gmra.mxu0 %v1073
        %v1087 = vpop.f32.mrf.mxu0
        %v1088 = vadd.f32 %v1067, %v1087
        %v1089 = vpop.f32.mrf.mxu0
        %1090 = vdwg.mxu0
        %v1092 = vsel %vm1071, %v1057, 0
        %v1095 = vsel %vm1071, %v1059, 0
        %1097 = vmatpush.bf16.xpose.msra.mxu0 0
        %1098 = vmatpush.bf16.xpose.msra.mxu0 0
        %1099 = vmatpush.bf16.xpose.msra.mxu0 0
        %1100 = vmatpush.bf16.xpose.msra.mxu0 0
        %1101 = vmatpush.bf16.xpose.msra.mxu0 0
        %1102 = vmatpush.bf16.xpose.msra.mxu0 0
        %1103 = vmatpush.bf16.xpose.msra.mxu0 0
        %1104 = vmatpush.bf16.xpose.msra.mxu0 %v1095
        %1105 = vmatmul.bf16.gmra.mxu0 %v1092
        %v1106 = vpop.f32.mrf.mxu0
        %v1107 = vadd.f32 %v1068, %v1106
        %v1108 = vpop.f32.mrf.mxu0
        %1109 = vdwg.mxu0
        %vm1110 = vcmask 64512
        %v1111 = vsel %vm1110, %v1088, -inf
        %1112 = vmax.xlane.f32.xlu0 %v1111
        %v1113 = vpop.xlane.xlu0 %1112
        %v1114 = vsel %vm1110, %v1107, -inf
        %1115 = vmax.xlane.f32.xlu0 %v1114
        %v1116 = vpop.xlane.xlu0 %1115
        %v1117 = vsub.f32 %v1088, %v1113
        %v1118 = vsub.f32 %v1107, %v1116
        %v1119 = vmul.f32 %v1117, 1.442695
        %v1120 = vpow.pop %v1119
        %v1121 = vmul.f32 %v1118, 1.442695
        %v1122 = vpow.pop %v1121
        %v1123 = vsel %vm1110, %v1120, 0.0
        %1124 = vadd.xlane.f32.xlu0 %v1123
        %v1125 = vpop.xlane.xlu0 %1124
        %v1126 = vsel %vm1110, %v1122, 0.0
        %1127 = vadd.xlane.f32.xlu0 %v1126
        %v1128 = vpop.xlane.xlu0 %1127
        %v1129 = vrcp.pop %v1125
        %v1130 = vrcp.pop %v1128
        %v1131 = vmul.f32 %v1120, %v1129
        %v1132 = vmul.f32 %v1122, %v1130
        %v1133 = vpack.c.bf16 %v1131, %v1131
        %v1134 = vpack.c.bf16 %v1132, %v1132
        %v1136 = vsel %vm1110, %v1133, 0
        %vm1138 = vcmask 1043456
        %v1140 = vsel %vm1138, %v1060, 0
        %1142 = vmatpush.bf16.msra.mxu0 0
        %1143 = vmatpush.bf16.msra.mxu0 0
        %1144 = vmatpush.bf16.msra.mxu0 0
        %1145 = vmatpush.bf16.msra.mxu0 0
        %1146 = vmatpush.bf16.msra.mxu0 0
        %1147 = vmatpush.bf16.msra.mxu0 0
        %1148 = vmatpush.bf16.msra.mxu0 0
        %1149 = vmatpush.bf16.msra.mxu0 %v1140
        %1150 = vmatmul.bf16.gmra.mxu0 %v1136
        %v1151 = vpop.f32.mrf.mxu0
        %v1152 = vadd.f32 0.0, %v1151
        %v1153 = vpop.f32.mrf.mxu0
        %1154 = vdwg.mxu0
        %v1156 = vsel %vm1110, %v1134, 0
        %v1159 = vsel %vm1138, %v1061, 0
        %1161 = vmatpush.bf16.msra.mxu0 0
        %1162 = vmatpush.bf16.msra.mxu0 0
        %1163 = vmatpush.bf16.msra.mxu0 0
        %1164 = vmatpush.bf16.msra.mxu0 0
        %1165 = vmatpush.bf16.msra.mxu0 0
        %1166 = vmatpush.bf16.msra.mxu0 0
        %1167 = vmatpush.bf16.msra.mxu0 0
        %1168 = vmatpush.bf16.msra.mxu0 %v1159
        %1169 = vmatmul.bf16.gmra.mxu0 %v1156
        %v1170 = vpop.f32.mrf.mxu0
        %v1171 = vadd.f32 0.0, %v1170
        %v1172 = vpop.f32.mrf.mxu0
        %1173 = vdwg.mxu0
        %v1174 = vpack.c.bf16 %v1171, %v1152
        %v1175 = vld [vmem:[%s645] sm:$0xf]
        %v1176 = vld [vmem:[%s645 + $0x4] sm:$0xf]
        %v1177 = vld [vmem:[%s645 + $0x8] sm:$0xf]
        %v1178 = vld [vmem:[%s645 + $0xc] sm:$0xf]
        %v1180 = vunpack.c.l.b16 %v1056
        %v1181 = vpack.c.b16 %v1180, %v1180
        %1182 = vrot.lane.b32.xlu0 %v1181, 96
        %v1183 = vpop.permute.xlu0 %1182
        %v1185 = vunpack.c.l.b16 %v1058
        %v1186 = vpack.c.b16 %v1185, %v1185
        %1187 = vrot.lane.b32.xlu0 %v1186, 96
        %v1188 = vpop.permute.xlu0 %1187
        %v1190 = vsel %vm1071, %v1183, 0
        %v1193 = vsel %vm1071, %v1188, 0
        %1195 = vmatpush.bf16.xpose.msra.mxu0 0
        %1196 = vmatpush.bf16.xpose.msra.mxu0 0
        %1197 = vmatpush.bf16.xpose.msra.mxu0 0
        %1198 = vmatpush.bf16.xpose.msra.mxu0 0
        %1199 = vmatpush.bf16.xpose.msra.mxu0 0
        %1200 = vmatpush.bf16.xpose.msra.mxu0 0
        %1201 = vmatpush.bf16.xpose.msra.mxu0 0
        %1202 = vmatpush.bf16.xpose.msra.mxu0 %v1193
        %1203 = vmatmul.bf16.gmra.mxu0 %v1190
        %v1204 = vpop.f32.mrf.mxu0
        %v1205 = vadd.f32 %v1067, %v1204
        %v1206 = vpop.f32.mrf.mxu0
        %1207 = vdwg.mxu0
        %v1209 = vunpack.c.l.b16 %v1057
        %v1210 = vpack.c.b16 %v1209, %v1209
        %1211 = vrot.lane.b32.xlu0 %v1210, 96
        %v1212 = vpop.permute.xlu0 %1211
        %v1214 = vunpack.c.l.b16 %v1059
        %v1215 = vpack.c.b16 %v1214, %v1214
        %1216 = vrot.lane.b32.xlu0 %v1215, 96
        %v1217 = vpop.permute.xlu0 %1216
        %v1219 = vsel %vm1071, %v1212, 0
        %v1222 = vsel %vm1071, %v1217, 0
        %1224 = vmatpush.bf16.xpose.msra.mxu0 0
        %1225 = vmatpush.bf16.xpose.msra.mxu0 0
        %1226 = vmatpush.bf16.xpose.msra.mxu0 0
        %1227 = vmatpush.bf16.xpose.msra.mxu0 0
        %1228 = vmatpush.bf16.xpose.msra.mxu0 0
        %1229 = vmatpush.bf16.xpose.msra.mxu0 0
        %1230 = vmatpush.bf16.xpose.msra.mxu0 0
        %1231 = vmatpush.bf16.xpose.msra.mxu0 %v1222
        %1232 = vmatmul.bf16.gmra.mxu0 %v1219
        %v1233 = vpop.f32.mrf.mxu0
        %v1234 = vadd.f32 %v1068, %v1233
        %v1235 = vpop.f32.mrf.mxu0
        %1236 = vdwg.mxu0
        %v1237 = vsel %vm1110, %v1205, -inf
        %1238 = vmax.xlane.f32.xlu0 %v1237
        %v1239 = vpop.xlane.xlu0 %1238
        %v1240 = vsel %vm1110, %v1234, -inf
        %1241 = vmax.xlane.f32.xlu0 %v1240
        %v1242 = vpop.xlane.xlu0 %1241
        %v1243 = vsub.f32 %v1205, %v1239
        %v1244 = vsub.f32 %v1234, %v1242
        %v1245 = vmul.f32 %v1243, 1.442695
        %v1246 = vpow.pop %v1245
        %v1247 = vmul.f32 %v1244, 1.442695
        %v1248 = vpow.pop %v1247
        %v1249 = vsel %vm1110, %v1246, 0.0
        %1250 = vadd.xlane.f32.xlu0 %v1249
        %v1251 = vpop.xlane.xlu0 %1250
        %v1252 = vsel %vm1110, %v1248, 0.0
        %1253 = vadd.xlane.f32.xlu0 %v1252
        %v1254 = vpop.xlane.xlu0 %1253
        %v1255 = vrcp.pop %v1251
        %v1256 = vrcp.pop %v1254
        %v1257 = vmul.f32 %v1246, %v1255
        %v1258 = vmul.f32 %v1248, %v1256
        %v1259 = vpack.c.bf16 %v1257, %v1257
        %v1260 = vpack.c.bf16 %v1258, %v1258
        %v1262 = vunpack.c.l.b16 %v1060
        %v1263 = vpack.c.b16 %v1262, %v1262
        %1264 = vrot.lane.b32.xlu0 %v1263, 96
        %v1265 = vpop.permute.xlu0 %1264
        %v1267 = vsel %vm1110, %v1259, 0
        %v1270 = vsel %vm1138, %v1265, 0
        %1272 = vmatpush.bf16.msra.mxu0 0
        %1273 = vmatpush.bf16.msra.mxu0 0
        %1274 = vmatpush.bf16.msra.mxu0 0
        %1275 = vmatpush.bf16.msra.mxu0 0
        %1276 = vmatpush.bf16.msra.mxu0 0
        %1277 = vmatpush.bf16.msra.mxu0 0
        %1278 = vmatpush.bf16.msra.mxu0 0
        %1279 = vmatpush.bf16.msra.mxu0 %v1270
        %1280 = vmatmul.bf16.gmra.mxu0 %v1267
        %v1281 = vpop.f32.mrf.mxu0
        %v1282 = vadd.f32 0.0, %v1281
        %v1283 = vpop.f32.mrf.mxu0
        %1284 = vdwg.mxu0
        %v1286 = vunpack.c.l.b16 %v1061
        %v1287 = vpack.c.b16 %v1286, %v1286
        %1288 = vrot.lane.b32.xlu0 %v1287, 96
        %v1289 = vpop.permute.xlu0 %1288
        %v1291 = vsel %vm1110, %v1260, 0
        %v1294 = vsel %vm1138, %v1289, 0
        %1296 = vmatpush.bf16.msra.mxu0 0
        %1297 = vmatpush.bf16.msra.mxu0 0
        %1298 = vmatpush.bf16.msra.mxu0 0
        %1299 = vmatpush.bf16.msra.mxu0 0
        %1300 = vmatpush.bf16.msra.mxu0 0
        %1301 = vmatpush.bf16.msra.mxu0 0
        %1302 = vmatpush.bf16.msra.mxu0 0
        %1303 = vmatpush.bf16.msra.mxu0 %v1294
        %1304 = vmatmul.bf16.gmra.mxu0 %v1291
        %v1305 = vpop.f32.mrf.mxu0
        %v1306 = vadd.f32 0.0, %v1305
        %v1307 = vpop.f32.mrf.mxu0
        %1308 = vdwg.mxu0
        %v1309 = vpack.c.bf16 %v1306, %v1282
        %v1310 = vld [vmem:[%s645 + $0x10] sm:$0xf]
        %v1311 = vld [vmem:[%s645 + $0x14] sm:$0xf]
        %v1312 = vld [vmem:[%s645 + $0x18] sm:$0xf]
        %v1313 = vld [vmem:[%s645 + $0x1c] sm:$0xf]
        %v1318 = vunpack.c.l.b16 %v1310
        %v1319 = vunpack.c.l.b16 %v1311
        %v1320 = vunpack.c.l.b16 %v1312
        %v1321 = vunpack.c.l.b16 %v1313
        %v1322 = vpack.c.b16 %v1319, %v1318
        %v1323 = vpack.c.b16 %v1321, %v1320
        %v1327 = vsel %vm1071, %v1309, 0
        %1329 = vmatpush.bf16.msra.mxu0 0
        %1330 = vmatpush.bf16.msra.mxu0 0
        %1331 = vmatpush.bf16.msra.mxu0 0
        %1332 = vmatpush.bf16.msra.mxu0 0
        %1333 = vmatpush.bf16.msra.mxu0 0
        %1334 = vmatpush.bf16.msra.mxu0 0
        %1335 = vmatpush.bf16.msra.mxu0 %v1323
        %1336 = vmatpush.bf16.msra.mxu0 %v1322
        %1337 = vmatmul.bf16.gmra.mxu0 %v1327
        %v1338 = vpop.f32.mrf.mxu0
        %v1339 = vadd.f32 0.0, %v1338
        %v1340 = vpop.f32.mrf.mxu0
        %v1341 = vadd.f32 0.0, %v1340
        %1342 = vdwg.mxu0
        %v1347 = vunpack.c.l.b16 %v1175
        %v1348 = vunpack.c.l.b16 %v1176
        %v1349 = vunpack.c.l.b16 %v1177
        %v1350 = vunpack.c.l.b16 %v1178
        %v1351 = vpack.c.b16 %v1348, %v1347
        %v1352 = vpack.c.b16 %v1350, %v1349
        %v1356 = vsel %vm1071, %v1174, 0
        %1358 = vmatpush.bf16.msra.mxu0 0
        %1359 = vmatpush.bf16.msra.mxu0 0
        %1360 = vmatpush.bf16.msra.mxu0 0
        %1361 = vmatpush.bf16.msra.mxu0 0
        %1362 = vmatpush.bf16.msra.mxu0 0
        %1363 = vmatpush.bf16.msra.mxu0 0
        %1364 = vmatpush.bf16.msra.mxu0 %v1352
        %1365 = vmatpush.bf16.msra.mxu0 %v1351
        %1366 = vmatmul.bf16.gmra.mxu0 %v1356
        %v1367 = vpop.f32.mrf.mxu0
        %v1368 = vadd.f32 %v1339, %v1367
        %v1369 = vpop.f32.mrf.mxu0
        %v1370 = vadd.f32 %v1341, %v1369
        %1371 = vdwg.mxu0
        %1372 = vrot.lane.b32.xlu0 %v1181, 64
        %v1373 = vpop.permute.xlu0 %1372
        %1374 = vrot.lane.b32.xlu0 %v1186, 64
        %v1375 = vpop.permute.xlu0 %1374
        %v1377 = vsel %vm1071, %v1373, 0
        %v1380 = vsel %vm1071, %v1375, 0
        %1382 = vmatpush.bf16.xpose.msra.mxu0 0
        %1383 = vmatpush.bf16.xpose.msra.mxu0 0
        %1384 = vmatpush.bf16.xpose.msra.mxu0 0
        %1385 = vmatpush.bf16.xpose.msra.mxu0 0
        %1386 = vmatpush.bf16.xpose.msra.mxu0 0
        %1387 = vmatpush.bf16.xpose.msra.mxu0 0
        %1388 = vmatpush.bf16.xpose.msra.mxu0 0
        %1389 = vmatpush.bf16.xpose.msra.mxu0 %v1380
        %1390 = vmatmul.bf16.gmra.mxu0 %v1377
        %v1391 = vpop.f32.mrf.mxu0
        %v1392 = vadd.f32 %v1067, %v1391
        %v1393 = vpop.f32.mrf.mxu0
        %1394 = vdwg.mxu0
        %1395 = vrot.lane.b32.xlu0 %v1210, 64
        %v1396 = vpop.permute.xlu0 %1395
        %1397 = vrot.lane.b32.xlu0 %v1215, 64
        %v1398 = vpop.permute.xlu0 %1397
        %v1400 = vsel %vm1071, %v1396, 0
        %v1403 = vsel %vm1071, %v1398, 0
        %1405 = vmatpush.bf16.xpose.msra.mxu0 0
        %1406 = vmatpush.bf16.xpose.msra.mxu0 0
        %1407 = vmatpush.bf16.xpose.msra.mxu0 0
        %1408 = vmatpush.bf16.xpose.msra.mxu0 0
        %1409 = vmatpush.bf16.xpose.msra.mxu0 0
        %1410 = vmatpush.bf16.xpose.msra.mxu0 0
        %1411 = vmatpush.bf16.xpose.msra.mxu0 0
        %1412 = vmatpush.bf16.xpose.msra.mxu0 %v1403
        %1413 = vmatmul.bf16.gmra.mxu0 %v1400
        %v1414 = vpop.f32.mrf.mxu0
        %v1415 = vadd.f32 %v1068, %v1414
        %v1416 = vpop.f32.mrf.mxu0
        %1417 = vdwg.mxu0
        %v1418 = vsel %vm1110, %v1392, -inf
        %1419 = vmax.xlane.f32.xlu0 %v1418
        %v1420 = vpop.xlane.xlu0 %1419
        %v1421 = vsel %vm1110, %v1415, -inf
        %1422 = vmax.xlane.f32.xlu0 %v1421
        %v1423 = vpop.xlane.xlu0 %1422
        %v1424 = vsub.f32 %v1392, %v1420
        %v1425 = vsub.f32 %v1415, %v1423
        %v1426 = vmul.f32 %v1424, 1.442695
        %v1427 = vpow.pop %v1426
        %v1428 = vmul.f32 %v1425, 1.442695
        %v1429 = vpow.pop %v1428
        %v1430 = vsel %vm1110, %v1427, 0.0
        %1431 = vadd.xlane.f32.xlu0 %v1430
        %v1432 = vpop.xlane.xlu0 %1431
        %v1433 = vsel %vm1110, %v1429, 0.0
        %1434 = vadd.xlane.f32.xlu0 %v1433
        %v1435 = vpop.xlane.xlu0 %1434
        %v1436 = vrcp.pop %v1432
        %v1437 = vrcp.pop %v1435
        %v1438 = vmul.f32 %v1427, %v1436
        %v1439 = vmul.f32 %v1429, %v1437
        %v1440 = vpack.c.bf16 %v1438, %v1438
        %v1441 = vpack.c.bf16 %v1439, %v1439
        %1442 = vrot.lane.b32.xlu0 %v1263, 64
        %v1443 = vpop.permute.xlu0 %1442
        %v1445 = vsel %vm1110, %v1440, 0
        %v1448 = vsel %vm1138, %v1443, 0
        %1450 = vmatpush.bf16.msra.mxu0 0
        %1451 = vmatpush.bf16.msra.mxu0 0
        %1452 = vmatpush.bf16.msra.mxu0 0
        %1453 = vmatpush.bf16.msra.mxu0 0
        %1454 = vmatpush.bf16.msra.mxu0 0
        %1455 = vmatpush.bf16.msra.mxu0 0
        %1456 = vmatpush.bf16.msra.mxu0 0
        %1457 = vmatpush.bf16.msra.mxu0 %v1448
        %1458 = vmatmul.bf16.gmra.mxu0 %v1445
        %v1459 = vpop.f32.mrf.mxu0
        %v1460 = vadd.f32 0.0, %v1459
        %v1461 = vpop.f32.mrf.mxu0
        %1462 = vdwg.mxu0
        %1463 = vrot.lane.b32.xlu0 %v1287, 64
        %v1464 = vpop.permute.xlu0 %1463
        %v1466 = vsel %vm1110, %v1441, 0
        %v1469 = vsel %vm1138, %v1464, 0
        %1471 = vmatpush.bf16.msra.mxu0 0
        %1472 = vmatpush.bf16.msra.mxu0 0
        %1473 = vmatpush.bf16.msra.mxu0 0
        %1474 = vmatpush.bf16.msra.mxu0 0
        %1475 = vmatpush.bf16.msra.mxu0 0
        %1476 = vmatpush.bf16.msra.mxu0 0
        %1477 = vmatpush.bf16.msra.mxu0 0
        %1478 = vmatpush.bf16.msra.mxu0 %v1469
        %1479 = vmatmul.bf16.gmra.mxu0 %v1466
        %v1480 = vpop.f32.mrf.mxu0
        %v1481 = vadd.f32 0.0, %v1480
        %v1482 = vpop.f32.mrf.mxu0
        %1483 = vdwg.mxu0
        %v1484 = vpack.c.bf16 %v1481, %v1460
        %v1485 = vld [vmem:[%s645 + $0x20] sm:$0xf]
        %v1486 = vld [vmem:[%s645 + $0x24] sm:$0xf]
        %v1487 = vld [vmem:[%s645 + $0x28] sm:$0xf]
        %v1488 = vld [vmem:[%s645 + $0x2c] sm:$0xf]
        %v1493 = vunpack.c.l.b16 %v1485
        %v1494 = vunpack.c.l.b16 %v1486
        %v1495 = vunpack.c.l.b16 %v1487
        %v1496 = vunpack.c.l.b16 %v1488
        %v1497 = vpack.c.b16 %v1494, %v1493
        %v1498 = vpack.c.b16 %v1496, %v1495
        %v1502 = vsel %vm1071, %v1484, 0
        %1504 = vmatpush.bf16.msra.mxu0 0
        %1505 = vmatpush.bf16.msra.mxu0 0
        %1506 = vmatpush.bf16.msra.mxu0 0
        %1507 = vmatpush.bf16.msra.mxu0 0
        %1508 = vmatpush.bf16.msra.mxu0 0
        %1509 = vmatpush.bf16.msra.mxu0 0
        %1510 = vmatpush.bf16.msra.mxu0 %v1498
        %1511 = vmatpush.bf16.msra.mxu0 %v1497
        %1512 = vmatmul.bf16.gmra.mxu0 %v1502
        %v1513 = vpop.f32.mrf.mxu0
        %v1514 = vadd.f32 0.0, %v1513
        %v1515 = vpop.f32.mrf.mxu0
        %v1516 = vadd.f32 0.0, %v1515
        %1517 = vdwg.mxu0
        %v1518 = vadd.f32 %v1368, %v1514
        %v1519 = vadd.f32 %v1370, %v1516
        %1520 = vrot.lane.b32.xlu0 %v1181, 32
        %v1521 = vpop.permute.xlu0 %1520
        %1522 = vrot.lane.b32.xlu0 %v1186, 32
        %v1523 = vpop.permute.xlu0 %1522
        %v1525 = vsel %vm1071, %v1521, 0
        %v1528 = vsel %vm1071, %v1523, 0
        %1530 = vmatpush.bf16.xpose.msra.mxu0 0
        %1531 = vmatpush.bf16.xpose.msra.mxu0 0
        %1532 = vmatpush.bf16.xpose.msra.mxu0 0
        %1533 = vmatpush.bf16.xpose.msra.mxu0 0
        %1534 = vmatpush.bf16.xpose.msra.mxu0 0
        %1535 = vmatpush.bf16.xpose.msra.mxu0 0
        %1536 = vmatpush.bf16.xpose.msra.mxu0 0
        %1537 = vmatpush.bf16.xpose.msra.mxu0 %v1528
        %1538 = vmatmul.bf16.gmra.mxu0 %v1525
        %v1539 = vpop.f32.mrf.mxu0
        %v1540 = vadd.f32 %v1067, %v1539
        %v1541 = vpop.f32.mrf.mxu0
        %1542 = vdwg.mxu0
        %1543 = vrot.lane.b32.xlu0 %v1210, 32
        %v1544 = vpop.permute.xlu0 %1543
        %1545 = vrot.lane.b32.xlu0 %v1215, 32
        %v1546 = vpop.permute.xlu0 %1545
        %v1548 = vsel %vm1071, %v1544, 0
        %v1551 = vsel %vm1071, %v1546, 0
        %1553 = vmatpush.bf16.xpose.msra.mxu0 0
        %1554 = vmatpush.bf16.xpose.msra.mxu0 0
        %1555 = vmatpush.bf16.xpose.msra.mxu0 0
        %1556 = vmatpush.bf16.xpose.msra.mxu0 0
        %1557 = vmatpush.bf16.xpose.msra.mxu0 0
        %1558 = vmatpush.bf16.xpose.msra.mxu0 0
        %1559 = vmatpush.bf16.xpose.msra.mxu0 0
        %1560 = vmatpush.bf16.xpose.msra.mxu0 %v1551
        %1561 = vmatmul.bf16.gmra.mxu0 %v1548
        %v1562 = vpop.f32.mrf.mxu0
        %v1563 = vadd.f32 %v1068, %v1562
        %v1564 = vpop.f32.mrf.mxu0
        %1565 = vdwg.mxu0
        %v1566 = vsel %vm1110, %v1540, -inf
        %1567 = vmax.xlane.f32.xlu0 %v1566
        %v1568 = vpop.xlane.xlu0 %1567
        %v1569 = vsel %vm1110, %v1563, -inf
        %1570 = vmax.xlane.f32.xlu0 %v1569
        %v1571 = vpop.xlane.xlu0 %1570
        %v1572 = vsub.f32 %v1540, %v1568
        %v1573 = vsub.f32 %v1563, %v1571
        %v1574 = vmul.f32 %v1572, 1.442695
        %v1575 = vpow.pop %v1574
        %v1576 = vmul.f32 %v1573, 1.442695
        %v1577 = vpow.pop %v1576
        %v1578 = vsel %vm1110, %v1575, 0.0
        %1579 = vadd.xlane.f32.xlu0 %v1578
        %v1580 = vpop.xlane.xlu0 %1579
        %v1581 = vsel %vm1110, %v1577, 0.0
        %1582 = vadd.xlane.f32.xlu0 %v1581
        %v1583 = vpop.xlane.xlu0 %1582
        %v1584 = vrcp.pop %v1580
        %v1585 = vrcp.pop %v1583
        %v1586 = vmul.f32 %v1575, %v1584
        %v1587 = vmul.f32 %v1577, %v1585
        %v1588 = vpack.c.bf16 %v1586, %v1586
        %v1589 = vpack.c.bf16 %v1587, %v1587
        %1590 = vrot.lane.b32.xlu0 %v1263, 32
        %v1591 = vpop.permute.xlu0 %1590
        %v1593 = vsel %vm1110, %v1588, 0
        %v1596 = vsel %vm1138, %v1591, 0
        %1598 = vmatpush.bf16.msra.mxu0 0
        %1599 = vmatpush.bf16.msra.mxu0 0
        %1600 = vmatpush.bf16.msra.mxu0 0
        %1601 = vmatpush.bf16.msra.mxu0 0
        %1602 = vmatpush.bf16.msra.mxu0 0
        %1603 = vmatpush.bf16.msra.mxu0 0
        %1604 = vmatpush.bf16.msra.mxu0 0
        %1605 = vmatpush.bf16.msra.mxu0 %v1596
        %1606 = vmatmul.bf16.gmra.mxu0 %v1593
        %v1607 = vpop.f32.mrf.mxu0
        %v1608 = vadd.f32 0.0, %v1607
        %v1609 = vpop.f32.mrf.mxu0
        %1610 = vdwg.mxu0
        %1611 = vrot.lane.b32.xlu0 %v1287, 32
        %v1612 = vpop.permute.xlu0 %1611
        %v1614 = vsel %vm1110, %v1589, 0
        %v1617 = vsel %vm1138, %v1612, 0
        %1619 = vmatpush.bf16.msra.mxu0 0
        %1620 = vmatpush.bf16.msra.mxu0 0
        %1621 = vmatpush.bf16.msra.mxu0 0
        %1622 = vmatpush.bf16.msra.mxu0 0
        %1623 = vmatpush.bf16.msra.mxu0 0
        %1624 = vmatpush.bf16.msra.mxu0 0
        %1625 = vmatpush.bf16.msra.mxu0 0
        %1626 = vmatpush.bf16.msra.mxu0 %v1617
        %1627 = vmatmul.bf16.gmra.mxu0 %v1614
        %v1628 = vpop.f32.mrf.mxu0
        %v1629 = vadd.f32 0.0, %v1628
        %v1630 = vpop.f32.mrf.mxu0
        %1631 = vdwg.mxu0
        %v1632 = vpack.c.bf16 %v1629, %v1608
        %v1633 = vld [vmem:[%s645 + $0x30] sm:$0xf]
        %v1634 = vld [vmem:[%s645 + $0x34] sm:$0xf]
        %v1635 = vld [vmem:[%s645 + $0x38] sm:$0xf]
        %v1636 = vld [vmem:[%s645 + $0x3c] sm:$0xf]
        %v1641 = vunpack.c.l.b16 %v1633
        %v1642 = vunpack.c.l.b16 %v1634
        %v1643 = vunpack.c.l.b16 %v1635
        %v1644 = vunpack.c.l.b16 %v1636
        %v1645 = vpack.c.b16 %v1642, %v1641
        %v1646 = vpack.c.b16 %v1644, %v1643
        %v1650 = vsel %vm1071, %v1632, 0
        %1652 = vmatpush.bf16.msra.mxu0 0
        %1653 = vmatpush.bf16.msra.mxu0 0
        %1654 = vmatpush.bf16.msra.mxu0 0
        %1655 = vmatpush.bf16.msra.mxu0 0
        %1656 = vmatpush.bf16.msra.mxu0 0
        %1657 = vmatpush.bf16.msra.mxu0 0
        %1658 = vmatpush.bf16.msra.mxu0 %v1646
        %1659 = vmatpush.bf16.msra.mxu0 %v1645
        %1660 = vmatmul.bf16.gmra.mxu0 %v1650
        %v1661 = vpop.f32.mrf.mxu0
        %v1662 = vadd.f32 0.0, %v1661
        %v1663 = vpop.f32.mrf.mxu0
        %v1664 = vadd.f32 0.0, %v1663
        %1665 = vdwg.mxu0
        %v1666 = vadd.f32 %v1518, %v1662
        %v1667 = vadd.f32 %v1519, %v1664
        %v1668 = vperm.slane %v1064, 0
        %v1669 = vadd.f32 %v1666, %v1668
        %v1670 = vadd.f32 %v1667, %v1668
        %v1671 = vadd.f32 %v843, %v1669
        %v1672 = vadd.f32 %v844, %v1670
        %1673 = vadd.xlane.f32.xlu0 %v1671
        %v1674 = vpop.xlane.xlu0 %1673
        %1675 = vadd.xlane.f32.xlu0 %v1672
        %v1676 = vpop.xlane.xlu0 %1675
        %v1677 = vrcp.pop 128.0
        %v1678 = vmul.f32 128.0, %v1677
        %v1679 = vsub.f32 1.0, %v1678
        %v1680 = vmul.f32 %v1677, %v1679
        %v1681 = vadd.f32 %v1677, %v1680
        %vm1682 = vweird.f32 %v1677
        %v1683 = vsel %vm1682, %v1677, %v1681
        %v1684 = vmul.f32 %v1674, %v1683
        %v1685 = vmul.f32 %v1676, %v1683
        %v1686 = vsub.f32 %v1671, %v1684
        %v1687 = vsub.f32 %v1672, %v1685
        %v1688 = vmul.f32 %v1686, %v1686
        %v1689 = vmul.f32 %v1687, %v1687
        %1690 = vadd.xlane.f32.xlu0 %v1688
        %v1691 = vpop.xlane.xlu0 %1690
        %1692 = vadd.xlane.f32.xlu0 %v1689
        %v1693 = vpop.xlane.xlu0 %1692
        %v1694 = vmul.f32 %v1691, %v1683
        %v1695 = vmul.f32 %v1693, %v1683
        %v1696 = vadd.f32 %v1694, 1e-12
        %v1697 = vadd.f32 %v1695, 1e-12
        %v1698 = vrsqrt.pop %v1696
        %v1699 = vmul.f32 %v1698, %v1696
        %v1700 = vmul.f32 %v1699, %v1698
        %v1701 = vmul.f32 0.5, %v1700
        %v1702 = vsub.f32 1.5, %v1701
        %v1703 = vmul.f32 %v1698, %v1702
        %vm1704 = vweird.f32 %v1696
        %vm1705 = vweird.f32 %v1698
        %vm1706 = vmor %vm1704, %vm1705
        %v1707 = vsel %vm1706, %v1698, %v1703
        %v1708 = vrsqrt.pop %v1697
        %v1709 = vmul.f32 %v1708, %v1697
        %v1710 = vmul.f32 %v1709, %v1708
        %v1711 = vmul.f32 0.5, %v1710
        %v1712 = vsub.f32 1.5, %v1711
        %v1713 = vmul.f32 %v1708, %v1712
        %vm1714 = vweird.f32 %v1697
        %vm1715 = vweird.f32 %v1708
        %vm1716 = vmor %vm1714, %vm1715
        %v1717 = vsel %vm1716, %v1708, %v1713
        %v1718 = vmul.f32 %v1686, %v1707
        %v1719 = vmul.f32 %v1687, %v1717
        %v1720 = vperm.slane %v1064, 1
        %v1721 = vmul.f32 %v1718, %v1720
        %v1722 = vmul.f32 %v1719, %v1720
        %v1723 = vperm.slane %v1064, 2
        %v1724 = vadd.f32 %v1721, %v1723
        %v1725 = vadd.f32 %v1722, %v1723
        %v1726 = vpack.c.bf16 %v1725, %v1724
        %v1727 = vld [vmem:[%s655] sm:$0xff]
        %v1728 = vld [vmem:[%s655 + $0x8] sm:$0xff]
        %v1729 = vld [vmem:[%s655 + $0x10] sm:$0xff]
        %v1730 = vld [vmem:[%s655 + $0x18] sm:$0xff]
        %v1731 = vld [vmem:[%s655 + $0x20] sm:$0xff]
        %v1732 = vld [vmem:[%s655 + $0x28] sm:$0xff]
        %v1733 = vld [vmem:[%s655 + $0x30] sm:$0xff]
        %v1734 = vld [vmem:[%s655 + $0x38] sm:$0xff]
        %v1735 = vld [vmem:[%s655 + $0x40] sm:$0xff]
        %v1736 = vld [vmem:[%s655 + $0x48] sm:$0xff]
        %v1737 = vld [vmem:[%s655 + $0x50] sm:$0xff]
        %v1738 = vld [vmem:[%s655 + $0x58] sm:$0xff]
        %v1739 = vld [vmem:[%s655 + $0x60] sm:$0xff]
        %v1740 = vld [vmem:[%s655 + $0x68] sm:$0xff]
        %v1741 = vld [vmem:[%s655 + $0x70] sm:$0xff]
        %v1742 = vld [vmem:[%s655 + $0x78] sm:$0xff]
        %v1743 = vld [vmem:[%s655 + $0x80] sm:$0xff]
        %v1744 = vld [vmem:[%s655 + $0x88] sm:$0xff]
        %v1745 = vld [vmem:[%s655 + $0x90] sm:$0xff]
        %v1746 = vld [vmem:[%s655 + $0x98] sm:$0xff]
        %v1747 = vld [vmem:[%s655 + $0xa0] sm:$0xff]
        %v1748 = vld [vmem:[%s655 + $0xa8] sm:$0xff]
        %v1749 = vld [vmem:[%s655 + $0xb0] sm:$0xff]
        %v1750 = vld [vmem:[%s655 + $0xb8] sm:$0xff]
        %v1751 = vld [vmem:[%s655 + $0xc0] sm:$0xff]
        %v1752 = vld [vmem:[%s655 + $0xc8] sm:$0xff]
        %v1753 = vld [vmem:[%s655 + $0xd0] sm:$0xff]
        %v1754 = vld [vmem:[%s655 + $0xd8] sm:$0xff]
        %v1755 = vld [vmem:[%s655 + $0xe0] sm:$0xff]
        %v1756 = vld [vmem:[%s655 + $0xe8] sm:$0xff]
        %v1757 = vld [vmem:[%s655 + $0xf0] sm:$0xff]
        %v1758 = vld [vmem:[%s655 + $0xf8] sm:$0xff]
        %v1759 = vld [vmem:[%s774] sm:$0xf]
        %v1761 = vperm.slane %v1759, 0
        %v1762 = vperm.slane %v1759, 1
        %v1763 = vperm.slane %v1759, 2
        %v1764 = vperm.slane %v1759, 3
        %v1801 = vunpack.c.l.b16 %v1727
        %v1802 = vunpack.c.h.b16 %v1727
        %v1803 = vunpack.c.l.b16 %v1728
        %v1804 = vunpack.c.h.b16 %v1728
        %v1805 = vunpack.c.l.b16 %v1729
        %v1806 = vunpack.c.h.b16 %v1729
        %v1807 = vunpack.c.l.b16 %v1730
        %v1808 = vunpack.c.h.b16 %v1730
        %v1809 = vunpack.c.l.b16 %v1731
        %v1810 = vunpack.c.h.b16 %v1731
        %v1811 = vunpack.c.l.b16 %v1732
        %v1812 = vunpack.c.h.b16 %v1732
        %v1813 = vunpack.c.l.b16 %v1733
        %v1814 = vunpack.c.h.b16 %v1733
        %v1815 = vunpack.c.l.b16 %v1734
        %v1816 = vunpack.c.h.b16 %v1734
        %v1817 = vunpack.c.l.b16 %v1735
        %v1818 = vunpack.c.h.b16 %v1735
        %v1819 = vunpack.c.l.b16 %v1736
        %v1820 = vunpack.c.h.b16 %v1736
        %v1821 = vunpack.c.l.b16 %v1737
        %v1822 = vunpack.c.h.b16 %v1737
        %v1823 = vunpack.c.l.b16 %v1738
        %v1824 = vunpack.c.h.b16 %v1738
        %v1825 = vunpack.c.l.b16 %v1739
        %v1826 = vunpack.c.h.b16 %v1739
        %v1827 = vunpack.c.l.b16 %v1740
        %v1828 = vunpack.c.h.b16 %v1740
        %v1829 = vunpack.c.l.b16 %v1741
        %v1830 = vunpack.c.h.b16 %v1741
        %v1831 = vunpack.c.l.b16 %v1742
        %v1832 = vunpack.c.h.b16 %v1742
        %v1833 = vunpack.c.l.b16 %v1743
        %v1834 = vunpack.c.h.b16 %v1743
        %v1835 = vunpack.c.l.b16 %v1744
        %v1836 = vunpack.c.h.b16 %v1744
        %v1837 = vunpack.c.l.b16 %v1745
        %v1838 = vunpack.c.h.b16 %v1745
        %v1839 = vunpack.c.l.b16 %v1746
        %v1840 = vunpack.c.h.b16 %v1746
        %v1841 = vunpack.c.l.b16 %v1747
        %v1842 = vunpack.c.h.b16 %v1747
        %v1843 = vunpack.c.l.b16 %v1748
        %v1844 = vunpack.c.h.b16 %v1748
        %v1845 = vunpack.c.l.b16 %v1749
        %v1846 = vunpack.c.h.b16 %v1749
        %v1847 = vunpack.c.l.b16 %v1750
        %v1848 = vunpack.c.h.b16 %v1750
        %v1849 = vunpack.c.l.b16 %v1751
        %v1850 = vunpack.c.h.b16 %v1751
        %v1851 = vunpack.c.l.b16 %v1752
        %v1852 = vunpack.c.h.b16 %v1752
        %v1853 = vunpack.c.l.b16 %v1753
        %v1854 = vunpack.c.h.b16 %v1753
        %v1855 = vunpack.c.l.b16 %v1754
        %v1856 = vunpack.c.h.b16 %v1754
        %v1857 = vunpack.c.l.b16 %v1755
        %v1858 = vunpack.c.h.b16 %v1755
        %v1859 = vunpack.c.l.b16 %v1756
        %v1860 = vunpack.c.h.b16 %v1756
        %v1861 = vunpack.c.l.b16 %v1757
        %v1862 = vunpack.c.h.b16 %v1757
        %v1863 = vunpack.c.l.b16 %v1758
        %v1864 = vunpack.c.h.b16 %v1758
        %v1865 = vpack.c.b16 %v1805, %v1801
        %v1866 = vpack.c.b16 %v1806, %v1802
        %v1867 = vpack.c.b16 %v1807, %v1803
        %v1868 = vpack.c.b16 %v1808, %v1804
        %v1869 = vpack.c.b16 %v1813, %v1809
        %v1870 = vpack.c.b16 %v1814, %v1810
        %v1871 = vpack.c.b16 %v1815, %v1811
        %v1872 = vpack.c.b16 %v1816, %v1812
        %v1873 = vpack.c.b16 %v1821, %v1817
        %v1874 = vpack.c.b16 %v1822, %v1818
        %v1875 = vpack.c.b16 %v1823, %v1819
        %v1876 = vpack.c.b16 %v1824, %v1820
        %v1877 = vpack.c.b16 %v1829, %v1825
        %v1878 = vpack.c.b16 %v1830, %v1826
        %v1879 = vpack.c.b16 %v1831, %v1827
        %v1880 = vpack.c.b16 %v1832, %v1828
        %v1881 = vpack.c.b16 %v1837, %v1833
        %v1882 = vpack.c.b16 %v1838, %v1834
        %v1883 = vpack.c.b16 %v1839, %v1835
        %v1884 = vpack.c.b16 %v1840, %v1836
        %v1885 = vpack.c.b16 %v1845, %v1841
        %v1886 = vpack.c.b16 %v1846, %v1842
        %v1887 = vpack.c.b16 %v1847, %v1843
        %v1888 = vpack.c.b16 %v1848, %v1844
        %v1889 = vpack.c.b16 %v1853, %v1849
        %v1890 = vpack.c.b16 %v1854, %v1850
        %v1891 = vpack.c.b16 %v1855, %v1851
        %v1892 = vpack.c.b16 %v1856, %v1852
        %v1893 = vpack.c.b16 %v1861, %v1857
        %v1894 = vpack.c.b16 %v1862, %v1858
        %v1895 = vpack.c.b16 %v1863, %v1859
        %v1896 = vpack.c.b16 %v1864, %v1860
        %1929 = vmatpush.bf16.msra.mxu0 %v1893
        %1930 = vmatpush.bf16.msra.mxu0 %v1889
        %1931 = vmatpush.bf16.msra.mxu0 %v1885
        %1932 = vmatpush.bf16.msra.mxu0 %v1881
        %1933 = vmatpush.bf16.msra.mxu0 %v1877
        %1934 = vmatpush.bf16.msra.mxu0 %v1873
        %1935 = vmatpush.bf16.msra.mxu0 %v1869
        %1936 = vmatpush.bf16.msra.mxu0 %v1865
        %1937 = vmatmul.bf16.gmra.mxu0 %v1726
        %v1938 = vpop.f32.mrf.mxu0
        %v1939 = vadd.f32 %v1761, %v1938
        %v1940 = vpop.f32.mrf.mxu0
        %v1941 = vadd.f32 %v1761, %v1940
        %1942 = vdwg.mxu0
        %1943 = vmatpush.bf16.msra.mxu0 %v1894
        %1944 = vmatpush.bf16.msra.mxu0 %v1890
        %1945 = vmatpush.bf16.msra.mxu0 %v1886
        %1946 = vmatpush.bf16.msra.mxu0 %v1882
        %1947 = vmatpush.bf16.msra.mxu0 %v1878
        %1948 = vmatpush.bf16.msra.mxu0 %v1874
        %1949 = vmatpush.bf16.msra.mxu0 %v1870
        %1950 = vmatpush.bf16.msra.mxu0 %v1866
        %1951 = vmatmul.bf16.gmra.mxu0 %v1726
        %v1952 = vpop.f32.mrf.mxu0
        %v1953 = vadd.f32 %v1762, %v1952
        %v1954 = vpop.f32.mrf.mxu0
        %v1955 = vadd.f32 %v1762, %v1954
        %1956 = vdwg.mxu0
        %1957 = vmatpush.bf16.msra.mxu0 %v1895
        %1958 = vmatpush.bf16.msra.mxu0 %v1891
        %1959 = vmatpush.bf16.msra.mxu0 %v1887
        %1960 = vmatpush.bf16.msra.mxu0 %v1883
        %1961 = vmatpush.bf16.msra.mxu0 %v1879
        %1962 = vmatpush.bf16.msra.mxu0 %v1875
        %1963 = vmatpush.bf16.msra.mxu0 %v1871
        %1964 = vmatpush.bf16.msra.mxu0 %v1867
        %1965 = vmatmul.bf16.gmra.mxu0 %v1726
        %v1966 = vpop.f32.mrf.mxu0
        %v1967 = vadd.f32 %v1763, %v1966
        %v1968 = vpop.f32.mrf.mxu0
        %v1969 = vadd.f32 %v1763, %v1968
        %1970 = vdwg.mxu0
        %1971 = vmatpush.bf16.msra.mxu0 %v1896
        %1972 = vmatpush.bf16.msra.mxu0 %v1892
        %1973 = vmatpush.bf16.msra.mxu0 %v1888
        %1974 = vmatpush.bf16.msra.mxu0 %v1884
        %1975 = vmatpush.bf16.msra.mxu0 %v1880
        %1976 = vmatpush.bf16.msra.mxu0 %v1876
        %1977 = vmatpush.bf16.msra.mxu0 %v1872
        %1978 = vmatpush.bf16.msra.mxu0 %v1868
        %1979 = vmatmul.bf16.gmra.mxu0 %v1726
        %v1980 = vpop.f32.mrf.mxu0
        %v1981 = vadd.f32 %v1764, %v1980
        %v1982 = vpop.f32.mrf.mxu0
        %v1983 = vadd.f32 %v1764, %v1982
        %1984 = vdwg.mxu0
        %v1985 = vmul.f32 %v1939, 0.5
        %v1986 = vmul.f32 %v1953, 0.5
        %v1987 = vmul.f32 %v1967, 0.5
        %v1988 = vmul.f32 %v1981, 0.5
        %v1989 = vmul.f32 %v1941, 0.5
        %v1990 = vmul.f32 %v1955, 0.5
        %v1991 = vmul.f32 %v1969, 0.5
        %v1992 = vmul.f32 %v1983, 0.5
        %v1993 = vmul.f32 %v1939, 0.044715
        %v1994 = vmul.f32 %v1953, 0.044715
        %v1995 = vmul.f32 %v1967, 0.044715
        %v1996 = vmul.f32 %v1981, 0.044715
        %v1997 = vmul.f32 %v1941, 0.044715
        %v1998 = vmul.f32 %v1955, 0.044715
        %v1999 = vmul.f32 %v1969, 0.044715
        %v2000 = vmul.f32 %v1983, 0.044715
        %v2001 = vmul.f32 %v1993, %v1939
        %v2002 = vmul.f32 %v1994, %v1953
        %v2003 = vmul.f32 %v1995, %v1967
        %v2004 = vmul.f32 %v1996, %v1981
        %v2005 = vmul.f32 %v1997, %v1941
        %v2006 = vmul.f32 %v1998, %v1955
        %v2007 = vmul.f32 %v1999, %v1969
        %v2008 = vmul.f32 %v2000, %v1983
        %v2009 = vmul.f32 %v2001, %v1939
        %v2010 = vmul.f32 %v2002, %v1953
        %v2011 = vmul.f32 %v2003, %v1967
        %v2012 = vmul.f32 %v2004, %v1981
        %v2013 = vmul.f32 %v2005, %v1941
        %v2014 = vmul.f32 %v2006, %v1955
        %v2015 = vmul.f32 %v2007, %v1969
        %v2016 = vmul.f32 %v2008, %v1983
        %v2017 = vadd.f32 %v1939, %v2009
        %v2018 = vadd.f32 %v1953, %v2010
        %v2019 = vadd.f32 %v1967, %v2011
        %v2020 = vadd.f32 %v1981, %v2012
        %v2021 = vadd.f32 %v1941, %v2013
        %v2022 = vadd.f32 %v1955, %v2014
        %v2023 = vadd.f32 %v1969, %v2015
        %v2024 = vadd.f32 %v1983, %v2016
        %v2025 = vmul.f32 %v2017, 0.7978846
        %v2026 = vmul.f32 %v2018, 0.7978846
        %v2027 = vmul.f32 %v2019, 0.7978846
        %v2028 = vmul.f32 %v2020, 0.7978846
        %v2029 = vmul.f32 %v2021, 0.7978846
        %v2030 = vmul.f32 %v2022, 0.7978846
        %v2031 = vmul.f32 %v2023, 0.7978846
        %v2032 = vmul.f32 %v2024, 0.7978846
        %v2033 = vtanh.pop %v2025
        %v2034 = vtanh.pop %v2026
        %v2035 = vtanh.pop %v2027
        %v2036 = vtanh.pop %v2028
        %v2037 = vtanh.pop %v2029
        %v2038 = vtanh.pop %v2030
        %v2039 = vtanh.pop %v2031
        %v2040 = vtanh.pop %v2032
        %v2041 = vadd.f32 %v2033, 1.0
        %v2042 = vadd.f32 %v2034, 1.0
        %v2043 = vadd.f32 %v2035, 1.0
        %v2044 = vadd.f32 %v2036, 1.0
        %v2045 = vadd.f32 %v2037, 1.0
        %v2046 = vadd.f32 %v2038, 1.0
        %v2047 = vadd.f32 %v2039, 1.0
        %v2048 = vadd.f32 %v2040, 1.0
        %v2049 = vmul.f32 %v1985, %v2041
        %v2050 = vmul.f32 %v1986, %v2042
        %v2051 = vmul.f32 %v1987, %v2043
        %v2052 = vmul.f32 %v1988, %v2044
        %v2053 = vmul.f32 %v1989, %v2045
        %v2054 = vmul.f32 %v1990, %v2046
        %v2055 = vmul.f32 %v1991, %v2047
        %v2056 = vmul.f32 %v1992, %v2048
        %v2057 = vpack.c.bf16 %v2053, %v2049
        %v2058 = vpack.c.bf16 %v2054, %v2050
        %v2059 = vpack.c.bf16 %v2055, %v2051
        %v2060 = vpack.c.bf16 %v2056, %v2052
        %v2061 = vld [vmem:[%s665] sm:$0xf]
        %v2062 = vld [vmem:[%s665 + $0x4] sm:$0xf]
        %v2063 = vld [vmem:[%s665 + $0x8] sm:$0xf]
        %v2064 = vld [vmem:[%s665 + $0xc] sm:$0xf]
        %v2065 = vld [vmem:[%s665 + $0x10] sm:$0xf]
        %v2066 = vld [vmem:[%s665 + $0x14] sm:$0xf]
        %v2067 = vld [vmem:[%s665 + $0x18] sm:$0xf]
        %v2068 = vld [vmem:[%s665 + $0x1c] sm:$0xf]
        %v2069 = vld [vmem:[%s665 + $0x20] sm:$0xf]
        %v2070 = vld [vmem:[%s665 + $0x24] sm:$0xf]
        %v2071 = vld [vmem:[%s665 + $0x28] sm:$0xf]
        %v2072 = vld [vmem:[%s665 + $0x2c] sm:$0xf]
        %v2073 = vld [vmem:[%s665 + $0x30] sm:$0xf]
        %v2074 = vld [vmem:[%s665 + $0x34] sm:$0xf]
        %v2075 = vld [vmem:[%s665 + $0x38] sm:$0xf]
        %v2076 = vld [vmem:[%s665 + $0x3c] sm:$0xf]
        %v2077 = vld [vmem:[%s665 + $0x40] sm:$0xf]
        %v2078 = vld [vmem:[%s665 + $0x44] sm:$0xf]
        %v2079 = vld [vmem:[%s665 + $0x48] sm:$0xf]
        %v2080 = vld [vmem:[%s665 + $0x4c] sm:$0xf]
        %v2081 = vld [vmem:[%s665 + $0x50] sm:$0xf]
        %v2082 = vld [vmem:[%s665 + $0x54] sm:$0xf]
        %v2083 = vld [vmem:[%s665 + $0x58] sm:$0xf]
        %v2084 = vld [vmem:[%s665 + $0x5c] sm:$0xf]
        %v2085 = vld [vmem:[%s665 + $0x60] sm:$0xf]
        %v2086 = vld [vmem:[%s665 + $0x64] sm:$0xf]
        %v2087 = vld [vmem:[%s665 + $0x68] sm:$0xf]
        %v2088 = vld [vmem:[%s665 + $0x6c] sm:$0xf]
        %v2089 = vld [vmem:[%s665 + $0x70] sm:$0xf]
        %v2090 = vld [vmem:[%s665 + $0x74] sm:$0xf]
        %v2091 = vld [vmem:[%s665 + $0x78] sm:$0xf]
        %v2092 = vld [vmem:[%s665 + $0x7c] sm:$0xf]
        %v2093 = vld [vmem:[%s665 + $0x80] sm:$0xf]
        %v2094 = vld [vmem:[%s665 + $0x84] sm:$0xf]
        %v2095 = vld [vmem:[%s665 + $0x88] sm:$0xf]
        %v2096 = vld [vmem:[%s665 + $0x8c] sm:$0xf]
        %v2097 = vld [vmem:[%s665 + $0x90] sm:$0xf]
        %v2098 = vld [vmem:[%s665 + $0x94] sm:$0xf]
        %v2099 = vld [vmem:[%s665 + $0x98] sm:$0xf]
        %v2100 = vld [vmem:[%s665 + $0x9c] sm:$0xf]
        %v2101 = vld [vmem:[%s665 + $0xa0] sm:$0xf]
        %v2102 = vld [vmem:[%s665 + $0xa4] sm:$0xf]
        %v2103 = vld [vmem:[%s665 + $0xa8] sm:$0xf]
        %v2104 = vld [vmem:[%s665 + $0xac] sm:$0xf]
        %v2105 = vld [vmem:[%s665 + $0xb0] sm:$0xf]
        %v2106 = vld [vmem:[%s665 + $0xb4] sm:$0xf]
        %v2107 = vld [vmem:[%s665 + $0xb8] sm:$0xf]
        %v2108 = vld [vmem:[%s665 + $0xbc] sm:$0xf]
        %v2109 = vld [vmem:[%s665 + $0xc0] sm:$0xf]
        %v2110 = vld [vmem:[%s665 + $0xc4] sm:$0xf]
        %v2111 = vld [vmem:[%s665 + $0xc8] sm:$0xf]
        %v2112 = vld [vmem:[%s665 + $0xcc] sm:$0xf]
        %v2113 = vld [vmem:[%s665 + $0xd0] sm:$0xf]
        %v2114 = vld [vmem:[%s665 + $0xd4] sm:$0xf]
        %v2115 = vld [vmem:[%s665 + $0xd8] sm:$0xf]
        %v2116 = vld [vmem:[%s665 + $0xdc] sm:$0xf]
        %v2117 = vld [vmem:[%s665 + $0xe0] sm:$0xf]
        %v2118 = vld [vmem:[%s665 + $0xe4] sm:$0xf]
        %v2119 = vld [vmem:[%s665 + $0xe8] sm:$0xf]
        %v2120 = vld [vmem:[%s665 + $0xec] sm:$0xf]
        %v2121 = vld [vmem:[%s665 + $0xf0] sm:$0xf]
        %v2122 = vld [vmem:[%s665 + $0xf4] sm:$0xf]
        %v2123 = vld [vmem:[%s665 + $0xf8] sm:$0xf]
        %v2124 = vld [vmem:[%s665 + $0xfc] sm:$0xf]
        %v2125 = vperm.slane %v1064, 3
        %v2190 = vunpack.c.l.b16 %v2061
        %v2191 = vunpack.c.l.b16 %v2062
        %v2192 = vunpack.c.l.b16 %v2063
        %v2193 = vunpack.c.l.b16 %v2064
        %v2194 = vunpack.c.l.b16 %v2065
        %v2195 = vunpack.c.l.b16 %v2066
        %v2196 = vunpack.c.l.b16 %v2067
        %v2197 = vunpack.c.l.b16 %v2068
        %v2198 = vunpack.c.l.b16 %v2069
        %v2199 = vunpack.c.l.b16 %v2070
        %v2200 = vunpack.c.l.b16 %v2071
        %v2201 = vunpack.c.l.b16 %v2072
        %v2202 = vunpack.c.l.b16 %v2073
        %v2203 = vunpack.c.l.b16 %v2074
        %v2204 = vunpack.c.l.b16 %v2075
        %v2205 = vunpack.c.l.b16 %v2076
        %v2206 = vunpack.c.l.b16 %v2077
        %v2207 = vunpack.c.l.b16 %v2078
        %v2208 = vunpack.c.l.b16 %v2079
        %v2209 = vunpack.c.l.b16 %v2080
        %v2210 = vunpack.c.l.b16 %v2081
        %v2211 = vunpack.c.l.b16 %v2082
        %v2212 = vunpack.c.l.b16 %v2083
        %v2213 = vunpack.c.l.b16 %v2084
        %v2214 = vunpack.c.l.b16 %v2085
        %v2215 = vunpack.c.l.b16 %v2086
        %v2216 = vunpack.c.l.b16 %v2087
        %v2217 = vunpack.c.l.b16 %v2088
        %v2218 = vunpack.c.l.b16 %v2089
        %v2219 = vunpack.c.l.b16 %v2090
        %v2220 = vunpack.c.l.b16 %v2091
        %v2221 = vunpack.c.l.b16 %v2092
        %v2222 = vunpack.c.l.b16 %v2093
        %v2223 = vunpack.c.l.b16 %v2094
        %v2224 = vunpack.c.l.b16 %v2095
        %v2225 = vunpack.c.l.b16 %v2096
        %v2226 = vunpack.c.l.b16 %v2097
        %v2227 = vunpack.c.l.b16 %v2098
        %v2228 = vunpack.c.l.b16 %v2099
        %v2229 = vunpack.c.l.b16 %v2100
        %v2230 = vunpack.c.l.b16 %v2101
        %v2231 = vunpack.c.l.b16 %v2102
        %v2232 = vunpack.c.l.b16 %v2103
        %v2233 = vunpack.c.l.b16 %v2104
        %v2234 = vunpack.c.l.b16 %v2105
        %v2235 = vunpack.c.l.b16 %v2106
        %v2236 = vunpack.c.l.b16 %v2107
        %v2237 = vunpack.c.l.b16 %v2108
        %v2238 = vunpack.c.l.b16 %v2109
        %v2239 = vunpack.c.l.b16 %v2110
        %v2240 = vunpack.c.l.b16 %v2111
        %v2241 = vunpack.c.l.b16 %v2112
        %v2242 = vunpack.c.l.b16 %v2113
        %v2243 = vunpack.c.l.b16 %v2114
        %v2244 = vunpack.c.l.b16 %v2115
        %v2245 = vunpack.c.l.b16 %v2116
        %v2246 = vunpack.c.l.b16 %v2117
        %v2247 = vunpack.c.l.b16 %v2118
        %v2248 = vunpack.c.l.b16 %v2119
        %v2249 = vunpack.c.l.b16 %v2120
        %v2250 = vunpack.c.l.b16 %v2121
        %v2251 = vunpack.c.l.b16 %v2122
        %v2252 = vunpack.c.l.b16 %v2123
        %v2253 = vunpack.c.l.b16 %v2124
        %v2254 = vpack.c.b16 %v2191, %v2190
        %v2255 = vpack.c.b16 %v2193, %v2192
        %v2256 = vpack.c.b16 %v2195, %v2194
        %v2257 = vpack.c.b16 %v2197, %v2196
        %v2258 = vpack.c.b16 %v2199, %v2198
        %v2259 = vpack.c.b16 %v2201, %v2200
        %v2260 = vpack.c.b16 %v2203, %v2202
        %v2261 = vpack.c.b16 %v2205, %v2204
        %v2262 = vpack.c.b16 %v2207, %v2206
        %v2263 = vpack.c.b16 %v2209, %v2208
        %v2264 = vpack.c.b16 %v2211, %v2210
        %v2265 = vpack.c.b16 %v2213, %v2212
        %v2266 = vpack.c.b16 %v2215, %v2214
        %v2267 = vpack.c.b16 %v2217, %v2216
        %v2268 = vpack.c.b16 %v2219, %v2218
        %v2269 = vpack.c.b16 %v2221, %v2220
        %v2270 = vpack.c.b16 %v2223, %v2222
        %v2271 = vpack.c.b16 %v2225, %v2224
        %v2272 = vpack.c.b16 %v2227, %v2226
        %v2273 = vpack.c.b16 %v2229, %v2228
        %v2274 = vpack.c.b16 %v2231, %v2230
        %v2275 = vpack.c.b16 %v2233, %v2232
        %v2276 = vpack.c.b16 %v2235, %v2234
        %v2277 = vpack.c.b16 %v2237, %v2236
        %v2278 = vpack.c.b16 %v2239, %v2238
        %v2279 = vpack.c.b16 %v2241, %v2240
        %v2280 = vpack.c.b16 %v2243, %v2242
        %v2281 = vpack.c.b16 %v2245, %v2244
        %v2282 = vpack.c.b16 %v2247, %v2246
        %v2283 = vpack.c.b16 %v2249, %v2248
        %v2284 = vpack.c.b16 %v2251, %v2250
        %v2285 = vpack.c.b16 %v2253, %v2252
        %2318 = vmatpush.bf16.msra.mxu0 %v2261
        %2319 = vmatpush.bf16.msra.mxu0 %v2260
        %2320 = vmatpush.bf16.msra.mxu0 %v2259
        %2321 = vmatpush.bf16.msra.mxu0 %v2258
        %2322 = vmatpush.bf16.msra.mxu0 %v2257
        %2323 = vmatpush.bf16.msra.mxu0 %v2256
        %2324 = vmatpush.bf16.msra.mxu0 %v2255
        %2325 = vmatpush.bf16.msra.mxu0 %v2254
        %2326 = vmatmul.bf16.gmra.mxu0 %v2057
        %v2327 = vpop.f32.mrf.mxu0
        %v2328 = vadd.f32 %v2125, %v2327
        %v2329 = vpop.f32.mrf.mxu0
        %v2330 = vadd.f32 %v2125, %v2329
        %2331 = vdwg.mxu0
        %2332 = vmatpush.bf16.msra.mxu0 %v2269
        %2333 = vmatpush.bf16.msra.mxu0 %v2268
        %2334 = vmatpush.bf16.msra.mxu0 %v2267
        %2335 = vmatpush.bf16.msra.mxu0 %v2266
        %2336 = vmatpush.bf16.msra.mxu0 %v2265
        %2337 = vmatpush.bf16.msra.mxu0 %v2264
        %2338 = vmatpush.bf16.msra.mxu0 %v2263
        %2339 = vmatpush.bf16.msra.mxu0 %v2262
        %2340 = vmatmul.bf16.gmra.mxu0 %v2058
        %v2341 = vpop.f32.mrf.mxu0
        %v2342 = vadd.f32 %v2328, %v2341
        %v2343 = vpop.f32.mrf.mxu0
        %v2344 = vadd.f32 %v2330, %v2343
        %2345 = vdwg.mxu0
        %2346 = vmatpush.bf16.msra.mxu0 %v2277
        %2347 = vmatpush.bf16.msra.mxu0 %v2276
        %2348 = vmatpush.bf16.msra.mxu0 %v2275
        %2349 = vmatpush.bf16.msra.mxu0 %v2274
        %2350 = vmatpush.bf16.msra.mxu0 %v2273
        %2351 = vmatpush.bf16.msra.mxu0 %v2272
        %2352 = vmatpush.bf16.msra.mxu0 %v2271
        %2353 = vmatpush.bf16.msra.mxu0 %v2270
        %2354 = vmatmul.bf16.gmra.mxu0 %v2059
        %v2355 = vpop.f32.mrf.mxu0
        %v2356 = vadd.f32 %v2342, %v2355
        %v2357 = vpop.f32.mrf.mxu0
        %v2358 = vadd.f32 %v2344, %v2357
        %2359 = vdwg.mxu0
        %2360 = vmatpush.bf16.msra.mxu0 %v2285
        %2361 = vmatpush.bf16.msra.mxu0 %v2284
        %2362 = vmatpush.bf16.msra.mxu0 %v2283
        %2363 = vmatpush.bf16.msra.mxu0 %v2282
        %2364 = vmatpush.bf16.msra.mxu0 %v2281
        %2365 = vmatpush.bf16.msra.mxu0 %v2280
        %2366 = vmatpush.bf16.msra.mxu0 %v2279
        %2367 = vmatpush.bf16.msra.mxu0 %v2278
        %2368 = vmatmul.bf16.gmra.mxu0 %v2060
        %v2369 = vpop.f32.mrf.mxu0
        %v2370 = vadd.f32 %v2356, %v2369
        %v2371 = vpop.f32.mrf.mxu0
        %v2372 = vadd.f32 %v2358, %v2371
        %2373 = vdwg.mxu0
        %v2374 = vadd.f32 %v1724, %v2370
        %v2375 = vadd.f32 %v1725, %v2372
        %2376 = vadd.xlane.f32.xlu0 %v2374
        %v2377 = vpop.xlane.xlu0 %2376
        %2378 = vadd.xlane.f32.xlu0 %v2375
        %v2379 = vpop.xlane.xlu0 %2378
        %v2380 = vmul.f32 %v2377, %v1683
        %v2381 = vmul.f32 %v2379, %v1683
        %v2382 = vsub.f32 %v2374, %v2380
        %v2383 = vsub.f32 %v2375, %v2381
        %v2384 = vmul.f32 %v2382, %v2382
        %v2385 = vmul.f32 %v2383, %v2383
        %2386 = vadd.xlane.f32.xlu0 %v2384
        %v2387 = vpop.xlane.xlu0 %2386
        %2388 = vadd.xlane.f32.xlu0 %v2385
        %v2389 = vpop.xlane.xlu0 %2388
        %v2390 = vmul.f32 %v2387, %v1683
        %v2391 = vmul.f32 %v2389, %v1683
        %v2392 = vadd.f32 %v2390, 1e-12
        %v2393 = vadd.f32 %v2391, 1e-12
        %v2394 = vrsqrt.pop %v2392
        %v2395 = vmul.f32 %v2394, %v2392
        %v2396 = vmul.f32 %v2395, %v2394
        %v2397 = vmul.f32 0.5, %v2396
        %v2398 = vsub.f32 1.5, %v2397
        %v2399 = vmul.f32 %v2394, %v2398
        %vm2400 = vweird.f32 %v2392
        %vm2401 = vweird.f32 %v2394
        %vm2402 = vmor %vm2400, %vm2401
        %v2403 = vsel %vm2402, %v2394, %v2399
        %v2404 = vrsqrt.pop %v2393
        %v2405 = vmul.f32 %v2404, %v2393
        %v2406 = vmul.f32 %v2405, %v2404
        %v2407 = vmul.f32 0.5, %v2406
        %v2408 = vsub.f32 1.5, %v2407
        %v2409 = vmul.f32 %v2404, %v2408
        %vm2410 = vweird.f32 %v2393
        %vm2411 = vweird.f32 %v2404
        %vm2412 = vmor %vm2410, %vm2411
        %v2413 = vsel %vm2412, %v2404, %v2409
        %v2414 = vmul.f32 %v2382, %v2403
        %v2415 = vmul.f32 %v2383, %v2413
        %v2416 = vperm.slane %v1064, 4
        %v2417 = vmul.f32 %v2414, %v2416
        %v2418 = vmul.f32 %v2415, %v2416
        %v2419 = vperm.slane %v1064, 5
        %v2420 = vadd.f32 %v2417, %v2419
        %v2421 = vadd.f32 %v2418, %v2419
        %2422 = vst [vmem:[#allocation2] sm:$0xff] %v2420
        %2423 = vst [vmem:[#allocation2 + $0x8] sm:$0xff] %v2421
        %p2424 = scmp.eq.s32.totalorder %s38, 1
        // Predicated region
        $region113: #{tpu_custom_call.1} parent=75 // pred_check
          %p2425 = pneg %p2424
        $region114: #{tpu_custom_call.1} parent=75 // pred_check_branch
          %2427 = sbr.rel (%p2425) target = $region116
        $region115: #{tpu_custom_call.1} parent=75 // pred_region
          %v2428 = vld [vmem:[%s13] sm:$0xf]
          %v2429 = vpack.c.bf16 %v2420, %v2420
          %v2430 = vpack.c.bf16 %v2421, %v2421
          %v2431 = vld [vmem:[#allocation12] sm:$0xf]
          %v2432 = vld [vmem:[#allocation12 + $0x4] sm:$0xf]
          %v2433 = vld [vmem:[#allocation12 + $0x8] sm:$0xf]
          %v2434 = vld [vmem:[#allocation12 + $0xc] sm:$0xf]
          %v2435 = vld [vmem:[#allocation12 + $0x10] sm:$0xf]
          %v2436 = vld [vmem:[#allocation12 + $0x14] sm:$0xf]
          %v2437 = vld [vmem:[#allocation12 + $0x18] sm:$0xf]
          %v2438 = vld [vmem:[#allocation12 + $0x1c] sm:$0xf]
          %v2439 = vld [vmem:[#allocation12 + $0x20] sm:$0xf]
          %v2440 = vld [vmem:[#allocation12 + $0x24] sm:$0xf]
          %v2441 = vld [vmem:[#allocation12 + $0x28] sm:$0xf]
          %v2442 = vld [vmem:[#allocation12 + $0x2c] sm:$0xf]
          %v2443 = vld [vmem:[#allocation12 + $0x30] sm:$0xf]
          %v2444 = vld [vmem:[#allocation12 + $0x34] sm:$0xf]
          %v2445 = vld [vmem:[#allocation12 + $0x38] sm:$0xf]
          %v2446 = vld [vmem:[#allocation12 + $0x3c] sm:$0xf]
          %v2447 = vperm.slane %v2428, 0
          %v2450 = vunpack.c.l.b16 %v2429
          %v2451 = vunpack.c.l.b16 %v2430
          %v2452 = vrot.slane %v2451, 7
          %vm2453 = vcmask 1041409
          %v2454 = vsel %vm2453, %v2452, %v2450
          %v2455 = vpack.c.b16 %v2454, %v2454
          %v2473 = vunpack.c.l.b16 %v2431
          %v2474 = vunpack.c.l.b16 %v2432
          %v2475 = vunpack.c.l.b16 %v2433
          %v2476 = vunpack.c.l.b16 %v2434
          %v2477 = vunpack.c.l.b16 %v2435
          %v2478 = vunpack.c.l.b16 %v2436
          %v2479 = vunpack.c.l.b16 %v2437
          %v2480 = vunpack.c.l.b16 %v2438
          %v2481 = vunpack.c.l.b16 %v2439
          %v2482 = vunpack.c.l.b16 %v2440
          %v2483 = vunpack.c.l.b16 %v2441
          %v2484 = vunpack.c.l.b16 %v2442
          %v2485 = vunpack.c.l.b16 %v2443
          %v2486 = vunpack.c.l.b16 %v2444
          %v2487 = vunpack.c.l.b16 %v2445
          %v2488 = vunpack.c.l.b16 %v2446
          %v2489 = vpack.c.b16 %v2474, %v2473
          %v2490 = vpack.c.b16 %v2476, %v2475
          %v2491 = vpack.c.b16 %v2478, %v2477
          %v2492 = vpack.c.b16 %v2480, %v2479
          %v2493 = vpack.c.b16 %v2482, %v2481
          %v2494 = vpack.c.b16 %v2484, %v2483
          %v2495 = vpack.c.b16 %v2486, %v2485
          %v2496 = vpack.c.b16 %v2488, %v2487
          %2505 = vmatpush.bf16.msra.mxu0 %v2496
          %2506 = vmatpush.bf16.msra.mxu0 %v2495
          %2507 = vmatpush.bf16.msra.mxu0 %v2494
          %2508 = vmatpush.bf16.msra.mxu0 %v2493
          %2509 = vmatpush.bf16.msra.mxu0 %v2492
          %2510 = vmatpush.bf16.msra.mxu0 %v2491
          %2511 = vmatpush.bf16.msra.mxu0 %v2490
          %2512 = vmatpush.bf16.msra.mxu0 %v2489
          %2513 = vmatmul.bf16.gmra.mxu0 %v2455
          %v2514 = vpop.f32.mrf.mxu0
          %v2515 = vadd.f32 %v2447, %v2514
          %v2516 = vpop.f32.mrf.mxu0
          %2517 = vdwg.mxu0
          %v2518 = vmul.f32 %v2515, 0.5
          %v2519 = vmul.f32 %v2515, 0.044715
          %v2520 = vmul.f32 %v2519, %v2515
          %v2521 = vmul.f32 %v2520, %v2515
          %v2522 = vadd.f32 %v2515, %v2521
          %v2523 = vmul.f32 %v2522, 0.7978846
          %v2524 = vtanh.pop %v2523
          %v2525 = vadd.f32 %v2524, 1.0
          %v2526 = vmul.f32 %v2518, %v2525
          %v2527 = vpack.c.bf16 %v2526, %v2526
          %v2528 = vld [vmem:[#allocation13] sm:$0xf]
          %v2529 = vld [vmem:[#allocation13 + $0x4] sm:$0xf]
          %v2530 = vld [vmem:[#allocation13 + $0x8] sm:$0xf]
          %v2531 = vld [vmem:[#allocation13 + $0xc] sm:$0xf]
          %v2532 = vld [vmem:[#allocation13 + $0x10] sm:$0xf]
          %v2533 = vld [vmem:[#allocation13 + $0x14] sm:$0xf]
          %v2534 = vld [vmem:[#allocation13 + $0x18] sm:$0xf]
          %v2535 = vld [vmem:[#allocation13 + $0x1c] sm:$0xf]
          %v2536 = vld [vmem:[#allocation13 + $0x20] sm:$0xf]
          %v2537 = vld [vmem:[#allocation13 + $0x24] sm:$0xf]
          %v2538 = vld [vmem:[#allocation13 + $0x28] sm:$0xf]
          %v2539 = vld [vmem:[#allocation13 + $0x2c] sm:$0xf]
          %v2540 = vld [vmem:[#allocation13 + $0x30] sm:$0xf]
          %v2541 = vld [vmem:[#allocation13 + $0x34] sm:$0xf]
          %v2542 = vld [vmem:[#allocation13 + $0x38] sm:$0xf]
          %v2543 = vld [vmem:[#allocation13 + $0x3c] sm:$0xf]
          %v2544 = vperm.slane %v2428, 1
          %v2561 = vunpack.c.l.b16 %v2528
          %v2562 = vunpack.c.l.b16 %v2529
          %v2563 = vunpack.c.l.b16 %v2530
          %v2564 = vunpack.c.l.b16 %v2531
          %v2565 = vunpack.c.l.b16 %v2532
          %v2566 = vunpack.c.l.b16 %v2533
          %v2567 = vunpack.c.l.b16 %v2534
          %v2568 = vunpack.c.l.b16 %v2535
          %v2569 = vunpack.c.l.b16 %v2536
          %v2570 = vunpack.c.l.b16 %v2537
          %v2571 = vunpack.c.l.b16 %v2538
          %v2572 = vunpack.c.l.b16 %v2539
          %v2573 = vunpack.c.l.b16 %v2540
          %v2574 = vunpack.c.l.b16 %v2541
          %v2575 = vunpack.c.l.b16 %v2542
          %v2576 = vunpack.c.l.b16 %v2543
          %v2577 = vpack.c.b16 %v2562, %v2561
          %v2578 = vpack.c.b16 %v2564, %v2563
          %v2579 = vpack.c.b16 %v2566, %v2565
          %v2580 = vpack.c.b16 %v2568, %v2567
          %v2581 = vpack.c.b16 %v2570, %v2569
          %v2582 = vpack.c.b16 %v2572, %v2571
          %v2583 = vpack.c.b16 %v2574, %v2573
          %v2584 = vpack.c.b16 %v2576, %v2575
          %2593 = vmatpush.bf16.msra.mxu0 %v2584
          %2594 = vmatpush.bf16.msra.mxu0 %v2583
          %2595 = vmatpush.bf16.msra.mxu0 %v2582
          %2596 = vmatpush.bf16.msra.mxu0 %v2581
          %2597 = vmatpush.bf16.msra.mxu0 %v2580
          %2598 = vmatpush.bf16.msra.mxu0 %v2579
          %2599 = vmatpush.bf16.msra.mxu0 %v2578
          %2600 = vmatpush.bf16.msra.mxu0 %v2577
          %2601 = vmatmul.bf16.gmra.mxu0 %v2527
          %v2602 = vpop.f32.mrf.mxu0
          %v2603 = vadd.f32 %v2544, %v2602
          %v2604 = vpop.f32.mrf.mxu0
          %2605 = vdwg.mxu0
          %v2606 = vadd.f32 %v2603, %v2515
          %vm2607 = vcmask 1041408
          %v2608 = vsel %vm2607, %v2606, 0.0
          %2609 = vadd.xlane.f32.xlu0 %v2608
          %v2610 = vpop.xlane.xlu0 %2609
          %v2611 = vmul.f32 %v2610, %v1683
          %v2612 = vsub.f32 %v2606, %v2611
          %v2613 = vmul.f32 %v2612, %v2612
          %v2614 = vsel %vm2607, %v2613, 0.0
          %2615 = vadd.xlane.f32.xlu0 %v2614
          %v2616 = vpop.xlane.xlu0 %2615
          %v2617 = vmul.f32 %v2616, %v1683
          %v2618 = vadd.f32 %v2617, 1e-05
          %v2619 = vrsqrt.pop %v2618
          %v2620 = vmul.f32 %v2619, %v2618
          %v2621 = vmul.f32 %v2620, %v2619
          %v2622 = vmul.f32 0.5, %v2621
          %v2623 = vsub.f32 1.5, %v2622
          %v2624 = vmul.f32 %v2619, %v2623
          %vm2625 = vweird.f32 %v2618
          %vm2626 = vweird.f32 %v2619
          %vm2627 = vmor %vm2625, %vm2626
          %v2628 = vsel %vm2627, %v2619, %v2624
          %v2629 = vmul.f32 %v2612, %v2628
          %v2630 = vperm.slane %v2428, 2
          %v2631 = vmul.f32 %v2629, %v2630
          %v2632 = vperm.slane %v2428, 3
          %v2633 = vadd.f32 %v2631, %v2632
          %v2634 = vmul.f32 %v2633, %v2633
          %v2635 = vsel %vm2607, %v2634, 0.0
          %2636 = vadd.xlane.f32.xlu0 %v2635
          %v2637 = vpop.xlane.xlu0 %2636
          %v2638 = vrsqrt.pop %v2637
          %v2639 = vmul.f32 %v2638, %v2637
          %v2640 = vmul.f32 %v2639, %v2638
          %v2641 = vmul.f32 0.5, %v2640
          %v2642 = vsub.f32 1.5, %v2641
          %v2643 = vmul.f32 %v2638, %v2642
          %v2644 = vmul.f32 %v2637, %v2643
          %vm2645 = vcmp.eq.f32.partialorder %v2637, inf
          %v2646 = vsel %vm2645, %v2637, %v2644
          %vm2647 = vcmp.eq.f32.partialorder %v2637, 0.0
          %v2648 = vand.u32 %v2637, 2147483648
          %v2649 = vsel %vm2647, %v2648, %v2646
          %v2650 = vmax.f32 %v2649, 1e-12
          %v2651 = vrcp.pop %v2650
          %v2652 = vmul.f32 %v2650, %v2651
          %v2653 = vsub.f32 1.0, %v2652
          %v2654 = vmul.f32 %v2651, %v2653
          %v2655 = vadd.f32 %v2651, %v2654
          %vm2656 = vweird.f32 %v2650
          %vm2657 = vweird.f32 %v2651
          %vm2658 = vmor %vm2656, %vm2657
          %v2659 = vsel %vm2658, %v2651, %v2655
          %v2660 = vand.u32 2147483647, %v2650
          %vm2661 = vcmp.eq.f32.partialorder %v2660, 8.507059e+37
          %v2662 = vand.u32 %v2650, 2147483648
          %v2663 = vor.u32 1.1754944e-38, %v2662
          %v2664 = vsel %vm2661, %v2663, %v2659
          %v2665 = vmul.f32 %v2633, %v2664
          %v2667 = vrot.slane %v2665, 1
          %2669 = vst [vmem:[%s756] sm:$0x1] %v2665
          %2670 = vst [vmem:[%s756 + $0x1] sm:$0x1] %v2667
        $region116: #{tpu_custom_call.1} parent=75 // pred_fallthru
          _
        %s2671 = sand.u32 %s392, 1
        %s2672 = scalar_lea.sflag [#allocation5], %s2671
        %s2673 = sand.u32 %s392, 1
        %s2674 = smul.addr %s2673, 2
        %s2675 = scalar_lea.vmem [#allocation15], %s2674
        // Predicated region
        $region117: #{tpu_custom_call.1} parent=75 // pred_check
          %p2676 = pneg %p402
        $region118: #{tpu_custom_call.1} parent=75 // pred_check_branch
          %2678 = sbr.rel (%p2676) target = $region120
        $region119: #{tpu_custom_call.1} parent=75 // pred_region
          %s2679 = smul.u32 2, %s37
          %2681 = vsyncadd %s2672, 0
          %s2682 = scalar_lea.hbm %s14, %s2679
          %s2683 = sshll.u32 %s2675, 4
          %s2684 = int_to_ptr.vmem [resolvable:$true] %s2683
          %s2685 = sshll.u32 %s2682, 4
          %s2686 = int_to_ptr.hbm [resolvable:$true] %s2685
          %2691 = dma.vmem_to_hbm [thread:$0]  %s2684, 32, %s2686, %s2672, 16, 16, 1
        $region120: #{tpu_custom_call.1} parent=75 // pred_fallthru
          _
      $region76: #{tpu_custom_call.1} parent=5 // pred_fallthru
        _
      %p2692 = scmp.le.s32.totalorder 2, %s28
      // Predicated region
      $region121: #{tpu_custom_call.1} parent=5 // pred_check
        %p2693 = pneg %p2692
      $region122: #{tpu_custom_call.1} parent=5 // pred_check_branch
        %2695 = sbr.rel (%p2693) target = $region124
      $region123: #{tpu_custom_call.1} parent=5 // pred_region
        %s2696 = ssub.s32 %s28, 2
        // Predicated region
        $region125: #{tpu_custom_call.1} parent=123 // pred_check
          %p2697 = pneg %p408
        $region126: #{tpu_custom_call.1} parent=123 // pred_check_branch
          %2699 = sbr.rel (%p2697) target = $region128
        $region127: #{tpu_custom_call.1} parent=123 // pred_region
          %s2700 = sand.u32 %s393, 1
          %s2701 = scalar_lea.sflag [#allocation5], %s2700
          %s2702 = sand.u32 %s393, 1
          %s2703 = smul.addr %s2702, 2
          %s2704 = scalar_lea.vmem [#allocation15], %s2703
          %2706 = dma.done %s2701, 32
        $region128: #{tpu_custom_call.1} parent=123 // pred_fallthru
          _
      $region124: #{tpu_custom_call.1} parent=5 // pred_fallthru
        _
    $region6: #{tpu_custom_call.1} parent=1 // loop_footer
      %s32 = sadd.s32 1, %s28
    $region7: #{tpu_custom_call.1} parent=1 // loop_footer_branch
      %27 = sbr.rel target = $region3
    $region8: #{tpu_custom_call.1} parent=1 // loop_exit
      _
    %2707 = vsyncpa [#allocation4], 1
    %s2708 = scalar_lea.sflag [#allocation4], 1
    %2709 = vsyncpa %s2708, 1
    %2710 = vsyncpa [#allocation7], 1
    %2711 = vsyncpa [#allocation14], 1
    %2712 = vsyncpa [#allocation5], 1
    %s2713 = scalar_lea.sflag [#allocation5], 1
    %2714 = vsyncpa %s2713, 1

</llo_original>
